<compile_context>
chip_gen: v5e
topology: v5e:2x2
jax: 0.10.0
libtpu: 0.0.40
codegen_flags: <defaults>
</compile_context>

<pallas_src>
import functools

import jax
import jax.numpy as jnp
from jax.experimental import pallas as pl
from jax.experimental.pallas import tpu as pltpu

BN_EPS = 1e-5


def _round_up(x, m):
    return (x + m - 1) // m * m


def _pick_row_tile(h, w, n):
    """Largest row tile th dividing h with a modest (th*W) matmul M-dim and,
    when the shape allows it, >= 4 grid steps (>= 2 per v7x TensorCore)."""
    valid = [th for th in range(h, 0, -1)
             if h % th == 0
             and (th == h or (th * w) % 8 == 0)   # sublane-legal output block
             and th * w <= 2048]                  # keep per-step tiles modest (v7x VMEM)
    if not valid:
        return h
    for th in valid:                              # descending: prefer the largest tile
        if n * (h // th) >= 4:
            return th
    return valid[0]


# ----------------------------------------------------------------------------
# Fused kernel: one (batch, row-block) step.
#   acc  = sum over 9 taps of  x_tap @ (W1_tap * bn_scale)      (f32 accumulate)
#   hid  = relu(acc + bn_bias)                                   (Dropout2d = id)
#   out  = hid @ W2 + b2                                         (bf16 writeback)
# ----------------------------------------------------------------------------
def _fcn_head_kernel(x_ref, w1_ref, b1_ref, w2_ref, b2_ref, o_ref, *, th, width):
    # x_ref : (1, H+2, W+2, Cin) bf16   padded slab of the current batch element
    # w1_ref: (9, Cin, Cmid)     bf16   3x3 taps, BN scale folded in
    # b1_ref: (1, Cmid)          f32    folded BN bias
    # w2_ref: (Cmid, Nout)       bf16   1x1 conv weight
    # b2_ref: (1, Nout)          f32    1x1 conv bias
    # o_ref : (1, th*W, Nout)    bf16
    cin = x_ref.shape[-1]
    cmid = w1_ref.shape[-1]
    row0 = pl.program_id(1) * th

    acc = jnp.zeros((th * width, cmid), jnp.float32)
    for tap in range(9):
        dy, dx = divmod(tap, 3)
        xt = x_ref[0, pl.ds(row0 + dy, th), pl.ds(dx, width), :]
        acc = acc + jnp.dot(xt.reshape(th * width, cin), w1_ref[tap],
                            preferred_element_type=jnp.float32)

    # BN bias + ReLU epilogue (scale already folded into W1).
    hid = jnp.maximum(acc + b1_ref[...], 0.0)
    # TODO(synk): Dropout2d(0.1) is an inference-mode identity here.
    out = jnp.dot(hid.astype(w2_ref.dtype), w2_ref[...],
                  preferred_element_type=jnp.float32) + b2_ref[...]
    o_ref[...] = out.reshape(o_ref.shape).astype(o_ref.dtype)


def fcn_head_pallas(xp, w1, b1, w2, b2):
    """xp: (N, H+2, W+2, Cin_pad) bf16.  Returns (N, H*W, Nout_pad) bf16."""
    n, hp2, wp2, cin_p = xp.shape
    h, width = hp2 - 2, wp2 - 2
    cmid = w1.shape[-1]
    noutp = w2.shape[-1]

    th = _pick_row_tile(h, width, n)
    grid = (n, h // th)

    flops = 2 * n * h * width * cmid * (9 * cin_p + noutp)
    bytes_accessed = (xp.size * 2 + w1.size * 2 + w2.size * 2
                      + b1.size * 4 + b2.size * 4 + n * h * width * noutp * 2)

    return pl.pallas_call(
        functools.partial(_fcn_head_kernel, th=th, width=width),
        out_shape=jax.ShapeDtypeStruct((n, h * width, noutp), jnp.bfloat16),
        grid_spec=pltpu.PrefetchScalarGridSpec(
            num_scalar_prefetch=0,
            grid=grid,
            in_specs=[
                # Full padded slab of the current batch element (re-used across row blocks).
                pl.BlockSpec((1, hp2, wp2, cin_p), lambda b, r: (b, 0, 0, 0)),
                # Weights / biases: constant block index -> fetched once, stay resident.
                pl.BlockSpec((9, cin_p, cmid), lambda b, r: (0, 0, 0)),
                pl.BlockSpec((1, cmid), lambda b, r: (0, 0)),
                pl.BlockSpec((cmid, noutp), lambda b, r: (0, 0)),
                pl.BlockSpec((1, noutp), lambda b, r: (0, 0)),
            ],
            out_specs=pl.BlockSpec((1, th * width, noutp), lambda b, r: (b, r, 0)),
        ),
        compiler_params=pltpu.CompilerParams(
            dimension_semantics=("parallel", "parallel"),
        ),
        cost_estimate=pl.CostEstimate(flops=flops, transcendentals=0,
                                      bytes_accessed=bytes_accessed),
    )(xp, w1, b1, w2, b2)


# ----------------------------------------------------------------------------
# Parameter construction (deterministic, synthetic) + packing for the kernel.
# ----------------------------------------------------------------------------
def make_fcn_head_params(key, in_planes, out_planes):
    inter = in_planes // 4
    k1, k2, k3 = jax.random.split(key, 3)

    # ConvBnRelu: Conv2d(in_planes, inter, 3, 1, 1, bias=False), kaiming-like init.
    w_cbr = jax.random.normal(k1, (inter, in_planes, 3, 3), jnp.float32)
    w_cbr = w_cbr * (2.0 / (in_planes * 9)) ** 0.5

    # BatchNorm2d(inter) at PyTorch init, eval mode: gamma=1, beta=0, mean=0, var=1.
    gamma = jnp.ones((inter,), jnp.float32)
    beta = jnp.zeros((inter,), jnp.float32)
    mean = jnp.zeros((inter,), jnp.float32)
    var = jnp.ones((inter,), jnp.float32)
    bn_scale = gamma / jnp.sqrt(var + BN_EPS)
    bn_bias = beta - mean * bn_scale

    # conv1x1: Conv2d(inter, out_planes, 1) with bias (PyTorch default uniform init).
    bound = 1.0 / (inter ** 0.5)
    w_1x1 = jax.random.uniform(k2, (out_planes, inter, 1, 1), jnp.float32,
                               minval=-bound, maxval=bound)
    b_1x1 = jax.random.uniform(k3, (out_planes,), jnp.float32,
                               minval=-bound, maxval=bound)

    # ---- kernel packing: tap-major W1 with BN scale folded in, lane padding, bf16 ----
    cin_p = _round_up(in_planes, 128)
    cmid_p = _round_up(inter, 128)
    nout_p = _round_up(out_planes, 128)

    w1 = jnp.transpose(w_cbr, (2, 3, 1, 0)).reshape(9, in_planes, inter)  # (tap, in, out)
    w1 = w1 * bn_scale[None, None, :]                                      # fold BN scale
    w1 = jnp.pad(w1, ((0, 0), (0, cin_p - in_planes), (0, cmid_p - inter)))
    b1 = jnp.pad(bn_bias, (0, cmid_p - inter)).reshape(1, cmid_p)

    w2 = w_1x1.reshape(out_planes, inter).T
    w2 = jnp.pad(w2, ((0, cmid_p - inter), (0, nout_p - out_planes)))
    b2 = jnp.pad(b_1x1, (0, nout_p - out_planes)).reshape(1, nout_p)

    packed = {'w1': w1.astype(jnp.bfloat16), 'b1': b1,
              'w2': w2.astype(jnp.bfloat16), 'b2': b2}
    raw = {'w_cbr': w_cbr, 'bn_scale': bn_scale, 'bn_bias': bn_bias,
           'w_1x1': w_1x1, 'b_1x1': b_1x1}
    return packed, raw


# ----------------------------------------------------------------------------
# Forward pass (NCHW in / NCHW out, matching the PyTorch module) + f32 reference.
# ----------------------------------------------------------------------------
def fcn_head_forward(x_nchw, params, out_planes):
    n, cin, h, w = x_nchw.shape
    cin_p = params['w1'].shape[1]
    # NCHW -> NHWC (channels on lanes), bf16 for the MXU; spatial pad 1 (conv pad=1)
    # and channel pad up to a lane multiple.
    x = jnp.transpose(x_nchw, (0, 2, 3, 1)).astype(jnp.bfloat16)
    x = jnp.pad(x, ((0, 0), (1, 1), (1, 1), (0, cin_p - cin)))

    out = fcn_head_pallas(x, params['w1'], params['b1'], params['w2'], params['b2'])
    out = out[..., :out_planes].astype(jnp.float32)            # drop lane padding
    return jnp.transpose(out.reshape(n, h, w, out_planes), (0, 3, 1, 2))


def fcn_head_reference(x_nchw, raw):
    """Pure-JAX f32 reference of the PyTorch module (eval mode)."""
    y = jax.lax.conv_general_dilated(
        x_nchw, raw['w_cbr'], window_strides=(1, 1), padding=((1, 1), (1, 1)),
        dimension_numbers=('NCHW', 'OIHW', 'NCHW'))
    scale = raw['bn_scale'].reshape(1, -1, 1, 1)
    bias = raw['bn_bias'].reshape(1, -1, 1, 1)
    y = jnp.maximum(y * scale + bias, 0.0)
    y = jax.lax.conv_general_dilated(
        y, raw['w_1x1'], window_strides=(1, 1), padding=((0, 0), (0, 0)),
        dimension_numbers=('NCHW', 'OIHW', 'NCHW'))
    return y + raw['b_1x1'].reshape(1, -1, 1, 1)


# ----------------------------------------------------------------------------
if __name__ == "__main__":
    in_planes, out_planes = 512, 4          # small, lane-friendly _FCNHead config
    n, h, w = 2, 16, 16

    key = jax.random.PRNGKey(0)
    pkey, xkey = jax.random.split(key)
    params, raw = make_fcn_head_params(pkey, in_planes, out_planes)
    x = jax.random.normal(xkey, (n, in_planes, h, w), jnp.float32)   # NCHW like PyTorch

    fwd = jax.jit(fcn_head_forward, static_argnames=("out_planes",))
    y = jax.block_until_ready(fwd(x, params, out_planes=out_planes))

    assert y.shape == (n, out_planes, h, w), y.shape
    assert bool(jnp.all(jnp.isfinite(y)))

    # bf16 MXU inputs with f32 accumulation -> compare loosely against f32 reference.
    y_ref = fcn_head_reference(x, raw)
    max_err = float(jnp.max(jnp.abs(y - y_ref)))
    assert max_err < 1e-1, f"max abs error vs f32 reference: {max_err}"

    print("KERNEL_OK")
</pallas_src>

<mosaic_0001>
module attributes {stable_mosaic.version = 11 : i64} {
  func.func @_fcn_head_kernel(%arg0: i32, %arg1: i32, %arg2: memref<1x18x18x512xbf16, #tpu.memory_space<vmem>>, %arg3: memref<9x512x128xbf16, #tpu.memory_space<vmem>>, %arg4: memref<1x128xf32, #tpu.memory_space<vmem>>, %arg5: memref<128x128xbf16, #tpu.memory_space<vmem>>, %arg6: memref<1x128xf32, #tpu.memory_space<vmem>>, %arg7: memref<1x128x128xbf16, #tpu.memory_space<vmem>>) attributes {dimension_semantics = [#tpu.dimension_semantics<parallel>, #tpu.dimension_semantics<parallel>], iteration_bounds = array<i64: 2, 2>, scalar_prefetch = 0 : i64, scratch_operands = 0 : i64, tpu.core_type = #tpu.core_type<tc>, window_params = [{transform_indices = @transform_0, window_bounds = array<i64: 1, 18, 18, 512>}, {pipeline_mode = #tpu.pipeline_mode<synchronous>, transform_indices = @transform_1, window_bounds = array<i64: 9, 512, 128>}, {pipeline_mode = #tpu.pipeline_mode<synchronous>, transform_indices = @transform_2, window_bounds = array<i64: 1, 128>}, {pipeline_mode = #tpu.pipeline_mode<synchronous>, transform_indices = @transform_3, window_bounds = array<i64: 128, 128>}, {pipeline_mode = #tpu.pipeline_mode<synchronous>, transform_indices = @transform_4, window_bounds = array<i64: 1, 128>}, {transform_indices = @transform_5, window_bounds = array<i64: 1, 128, 128>}]} {
    %c8_i32 = arith.constant 8 : i32
    %0 = arith.muli %arg1, %c8_i32 : i32
    %cst = arith.constant 0.000000e+00 : f32
    %1 = vector.broadcast %cst : f32 to vector<128x128xf32>
    %c0_i32 = arith.constant 0 : i32
    %2 = arith.addi %0, %c0_i32 : i32
    %c0 = arith.constant 0 : index
    %3 = arith.index_cast %2 : i32 to index
    %c0_0 = arith.constant 0 : index
    %c0_1 = arith.constant 0 : index
    %4 = vector.load %arg2[%c0, %3, %c0_0, %c0_1] : memref<1x18x18x512xbf16, #tpu.memory_space<vmem>>, vector<1x8x16x512xbf16>
    %5 = vector.shape_cast %4 : vector<1x8x16x512xbf16> to vector<8x16x512xbf16>
    %6 = vector.shape_cast %5 : vector<8x16x512xbf16> to vector<128x512xbf16>
    %c0_2 = arith.constant 0 : index
    %c0_3 = arith.constant 0 : index
    %c0_4 = arith.constant 0 : index
    %7 = vector.load %arg3[%c0_2, %c0_3, %c0_4] : memref<9x512x128xbf16, #tpu.memory_space<vmem>>, vector<1x512x128xbf16>
    %8 = vector.shape_cast %7 : vector<1x512x128xbf16> to vector<512x128xbf16>
    %cst_5 = arith.constant dense<0.000000e+00> : vector<128x128xf32>
    %9 = tpu.matmul %6, %8, %cst_5 {dimension_numbers = #tpu.dot_dimension_numbers<[1], [0], [0], [1], [0, 0, 1, 1], [], []>} : vector<128x512xbf16>, vector<512x128xbf16>, vector<128x128xf32> -> vector<128x128xf32>
    %10 = arith.addf %1, %9 : vector<128x128xf32>
    %c0_i32_6 = arith.constant 0 : i32
    %11 = arith.addi %0, %c0_i32_6 : i32
    %c0_7 = arith.constant 0 : index
    %12 = arith.index_cast %11 : i32 to index
    %c1 = arith.constant 1 : index
    %c0_8 = arith.constant 0 : index
    %13 = vector.load %arg2[%c0_7, %12, %c1, %c0_8] : memref<1x18x18x512xbf16, #tpu.memory_space<vmem>>, vector<1x8x16x512xbf16>
    %14 = vector.shape_cast %13 : vector<1x8x16x512xbf16> to vector<8x16x512xbf16>
    %15 = vector.shape_cast %14 : vector<8x16x512xbf16> to vector<128x512xbf16>
    %c1_9 = arith.constant 1 : index
    %c0_10 = arith.constant 0 : index
    %c0_11 = arith.constant 0 : index
    %16 = vector.load %arg3[%c1_9, %c0_10, %c0_11] : memref<9x512x128xbf16, #tpu.memory_space<vmem>>, vector<1x512x128xbf16>
    %17 = vector.shape_cast %16 : vector<1x512x128xbf16> to vector<512x128xbf16>
    %cst_12 = arith.constant dense<0.000000e+00> : vector<128x128xf32>
    %18 = tpu.matmul %15, %17, %cst_12 {dimension_numbers = #tpu.dot_dimension_numbers<[1], [0], [0], [1], [0, 0, 1, 1], [], []>} : vector<128x512xbf16>, vector<512x128xbf16>, vector<128x128xf32> -> vector<128x128xf32>
    %19 = arith.addf %10, %18 : vector<128x128xf32>
    %c0_i32_13 = arith.constant 0 : i32
    %20 = arith.addi %0, %c0_i32_13 : i32
    %c0_14 = arith.constant 0 : index
    %21 = arith.index_cast %20 : i32 to index
    %c2 = arith.constant 2 : index
    %c0_15 = arith.constant 0 : index
    %22 = vector.load %arg2[%c0_14, %21, %c2, %c0_15] : memref<1x18x18x512xbf16, #tpu.memory_space<vmem>>, vector<1x8x16x512xbf16>
    %23 = vector.shape_cast %22 : vector<1x8x16x512xbf16> to vector<8x16x512xbf16>
    %24 = vector.shape_cast %23 : vector<8x16x512xbf16> to vector<128x512xbf16>
    %c2_16 = arith.constant 2 : index
    %c0_17 = arith.constant 0 : index
    %c0_18 = arith.constant 0 : index
    %25 = vector.load %arg3[%c2_16, %c0_17, %c0_18] : memref<9x512x128xbf16, #tpu.memory_space<vmem>>, vector<1x512x128xbf16>
    %26 = vector.shape_cast %25 : vector<1x512x128xbf16> to vector<512x128xbf16>
    %cst_19 = arith.constant dense<0.000000e+00> : vector<128x128xf32>
    %27 = tpu.matmul %24, %26, %cst_19 {dimension_numbers = #tpu.dot_dimension_numbers<[1], [0], [0], [1], [0, 0, 1, 1], [], []>} : vector<128x512xbf16>, vector<512x128xbf16>, vector<128x128xf32> -> vector<128x128xf32>
    %28 = arith.addf %19, %27 : vector<128x128xf32>
    %c1_i32 = arith.constant 1 : i32
    %29 = arith.addi %0, %c1_i32 : i32
    %c0_20 = arith.constant 0 : index
    %30 = arith.index_cast %29 : i32 to index
    %c0_21 = arith.constant 0 : index
    %c0_22 = arith.constant 0 : index
    %31 = vector.load %arg2[%c0_20, %30, %c0_21, %c0_22] : memref<1x18x18x512xbf16, #tpu.memory_space<vmem>>, vector<1x8x16x512xbf16>
    %32 = vector.shape_cast %31 : vector<1x8x16x512xbf16> to vector<8x16x512xbf16>
    %33 = vector.shape_cast %32 : vector<8x16x512xbf16> to vector<128x512xbf16>
    %c3 = arith.constant 3 : index
    %c0_23 = arith.constant 0 : index
    %c0_24 = arith.constant 0 : index
    %34 = vector.load %arg3[%c3, %c0_23, %c0_24] : memref<9x512x128xbf16, #tpu.memory_space<vmem>>, vector<1x512x128xbf16>
    %35 = vector.shape_cast %34 : vector<1x512x128xbf16> to vector<512x128xbf16>
    %cst_25 = arith.constant dense<0.000000e+00> : vector<128x128xf32>
    %36 = tpu.matmul %33, %35, %cst_25 {dimension_numbers = #tpu.dot_dimension_numbers<[1], [0], [0], [1], [0, 0, 1, 1], [], []>} : vector<128x512xbf16>, vector<512x128xbf16>, vector<128x128xf32> -> vector<128x128xf32>
    %37 = arith.addf %28, %36 : vector<128x128xf32>
    %c1_i32_26 = arith.constant 1 : i32
    %38 = arith.addi %0, %c1_i32_26 : i32
    %c0_27 = arith.constant 0 : index
    %39 = arith.index_cast %38 : i32 to index
    %c1_28 = arith.constant 1 : index
    %c0_29 = arith.constant 0 : index
    %40 = vector.load %arg2[%c0_27, %39, %c1_28, %c0_29] : memref<1x18x18x512xbf16, #tpu.memory_space<vmem>>, vector<1x8x16x512xbf16>
    %41 = vector.shape_cast %40 : vector<1x8x16x512xbf16> to vector<8x16x512xbf16>
    %42 = vector.shape_cast %41 : vector<8x16x512xbf16> to vector<128x512xbf16>
    %c4 = arith.constant 4 : index
    %c0_30 = arith.constant 0 : index
    %c0_31 = arith.constant 0 : index
    %43 = vector.load %arg3[%c4, %c0_30, %c0_31] : memref<9x512x128xbf16, #tpu.memory_space<vmem>>, vector<1x512x128xbf16>
    %44 = vector.shape_cast %43 : vector<1x512x128xbf16> to vector<512x128xbf16>
    %cst_32 = arith.constant dense<0.000000e+00> : vector<128x128xf32>
    %45 = tpu.matmul %42, %44, %cst_32 {dimension_numbers = #tpu.dot_dimension_numbers<[1], [0], [0], [1], [0, 0, 1, 1], [], []>} : vector<128x512xbf16>, vector<512x128xbf16>, vector<128x128xf32> -> vector<128x128xf32>
    %46 = arith.addf %37, %45 : vector<128x128xf32>
    %c1_i32_33 = arith.constant 1 : i32
    %47 = arith.addi %0, %c1_i32_33 : i32
    %c0_34 = arith.constant 0 : index
    %48 = arith.index_cast %47 : i32 to index
    %c2_35 = arith.constant 2 : index
    %c0_36 = arith.constant 0 : index
    %49 = vector.load %arg2[%c0_34, %48, %c2_35, %c0_36] : memref<1x18x18x512xbf16, #tpu.memory_space<vmem>>, vector<1x8x16x512xbf16>
    %50 = vector.shape_cast %49 : vector<1x8x16x512xbf16> to vector<8x16x512xbf16>
    %51 = vector.shape_cast %50 : vector<8x16x512xbf16> to vector<128x512xbf16>
    %c5 = arith.constant 5 : index
    %c0_37 = arith.constant 0 : index
    %c0_38 = arith.constant 0 : index
    %52 = vector.load %arg3[%c5, %c0_37, %c0_38] : memref<9x512x128xbf16, #tpu.memory_space<vmem>>, vector<1x512x128xbf16>
    %53 = vector.shape_cast %52 : vector<1x512x128xbf16> to vector<512x128xbf16>
    %cst_39 = arith.constant dense<0.000000e+00> : vector<128x128xf32>
    %54 = tpu.matmul %51, %53, %cst_39 {dimension_numbers = #tpu.dot_dimension_numbers<[1], [0], [0], [1], [0, 0, 1, 1], [], []>} : vector<128x512xbf16>, vector<512x128xbf16>, vector<128x128xf32> -> vector<128x128xf32>
    %55 = arith.addf %46, %54 : vector<128x128xf32>
    %c2_i32 = arith.constant 2 : i32
    %56 = arith.addi %0, %c2_i32 : i32
    %c0_40 = arith.constant 0 : index
    %57 = arith.index_cast %56 : i32 to index
    %c0_41 = arith.constant 0 : index
    %c0_42 = arith.constant 0 : index
    %58 = vector.load %arg2[%c0_40, %57, %c0_41, %c0_42] : memref<1x18x18x512xbf16, #tpu.memory_space<vmem>>, vector<1x8x16x512xbf16>
    %59 = vector.shape_cast %58 : vector<1x8x16x512xbf16> to vector<8x16x512xbf16>
    %60 = vector.shape_cast %59 : vector<8x16x512xbf16> to vector<128x512xbf16>
    %c6 = arith.constant 6 : index
    %c0_43 = arith.constant 0 : index
    %c0_44 = arith.constant 0 : index
    %61 = vector.load %arg3[%c6, %c0_43, %c0_44] : memref<9x512x128xbf16, #tpu.memory_space<vmem>>, vector<1x512x128xbf16>
    %62 = vector.shape_cast %61 : vector<1x512x128xbf16> to vector<512x128xbf16>
    %cst_45 = arith.constant dense<0.000000e+00> : vector<128x128xf32>
    %63 = tpu.matmul %60, %62, %cst_45 {dimension_numbers = #tpu.dot_dimension_numbers<[1], [0], [0], [1], [0, 0, 1, 1], [], []>} : vector<128x512xbf16>, vector<512x128xbf16>, vector<128x128xf32> -> vector<128x128xf32>
    %64 = arith.addf %55, %63 : vector<128x128xf32>
    %c2_i32_46 = arith.constant 2 : i32
    %65 = arith.addi %0, %c2_i32_46 : i32
    %c0_47 = arith.constant 0 : index
    %66 = arith.index_cast %65 : i32 to index
    %c1_48 = arith.constant 1 : index
    %c0_49 = arith.constant 0 : index
    %67 = vector.load %arg2[%c0_47, %66, %c1_48, %c0_49] : memref<1x18x18x512xbf16, #tpu.memory_space<vmem>>, vector<1x8x16x512xbf16>
    %68 = vector.shape_cast %67 : vector<1x8x16x512xbf16> to vector<8x16x512xbf16>
    %69 = vector.shape_cast %68 : vector<8x16x512xbf16> to vector<128x512xbf16>
    %c7 = arith.constant 7 : index
    %c0_50 = arith.constant 0 : index
    %c0_51 = arith.constant 0 : index
    %70 = vector.load %arg3[%c7, %c0_50, %c0_51] : memref<9x512x128xbf16, #tpu.memory_space<vmem>>, vector<1x512x128xbf16>
    %71 = vector.shape_cast %70 : vector<1x512x128xbf16> to vector<512x128xbf16>
    %cst_52 = arith.constant dense<0.000000e+00> : vector<128x128xf32>
    %72 = tpu.matmul %69, %71, %cst_52 {dimension_numbers = #tpu.dot_dimension_numbers<[1], [0], [0], [1], [0, 0, 1, 1], [], []>} : vector<128x512xbf16>, vector<512x128xbf16>, vector<128x128xf32> -> vector<128x128xf32>
    %73 = arith.addf %64, %72 : vector<128x128xf32>
    %c2_i32_53 = arith.constant 2 : i32
    %74 = arith.addi %0, %c2_i32_53 : i32
    %c0_54 = arith.constant 0 : index
    %75 = arith.index_cast %74 : i32 to index
    %c2_55 = arith.constant 2 : index
    %c0_56 = arith.constant 0 : index
    %76 = vector.load %arg2[%c0_54, %75, %c2_55, %c0_56] : memref<1x18x18x512xbf16, #tpu.memory_space<vmem>>, vector<1x8x16x512xbf16>
    %77 = vector.shape_cast %76 : vector<1x8x16x512xbf16> to vector<8x16x512xbf16>
    %78 = vector.shape_cast %77 : vector<8x16x512xbf16> to vector<128x512xbf16>
    %c8 = arith.constant 8 : index
    %c0_57 = arith.constant 0 : index
    %c0_58 = arith.constant 0 : index
    %79 = vector.load %arg3[%c8, %c0_57, %c0_58] : memref<9x512x128xbf16, #tpu.memory_space<vmem>>, vector<1x512x128xbf16>
    %80 = vector.shape_cast %79 : vector<1x512x128xbf16> to vector<512x128xbf16>
    %cst_59 = arith.constant dense<0.000000e+00> : vector<128x128xf32>
    %81 = tpu.matmul %78, %80, %cst_59 {dimension_numbers = #tpu.dot_dimension_numbers<[1], [0], [0], [1], [0, 0, 1, 1], [], []>} : vector<128x512xbf16>, vector<512x128xbf16>, vector<128x128xf32> -> vector<128x128xf32>
    %82 = arith.addf %73, %81 : vector<128x128xf32>
    %c0_60 = arith.constant 0 : index
    %c0_61 = arith.constant 0 : index
    %83 = vector.load %arg4[%c0_60, %c0_61] : memref<1x128xf32, #tpu.memory_space<vmem>>, vector<1x128xf32>
    %84 = vector.broadcast %83 : vector<1x128xf32> to vector<128x128xf32>
    %85 = arith.addf %82, %84 : vector<128x128xf32>
    %cst_62 = arith.constant 0.000000e+00 : f32
    %86 = vector.broadcast %cst_62 : f32 to vector<128x128xf32>
    %87 = arith.maximumf %85, %86 : vector<128x128xf32>
    %88 = arith.truncf %87 : vector<128x128xf32> to vector<128x128xbf16>
    %c0_63 = arith.constant 0 : index
    %c0_64 = arith.constant 0 : index
    %89 = vector.load %arg5[%c0_63, %c0_64] : memref<128x128xbf16, #tpu.memory_space<vmem>>, vector<128x128xbf16>
    %cst_65 = arith.constant dense<0.000000e+00> : vector<128x128xf32>
    %90 = tpu.matmul %88, %89, %cst_65 {dimension_numbers = #tpu.dot_dimension_numbers<[1], [0], [0], [1], [0, 0, 1, 1], [], []>} : vector<128x128xbf16>, vector<128x128xbf16>, vector<128x128xf32> -> vector<128x128xf32>
    %c0_66 = arith.constant 0 : index
    %c0_67 = arith.constant 0 : index
    %91 = vector.load %arg6[%c0_66, %c0_67] : memref<1x128xf32, #tpu.memory_space<vmem>>, vector<1x128xf32>
    %92 = vector.broadcast %91 : vector<1x128xf32> to vector<128x128xf32>
    %93 = arith.addf %90, %92 : vector<128x128xf32>
    %94 = vector.shape_cast %93 : vector<128x128xf32> to vector<1x128x128xf32>
    %95 = arith.truncf %94 : vector<1x128x128xf32> to vector<1x128x128xbf16>
    %c0_68 = arith.constant 0 : index
    %c0_69 = arith.constant 0 : index
    %c0_70 = arith.constant 0 : index
    %96 = vector.load %arg7[%c0_68, %c0_69, %c0_70] : memref<1x128x128xbf16, #tpu.memory_space<vmem>>, vector<1x128x128xbf16>
    tpu.vector_store %arg7[%c0_68, %c0_69, %c0_70], %95 {strides = array<i32>} : memref<1x128x128xbf16, #tpu.memory_space<vmem>>, vector<1x128x128xbf16>,
    return
  }
  func.func @transform_0(%arg0: i32, %arg1: i32) -> (i32, i32, i32, i32) {
    %c0_i32 = arith.constant 0 : i32
    %c0_i32_0 = arith.constant 0 : i32
    %c0_i32_1 = arith.constant 0 : i32
    %c0_i32_2 = arith.constant 0 : i32
    return %arg0, %c0_i32, %c0_i32_0, %c0_i32_1 : i32, i32, i32, i32
  }
  func.func @transform_1(%arg0: i32, %arg1: i32) -> (i32, i32, i32) {
    %c0_i32 = arith.constant 0 : i32
    %c0_i32_0 = arith.constant 0 : i32
    %c0_i32_1 = arith.constant 0 : i32
    %c0_i32_2 = arith.constant 0 : i32
    return %c0_i32, %c0_i32_0, %c0_i32_1 : i32, i32, i32
  }
  func.func @transform_2(%arg0: i32, %arg1: i32) -> (i32, i32) {
    %c0_i32 = arith.constant 0 : i32
    %c0_i32_0 = arith.constant 0 : i32
    %c0_i32_1 = arith.constant 0 : i32
    return %c0_i32, %c0_i32_0 : i32, i32
  }
  func.func @transform_3(%arg0: i32, %arg1: i32) -> (i32, i32) {
    %c0_i32 = arith.constant 0 : i32
    %c0_i32_0 = arith.constant 0 : i32
    %c0_i32_1 = arith.constant 0 : i32
    return %c0_i32, %c0_i32_0 : i32, i32
  }
  func.func @transform_4(%arg0: i32, %arg1: i32) -> (i32, i32) {
    %c0_i32 = arith.constant 0 : i32
    %c0_i32_0 = arith.constant 0 : i32
    %c0_i32_1 = arith.constant 0 : i32
    return %c0_i32, %c0_i32_0 : i32, i32
  }
  func.func @transform_5(%arg0: i32, %arg1: i32) -> (i32, i32, i32) {
    %c0_i32 = arith.constant 0 : i32
    %c0_i32_0 = arith.constant 0 : i32
    return %arg0, %arg1, %c0_i32 : i32, i32, i32
  }
}

</mosaic_0001>

<llo_original>
// kernel: fcn_head_forward.1
$region0: #{fcn_head_forward.1}
  #allocation0 [shape = 'u32[]', space=smem, size = 0x4, offset = 0x4, fixed_abs, tag = 'smem constant byte address 0x4 - core index']
  #allocation1 [shape = 'u32[72,128]{1,0:T(1,128)}', space=vmem, size = 0x9000, scoped, tag = 'internal scratch']
  %s0 = inlined_call_operand.vmem [shape: bf16[2,18,18,512], index: 0, kind: input, shape index: {}]
  %s1 = inlined_call_operand.vmem [shape: bf16[9,512,128], index: 1, kind: input, shape index: {}]
  %s2 = inlined_call_operand.vmem [shape: f32[1,128], index: 2, kind: input, shape index: {}]
  %s3 = inlined_call_operand.vmem [shape: bf16[128,128], index: 3, kind: input, shape index: {}]
  %s4 = inlined_call_operand.vmem [shape: f32[1,128], index: 4, kind: input, shape index: {}]
  %s5 = inlined_call_operand.vmem [shape: bf16[2,256,128], index: 5, kind: output, shape index: {}]
  %s6 = sld [smem:[#allocation0]]
  $region53: #{fcn_head_forward.1} parent=0
    _
  %s8 = ssub.s32 1, %s6
  %s9 = scalar_select 0, %s8, %s6
  loop: start=0, step=1, limit=6
  $region2: #{fcn_head_forward.1} parent=0 // loop_pre_header
    _
  $region3: #{fcn_head_forward.1} parent=0 // loop_header
    %s11 = sphi 0, %s15
    %p12 = scmp.ge.s32.totalorder %s11, 6
    %s18 = sphi 0, %s30
    %s19 = sphi 0, %s26
    %s20 = sphi 0, %s18
    %s21 = sphi 0, %s19
    %s22 = sphi 0, %s20
    %s23 = sphi 0, %s21
    %s33 = sphi 0, %s35
    %s36 = sphi 0, %s33
    %s37 = sphi 0, %s36
    %s53 = sphi 0, %s37
    %s57 = sphi 0, %s57
    %s59 = sphi 0, %s57
    %s60 = sphi 0, %s59
    %s74 = sphi 0, %s60
    %s78 = sphi 0, %s78
    %s80 = sphi 0, %s78
    %s81 = sphi 0, %s80
    %s95 = sphi 0, %s81
    %s99 = sphi 0, %s99
    %s101 = sphi 0, %s99
    %s102 = sphi 0, %s101
    %s116 = sphi 0, %s102
    %s120 = sphi 0, %s120
    %s122 = sphi 0, %s120
    %s123 = sphi 0, %s122
    %s137 = sphi 0, %s123
    %s145 = sphi 0, %s147
    %s148 = sphi 0, %s145
    %s149 = sphi 0, %s148
    %s165 = sphi 0, %s149
  $region4: #{fcn_head_forward.1} parent=0 // loop_header_branch
    %14 = sbr.rel (%p12) target = $region8
  $region5: #{fcn_head_forward.1} parent=0 // loop_body
    %s16 = ssub.s32 %s11, 1
    %s17 = ssub.s32 %s11, 2
    %s24 = sadd.s32 1, %s19
    %p25 = scmp.ge.s32.totalorder %s24, 2
    %s26 = scalar_select %p25, 0, %s24
    %s27 = sadd.s32 1, %s18
    %s28 = scalar_select %p25, %s27, %s18
    %p29 = scmp.ge.s32.totalorder %s28, 2
    %s30 = scalar_select %p29, 0, %s28
    %s31 = ssub.s32 %s18, %s30
    %p32 = scmp.eq.s32.totalorder %s31, 0
    %s34 = sadd.s32 %s33, 1
    %s35 = scalar_select %p32, %s33, %s34
    %p38 = pneg %p32
    %p39 = scmp.eq.s32.totalorder %s11, 3
    %p40 = por %p38, %p39
    %p41 = scmp.ne.s32.totalorder %s33, %s36
    %p42 = scmp.eq.s32.totalorder %s11, 0
    %p43 = por %p41, %p42
    %p44 = scmp.ne.s32.totalorder %s33, %s36
    %p45 = scmp.eq.s32.totalorder %s16, 3
    %p46 = por %p44, %p45
    %p47 = scmp.ne.s32.totalorder %s36, %s37
    %p48 = scmp.eq.s32.totalorder %s16, 0
    %p49 = por %p47, %p48
    %p50 = scmp.ne.s32.totalorder %s36, %s37
    %p51 = scmp.eq.s32.totalorder %s17, 3
    %p52 = por %p50, %p51
    %p54 = scmp.ne.s32.totalorder %s37, %s53
    %p55 = scmp.eq.s32.totalorder %s17, 0
    %p56 = por %p54, %p55
    %s58 = sadd.s32 %s57, 1
    %p61 = scmp.eq.s32.totalorder %s11, 3
    %p62 = scmp.ne.s32.totalorder %s57, %s59
    %p63 = scmp.eq.s32.totalorder %s11, 0
    %p64 = por %p62, %p63
    %p65 = scmp.ne.s32.totalorder %s57, %s59
    %p66 = scmp.eq.s32.totalorder %s16, 3
    %p67 = por %p65, %p66
    %p68 = scmp.ne.s32.totalorder %s59, %s60
    %p69 = scmp.eq.s32.totalorder %s16, 0
    %p70 = por %p68, %p69
    %p71 = scmp.ne.s32.totalorder %s59, %s60
    %p72 = scmp.eq.s32.totalorder %s17, 3
    %p73 = por %p71, %p72
    %p75 = scmp.ne.s32.totalorder %s60, %s74
    %p76 = scmp.eq.s32.totalorder %s17, 0
    %p77 = por %p75, %p76
    %s79 = sadd.s32 %s78, 1
    %p82 = scmp.eq.s32.totalorder %s11, 3
    %p83 = scmp.ne.s32.totalorder %s78, %s80
    %p84 = scmp.eq.s32.totalorder %s11, 0
    %p85 = por %p83, %p84
    %p86 = scmp.ne.s32.totalorder %s78, %s80
    %p87 = scmp.eq.s32.totalorder %s16, 3
    %p88 = por %p86, %p87
    %p89 = scmp.ne.s32.totalorder %s80, %s81
    %p90 = scmp.eq.s32.totalorder %s16, 0
    %p91 = por %p89, %p90
    %p92 = scmp.ne.s32.totalorder %s80, %s81
    %p93 = scmp.eq.s32.totalorder %s17, 3
    %p94 = por %p92, %p93
    %p96 = scmp.ne.s32.totalorder %s81, %s95
    %p97 = scmp.eq.s32.totalorder %s17, 0
    %p98 = por %p96, %p97
    %s100 = sadd.s32 %s99, 1
    %p103 = scmp.eq.s32.totalorder %s11, 3
    %p104 = scmp.ne.s32.totalorder %s99, %s101
    %p105 = scmp.eq.s32.totalorder %s11, 0
    %p106 = por %p104, %p105
    %p107 = scmp.ne.s32.totalorder %s99, %s101
    %p108 = scmp.eq.s32.totalorder %s16, 3
    %p109 = por %p107, %p108
    %p110 = scmp.ne.s32.totalorder %s101, %s102
    %p111 = scmp.eq.s32.totalorder %s16, 0
    %p112 = por %p110, %p111
    %p113 = scmp.ne.s32.totalorder %s101, %s102
    %p114 = scmp.eq.s32.totalorder %s17, 3
    %p115 = por %p113, %p114
    %p117 = scmp.ne.s32.totalorder %s102, %s116
    %p118 = scmp.eq.s32.totalorder %s17, 0
    %p119 = por %p117, %p118
    %s121 = sadd.s32 %s120, 1
    %p124 = scmp.eq.s32.totalorder %s11, 3
    %p125 = scmp.ne.s32.totalorder %s120, %s122
    %p126 = scmp.eq.s32.totalorder %s11, 0
    %p127 = por %p125, %p126
    %p128 = scmp.ne.s32.totalorder %s120, %s122
    %p129 = scmp.eq.s32.totalorder %s16, 3
    %p130 = por %p128, %p129
    %p131 = scmp.ne.s32.totalorder %s122, %s123
    %p132 = scmp.eq.s32.totalorder %s16, 0
    %p133 = por %p131, %p132
    %p134 = scmp.ne.s32.totalorder %s122, %s123
    %p135 = scmp.eq.s32.totalorder %s17, 3
    %p136 = por %p134, %p135
    %p138 = scmp.ne.s32.totalorder %s123, %s137
    %p139 = scmp.eq.s32.totalorder %s17, 0
    %p140 = por %p138, %p139
    %s141 = ssub.s32 %s18, %s30
    %s142 = ssub.s32 %s19, %s26
    %s143 = sor.u32 %s141, %s142
    %p144 = scmp.eq.s32.totalorder %s143, 0
    %s146 = sadd.s32 %s145, 1
    %s147 = scalar_select %p144, %s145, %s146
    %p150 = pneg %p144
    %p151 = scmp.eq.s32.totalorder %s11, 3
    %p152 = por %p150, %p151
    %p153 = scmp.ne.s32.totalorder %s145, %s148
    %p154 = scmp.eq.s32.totalorder %s11, 0
    %p155 = por %p153, %p154
    %p156 = scmp.ne.s32.totalorder %s145, %s148
    %p157 = scmp.eq.s32.totalorder %s16, 3
    %p158 = por %p156, %p157
    %p159 = scmp.ne.s32.totalorder %s148, %s149
    %p160 = scmp.eq.s32.totalorder %s16, 0
    %p161 = por %p159, %p160
    %p162 = scmp.ne.s32.totalorder %s148, %s149
    %p163 = scmp.eq.s32.totalorder %s17, 3
    %p164 = por %p162, %p163
    %p166 = scmp.ne.s32.totalorder %s149, %s165
    %p167 = scmp.eq.s32.totalorder %s17, 0
    %p168 = por %p166, %p167
    %p169 = scmp.le.s32.totalorder 1, %s11
    %p170 = scmp.lt.s32.totalorder %s11, 5
    %p171 = pnand %p169, %p170
    %p172 = pneg %p171
    // Predicated region
    $region9: #{fcn_head_forward.1} parent=5 // pred_check
      _
    $region10: #{fcn_head_forward.1} parent=5 // pred_check_branch
      %174 = sbr.rel (%p171) target = $region12
    $region11: #{fcn_head_forward.1} parent=5 // pred_region
      %s175 = ssub.s32 %s11, 1
      // Predicated region
      $region13: #{fcn_head_forward.1} parent=11 // pred_check
        %p176 = pneg %p70
      $region14: #{fcn_head_forward.1} parent=11 // pred_check_branch
        %178 = sbr.rel (%p176) target = $region16
      $region15: #{fcn_head_forward.1} parent=11 // pred_region
        _
      $region16: #{fcn_head_forward.1} parent=11 // pred_fallthru
        _
      // Predicated region
      $region17: #{fcn_head_forward.1} parent=11 // pred_check
        %p179 = pneg %p91
      $region18: #{fcn_head_forward.1} parent=11 // pred_check_branch
        %181 = sbr.rel (%p179) target = $region20
      $region19: #{fcn_head_forward.1} parent=11 // pred_region
        _
      $region20: #{fcn_head_forward.1} parent=11 // pred_fallthru
        _
      // Predicated region
      $region21: #{fcn_head_forward.1} parent=11 // pred_check
        %p182 = pneg %p112
      $region22: #{fcn_head_forward.1} parent=11 // pred_check_branch
        %184 = sbr.rel (%p182) target = $region24
      $region23: #{fcn_head_forward.1} parent=11 // pred_region
        _
      $region24: #{fcn_head_forward.1} parent=11 // pred_fallthru
        _
      // Predicated region
      $region25: #{fcn_head_forward.1} parent=11 // pred_check
        %p185 = pneg %p133
      $region26: #{fcn_head_forward.1} parent=11 // pred_check_branch
        %187 = sbr.rel (%p185) target = $region28
      $region27: #{fcn_head_forward.1} parent=11 // pred_region
        _
      $region28: #{fcn_head_forward.1} parent=11 // pred_fallthru
        _
    $region12: #{fcn_head_forward.1} parent=5 // pred_fallthru
      _
    %p188 = scmp.lt.s32.totalorder %s11, 4
    // Predicated region
    $region29: #{fcn_head_forward.1} parent=5 // pred_check
      %p189 = pneg %p188
    $region30: #{fcn_head_forward.1} parent=5 // pred_check_branch
      %191 = sbr.rel (%p189) target = $region32
    $region31: #{fcn_head_forward.1} parent=5 // pred_region
      // Predicated region
      $region33: #{fcn_head_forward.1} parent=31 // pred_check
        %p192 = pneg %p43
      $region34: #{fcn_head_forward.1} parent=31 // pred_check_branch
        %194 = sbr.rel (%p192) target = $region36
      $region35: #{fcn_head_forward.1} parent=31 // pred_region
        %p195 = scmp.lt.s32.totalorder %s18, 1
        %s196 = scalar_select %p195, %s18, 1
        %s197 = smul.addr %s196, 216
        %s198 = smul.addr %s197, 4
        %s199 = scalar_lea.vmem %s0, %s198
      $region36: #{fcn_head_forward.1} parent=31 // pred_fallthru
        _
    $region32: #{fcn_head_forward.1} parent=5 // pred_fallthru
      _
    %p200 = scmp.le.s32.totalorder 1, %s11
    %p201 = scmp.lt.s32.totalorder %s11, 5
    %p202 = pnand %p200, %p201
    %p203 = pneg %p202
    // Predicated region
    $region37: #{fcn_head_forward.1} parent=5 // pred_check
      _
    $region38: #{fcn_head_forward.1} parent=5 // pred_check_branch
      %205 = sbr.rel (%p202) target = $region40
    $region39: #{fcn_head_forward.1} parent=5 // pred_region
      %s206 = ssub.s32 %s11, 1
      %p207 = scmp.lt.s32.totalorder %s20, 1
      %s208 = scalar_select %p207, %s20, 1
      %s209 = smul.addr %s208, 216
      %s210 = smul.addr %s209, 4
      %s211 = scalar_lea.vmem %s0, %s210
      %p212 = pneg %p49
      %p213 = pneg %p46
      %p214 = pneg %p70
      %p215 = pneg %p67
      %p216 = pneg %p91
      %p217 = pneg %p88
      %p218 = pneg %p112
      %p219 = pneg %p109
      %p220 = pneg %p133
      %p221 = pneg %p130
      %p222 = pneg %p161
      %p223 = pneg %p158
      %s224 = smul.u32 16, %s21
      %p225 = scmp.lt.s32.totalorder %s20, 1
      %s226 = scalar_select %p225, %s20, 1
      %p227 = scmp.lt.s32.totalorder %s224, 31
      %s228 = scalar_select %p227, %s224, 31
      %s229 = smul.addr %s226, 32
      %s230 = sadd.s32 %s228, %s229
      %s231 = smul.addr %s230, 4
      %s232 = scalar_lea.vmem %s5, %s231
      %p233 = scmp.lt.s32.totalorder %s20, 1
      %s234 = scalar_select %p233, %s20, 1
      %s235 = smul.addr %s234, 216
      %s236 = smul.addr %s235, 4
      %s237 = scalar_lea.vmem %s0, %s236
      %s238 = smul.u32 16, %s21
      %p239 = scmp.lt.s32.totalorder %s20, 1
      %s240 = scalar_select %p239, %s20, 1
      %p241 = scmp.lt.s32.totalorder %s238, 31
      %s242 = scalar_select %p241, %s238, 31
      %s243 = smul.addr %s240, 32
      %s244 = sadd.s32 %s242, %s243
      %s245 = smul.addr %s244, 4
      %s246 = scalar_lea.vmem %s5, %s245
      %s247 = smul.u32 16, %s21
      %s248 = smul.u32 %s21, 8
      %s249 = smul.u32 %s248, 12
      %s250 = smul.addr %s249, 4
      %s251 = scalar_lea.vmem %s237, %s250
      %v252 = vld [vmem:[%s251] sm:$0xff]
      %v253 = vld [vmem:[%s251 + $0x8] sm:$0xff]
      %v254 = vld [vmem:[%s251 + $0x10] sm:$0xff]
      %v255 = vld [vmem:[%s251 + $0x18] sm:$0xff]
      %v256 = vld [vmem:[%s251 + $0x30] sm:$0xff]
      %v257 = vld [vmem:[%s251 + $0x38] sm:$0xff]
      %v258 = vld [vmem:[%s251 + $0x40] sm:$0xff]
      %v259 = vld [vmem:[%s251 + $0x48] sm:$0xff]
      %v260 = vld [vmem:[%s251 + $0x60] sm:$0xff]
      %v261 = vld [vmem:[%s251 + $0x68] sm:$0xff]
      %v262 = vld [vmem:[%s251 + $0x70] sm:$0xff]
      %v263 = vld [vmem:[%s251 + $0x78] sm:$0xff]
      %v264 = vld [vmem:[%s251 + $0x90] sm:$0xff]
      %v265 = vld [vmem:[%s251 + $0x98] sm:$0xff]
      %v266 = vld [vmem:[%s251 + $0xa0] sm:$0xff]
      %v267 = vld [vmem:[%s251 + $0xa8] sm:$0xff]
      %v268 = vld [vmem:[%s251 + $0xc0] sm:$0xff]
      %v269 = vld [vmem:[%s251 + $0xc8] sm:$0xff]
      %v270 = vld [vmem:[%s251 + $0xd0] sm:$0xff]
      %v271 = vld [vmem:[%s251 + $0xd8] sm:$0xff]
      %v272 = vld [vmem:[%s251 + $0xf0] sm:$0xff]
      %v273 = vld [vmem:[%s251 + $0xf8] sm:$0xff]
      %v274 = vld [vmem:[%s251 + $0x100] sm:$0xff]
      %v275 = vld [vmem:[%s251 + $0x108] sm:$0xff]
      %v276 = vld [vmem:[%s251 + $0x120] sm:$0xff]
      %v277 = vld [vmem:[%s251 + $0x128] sm:$0xff]
      %v278 = vld [vmem:[%s251 + $0x130] sm:$0xff]
      %v279 = vld [vmem:[%s251 + $0x138] sm:$0xff]
      %v280 = vld [vmem:[%s251 + $0x150] sm:$0xff]
      %v281 = vld [vmem:[%s251 + $0x158] sm:$0xff]
      %v282 = vld [vmem:[%s251 + $0x160] sm:$0xff]
      %v283 = vld [vmem:[%s251 + $0x168] sm:$0xff]
      %v284 = vld [vmem:[%s1] sm:$0xf]
      %v285 = vld [vmem:[%s1 + $0x4] sm:$0xf]
      %v286 = vld [vmem:[%s1 + $0x8] sm:$0xf]
      %v287 = vld [vmem:[%s1 + $0xc] sm:$0xf]
      %v288 = vld [vmem:[%s1 + $0x10] sm:$0xf]
      %v289 = vld [vmem:[%s1 + $0x14] sm:$0xf]
      %v290 = vld [vmem:[%s1 + $0x18] sm:$0xf]
      %v291 = vld [vmem:[%s1 + $0x1c] sm:$0xf]
      %v292 = vld [vmem:[%s1 + $0x20] sm:$0xf]
      %v293 = vld [vmem:[%s1 + $0x24] sm:$0xf]
      %v294 = vld [vmem:[%s1 + $0x28] sm:$0xf]
      %v295 = vld [vmem:[%s1 + $0x2c] sm:$0xf]
      %v296 = vld [vmem:[%s1 + $0x30] sm:$0xf]
      %v297 = vld [vmem:[%s1 + $0x34] sm:$0xf]
      %v298 = vld [vmem:[%s1 + $0x38] sm:$0xf]
      %v299 = vld [vmem:[%s1 + $0x3c] sm:$0xf]
      %v300 = vld [vmem:[%s1 + $0x40] sm:$0xf]
      %v301 = vld [vmem:[%s1 + $0x44] sm:$0xf]
      %v302 = vld [vmem:[%s1 + $0x48] sm:$0xf]
      %v303 = vld [vmem:[%s1 + $0x4c] sm:$0xf]
      %v304 = vld [vmem:[%s1 + $0x50] sm:$0xf]
      %v305 = vld [vmem:[%s1 + $0x54] sm:$0xf]
      %v306 = vld [vmem:[%s1 + $0x58] sm:$0xf]
      %v307 = vld [vmem:[%s1 + $0x5c] sm:$0xf]
      %v308 = vld [vmem:[%s1 + $0x60] sm:$0xf]
      %v309 = vld [vmem:[%s1 + $0x64] sm:$0xf]
      %v310 = vld [vmem:[%s1 + $0x68] sm:$0xf]
      %v311 = vld [vmem:[%s1 + $0x6c] sm:$0xf]
      %v312 = vld [vmem:[%s1 + $0x70] sm:$0xf]
      %v313 = vld [vmem:[%s1 + $0x74] sm:$0xf]
      %v314 = vld [vmem:[%s1 + $0x78] sm:$0xf]
      %v315 = vld [vmem:[%s1 + $0x7c] sm:$0xf]
      %v316 = vld [vmem:[%s1 + $0x80] sm:$0xf]
      %v317 = vld [vmem:[%s1 + $0x84] sm:$0xf]
      %v318 = vld [vmem:[%s1 + $0x88] sm:$0xf]
      %v319 = vld [vmem:[%s1 + $0x8c] sm:$0xf]
      %v320 = vld [vmem:[%s1 + $0x90] sm:$0xf]
      %v321 = vld [vmem:[%s1 + $0x94] sm:$0xf]
      %v322 = vld [vmem:[%s1 + $0x98] sm:$0xf]
      %v323 = vld [vmem:[%s1 + $0x9c] sm:$0xf]
      %v324 = vld [vmem:[%s1 + $0xa0] sm:$0xf]
      %v325 = vld [vmem:[%s1 + $0xa4] sm:$0xf]
      %v326 = vld [vmem:[%s1 + $0xa8] sm:$0xf]
      %v327 = vld [vmem:[%s1 + $0xac] sm:$0xf]
      %v328 = vld [vmem:[%s1 + $0xb0] sm:$0xf]
      %v329 = vld [vmem:[%s1 + $0xb4] sm:$0xf]
      %v330 = vld [vmem:[%s1 + $0xb8] sm:$0xf]
      %v331 = vld [vmem:[%s1 + $0xbc] sm:$0xf]
      %v332 = vld [vmem:[%s1 + $0xc0] sm:$0xf]
      %v333 = vld [vmem:[%s1 + $0xc4] sm:$0xf]
      %v334 = vld [vmem:[%s1 + $0xc8] sm:$0xf]
      %v335 = vld [vmem:[%s1 + $0xcc] sm:$0xf]
      %v336 = vld [vmem:[%s1 + $0xd0] sm:$0xf]
      %v337 = vld [vmem:[%s1 + $0xd4] sm:$0xf]
      %v338 = vld [vmem:[%s1 + $0xd8] sm:$0xf]
      %v339 = vld [vmem:[%s1 + $0xdc] sm:$0xf]
      %v340 = vld [vmem:[%s1 + $0xe0] sm:$0xf]
      %v341 = vld [vmem:[%s1 + $0xe4] sm:$0xf]
      %v342 = vld [vmem:[%s1 + $0xe8] sm:$0xf]
      %v343 = vld [vmem:[%s1 + $0xec] sm:$0xf]
      %v344 = vld [vmem:[%s1 + $0xf0] sm:$0xf]
      %v345 = vld [vmem:[%s1 + $0xf4] sm:$0xf]
      %v346 = vld [vmem:[%s1 + $0xf8] sm:$0xf]
      %v347 = vld [vmem:[%s1 + $0xfc] sm:$0xf]
      %v348 = vld [vmem:[%s251 + $0x20] sm:$0x11]
      %v349 = vld [vmem:[%s251 + $0x28] sm:$0x11]
      %v350 = vld [vmem:[%s251 + $0x50] sm:$0x11]
      %v351 = vld [vmem:[%s251 + $0x58] sm:$0x11]
      %v352 = vld [vmem:[%s251 + $0x80] sm:$0x11]
      %v353 = vld [vmem:[%s251 + $0x88] sm:$0x11]
      %v354 = vld [vmem:[%s251 + $0xb0] sm:$0x11]
      %v355 = vld [vmem:[%s251 + $0xb8] sm:$0x11]
      %v356 = vld [vmem:[%s251 + $0xe0] sm:$0x11]
      %v357 = vld [vmem:[%s251 + $0xe8] sm:$0x11]
      %v358 = vld [vmem:[%s251 + $0x110] sm:$0x11]
      %v359 = vld [vmem:[%s251 + $0x118] sm:$0x11]
      %v360 = vld [vmem:[%s251 + $0x140] sm:$0x11]
      %v361 = vld [vmem:[%s251 + $0x148] sm:$0x11]
      %v362 = vld [vmem:[%s251 + $0x170] sm:$0x11]
      %v363 = vld [vmem:[%s251 + $0x178] sm:$0x11]
      %vm364 = vsmask.f32 3328
      %vm365 = vsmask.f32 7440
      %vm366 = vmor %vm364, %vm365
      %v368 = vshrl.u32 %v252, 16
      %v370 = vrot.slane %v368, 4
      %v371 = vshll.u32 %v252, 16
      %v373 = vrot.slane %v371, 5
      %v374 = vor.u32 %v370, %v373
      %v375 = vrot.slane %v374, 4
      %v377 = vshll.u32 %v254, 16
      %v379 = vrot.slane %v377, 5
      %v380 = vsel %vm366, %v375, %v379
      %v382 = vshrl.u32 %v253, 16
      %v384 = vrot.slane %v382, 4
      %v385 = vshll.u32 %v253, 16
      %v387 = vrot.slane %v385, 5
      %v388 = vor.u32 %v384, %v387
      %v389 = vrot.slane %v388, 4
      %v391 = vshll.u32 %v255, 16
      %v393 = vrot.slane %v391, 5
      %v394 = vsel %vm366, %v389, %v393
      %v395 = vshrl.u32 %v254, 16
      %v397 = vrot.slane %v395, 4
      %v398 = vor.u32 %v397, %v379
      %v399 = vrot.slane %v398, 4
      %v401 = vshll.u32 %v348, 16
      %v403 = vrot.slane %v401, 5
      %v404 = vsel %vm366, %v399, %v403
      %v405 = vshrl.u32 %v255, 16
      %v407 = vrot.slane %v405, 4
      %v408 = vor.u32 %v407, %v393
      %v409 = vrot.slane %v408, 4
      %v411 = vshll.u32 %v349, 16
      %v413 = vrot.slane %v411, 5
      %v414 = vsel %vm366, %v409, %v413
      %v416 = vshrl.u32 %v256, 16
      %v418 = vrot.slane %v416, 4
      %v419 = vshll.u32 %v256, 16
      %v421 = vrot.slane %v419, 5
      %v422 = vor.u32 %v418, %v421
      %v423 = vrot.slane %v422, 4
      %v425 = vshll.u32 %v258, 16
      %v427 = vrot.slane %v425, 5
      %v428 = vsel %vm366, %v423, %v427
      %v430 = vshrl.u32 %v257, 16
      %v432 = vrot.slane %v430, 4
      %v433 = vshll.u32 %v257, 16
      %v435 = vrot.slane %v433, 5
      %v436 = vor.u32 %v432, %v435
      %v437 = vrot.slane %v436, 4
      %v439 = vshll.u32 %v259, 16
      %v441 = vrot.slane %v439, 5
      %v442 = vsel %vm366, %v437, %v441
      %v443 = vshrl.u32 %v258, 16
      %v445 = vrot.slane %v443, 4
      %v446 = vor.u32 %v445, %v427
      %v447 = vrot.slane %v446, 4
      %v449 = vshll.u32 %v350, 16
      %v451 = vrot.slane %v449, 5
      %v452 = vsel %vm366, %v447, %v451
      %v453 = vshrl.u32 %v259, 16
      %v455 = vrot.slane %v453, 4
      %v456 = vor.u32 %v455, %v441
      %v457 = vrot.slane %v456, 4
      %v459 = vshll.u32 %v351, 16
      %v461 = vrot.slane %v459, 5
      %v462 = vsel %vm366, %v457, %v461
      %v464 = vshrl.u32 %v260, 16
      %v466 = vrot.slane %v464, 4
      %v467 = vshll.u32 %v260, 16
      %v469 = vrot.slane %v467, 5
      %v470 = vor.u32 %v466, %v469
      %v471 = vrot.slane %v470, 4
      %v473 = vshll.u32 %v262, 16
      %v475 = vrot.slane %v473, 5
      %v476 = vsel %vm366, %v471, %v475
      %v478 = vshrl.u32 %v261, 16
      %v480 = vrot.slane %v478, 4
      %v481 = vshll.u32 %v261, 16
      %v483 = vrot.slane %v481, 5
      %v484 = vor.u32 %v480, %v483
      %v485 = vrot.slane %v484, 4
      %v487 = vshll.u32 %v263, 16
      %v489 = vrot.slane %v487, 5
      %v490 = vsel %vm366, %v485, %v489
      %v491 = vshrl.u32 %v262, 16
      %v493 = vrot.slane %v491, 4
      %v494 = vor.u32 %v493, %v475
      %v495 = vrot.slane %v494, 4
      %v497 = vshll.u32 %v352, 16
      %v499 = vrot.slane %v497, 5
      %v500 = vsel %vm366, %v495, %v499
      %v501 = vshrl.u32 %v263, 16
      %v503 = vrot.slane %v501, 4
      %v504 = vor.u32 %v503, %v489
      %v505 = vrot.slane %v504, 4
      %v507 = vshll.u32 %v353, 16
      %v509 = vrot.slane %v507, 5
      %v510 = vsel %vm366, %v505, %v509
      %v512 = vshrl.u32 %v264, 16
      %v514 = vrot.slane %v512, 4
      %v515 = vshll.u32 %v264, 16
      %v517 = vrot.slane %v515, 5
      %v518 = vor.u32 %v514, %v517
      %v519 = vrot.slane %v518, 4
      %v521 = vshll.u32 %v266, 16
      %v523 = vrot.slane %v521, 5
      %v524 = vsel %vm366, %v519, %v523
      %v526 = vshrl.u32 %v265, 16
      %v528 = vrot.slane %v526, 4
      %v529 = vshll.u32 %v265, 16
      %v531 = vrot.slane %v529, 5
      %v532 = vor.u32 %v528, %v531
      %v533 = vrot.slane %v532, 4
      %v535 = vshll.u32 %v267, 16
      %v537 = vrot.slane %v535, 5
      %v538 = vsel %vm366, %v533, %v537
      %v539 = vshrl.u32 %v266, 16
      %v541 = vrot.slane %v539, 4
      %v542 = vor.u32 %v541, %v523
      %v543 = vrot.slane %v542, 4
      %v545 = vshll.u32 %v354, 16
      %v547 = vrot.slane %v545, 5
      %v548 = vsel %vm366, %v543, %v547
      %v549 = vshrl.u32 %v267, 16
      %v551 = vrot.slane %v549, 4
      %v552 = vor.u32 %v551, %v537
      %v553 = vrot.slane %v552, 4
      %v555 = vshll.u32 %v355, 16
      %v557 = vrot.slane %v555, 5
      %v558 = vsel %vm366, %v553, %v557
      %v560 = vshrl.u32 %v268, 16
      %v562 = vrot.slane %v560, 4
      %v563 = vshll.u32 %v268, 16
      %v565 = vrot.slane %v563, 5
      %v566 = vor.u32 %v562, %v565
      %v567 = vrot.slane %v566, 4
      %v569 = vshll.u32 %v270, 16
      %v571 = vrot.slane %v569, 5
      %v572 = vsel %vm366, %v567, %v571
      %v574 = vshrl.u32 %v269, 16
      %v576 = vrot.slane %v574, 4
      %v577 = vshll.u32 %v269, 16
      %v579 = vrot.slane %v577, 5
      %v580 = vor.u32 %v576, %v579
      %v581 = vrot.slane %v580, 4
      %v583 = vshll.u32 %v271, 16
      %v585 = vrot.slane %v583, 5
      %v586 = vsel %vm366, %v581, %v585
      %v587 = vshrl.u32 %v270, 16
      %v589 = vrot.slane %v587, 4
      %v590 = vor.u32 %v589, %v571
      %v591 = vrot.slane %v590, 4
      %v593 = vshll.u32 %v356, 16
      %v595 = vrot.slane %v593, 5
      %v596 = vsel %vm366, %v591, %v595
      %v597 = vshrl.u32 %v271, 16
      %v599 = vrot.slane %v597, 4
      %v600 = vor.u32 %v599, %v585
      %v601 = vrot.slane %v600, 4
      %v603 = vshll.u32 %v357, 16
      %v605 = vrot.slane %v603, 5
      %v606 = vsel %vm366, %v601, %v605
      %v608 = vshrl.u32 %v272, 16
      %v610 = vrot.slane %v608, 4
      %v611 = vshll.u32 %v272, 16
      %v613 = vrot.slane %v611, 5
      %v614 = vor.u32 %v610, %v613
      %v615 = vrot.slane %v614, 4
      %v617 = vshll.u32 %v274, 16
      %v619 = vrot.slane %v617, 5
      %v620 = vsel %vm366, %v615, %v619
      %v622 = vshrl.u32 %v273, 16
      %v624 = vrot.slane %v622, 4
      %v625 = vshll.u32 %v273, 16
      %v627 = vrot.slane %v625, 5
      %v628 = vor.u32 %v624, %v627
      %v629 = vrot.slane %v628, 4
      %v631 = vshll.u32 %v275, 16
      %v633 = vrot.slane %v631, 5
      %v634 = vsel %vm366, %v629, %v633
      %v635 = vshrl.u32 %v274, 16
      %v637 = vrot.slane %v635, 4
      %v638 = vor.u32 %v637, %v619
      %v639 = vrot.slane %v638, 4
      %v641 = vshll.u32 %v358, 16
      %v643 = vrot.slane %v641, 5
      %v644 = vsel %vm366, %v639, %v643
      %v645 = vshrl.u32 %v275, 16
      %v647 = vrot.slane %v645, 4
      %v648 = vor.u32 %v647, %v633
      %v649 = vrot.slane %v648, 4
      %v651 = vshll.u32 %v359, 16
      %v653 = vrot.slane %v651, 5
      %v654 = vsel %vm366, %v649, %v653
      %v656 = vshrl.u32 %v276, 16
      %v658 = vrot.slane %v656, 4
      %v659 = vshll.u32 %v276, 16
      %v661 = vrot.slane %v659, 5
      %v662 = vor.u32 %v658, %v661
      %v663 = vrot.slane %v662, 4
      %v665 = vshll.u32 %v278, 16
      %v667 = vrot.slane %v665, 5
      %v668 = vsel %vm366, %v663, %v667
      %v670 = vshrl.u32 %v277, 16
      %v672 = vrot.slane %v670, 4
      %v673 = vshll.u32 %v277, 16
      %v675 = vrot.slane %v673, 5
      %v676 = vor.u32 %v672, %v675
      %v677 = vrot.slane %v676, 4
      %v679 = vshll.u32 %v279, 16
      %v681 = vrot.slane %v679, 5
      %v682 = vsel %vm366, %v677, %v681
      %v683 = vshrl.u32 %v278, 16
      %v685 = vrot.slane %v683, 4
      %v686 = vor.u32 %v685, %v667
      %v687 = vrot.slane %v686, 4
      %v689 = vshll.u32 %v360, 16
      %v691 = vrot.slane %v689, 5
      %v692 = vsel %vm366, %v687, %v691
      %v693 = vshrl.u32 %v279, 16
      %v695 = vrot.slane %v693, 4
      %v696 = vor.u32 %v695, %v681
      %v697 = vrot.slane %v696, 4
      %v699 = vshll.u32 %v361, 16
      %v701 = vrot.slane %v699, 5
      %v702 = vsel %vm366, %v697, %v701
      %v704 = vshrl.u32 %v280, 16
      %v706 = vrot.slane %v704, 4
      %v707 = vshll.u32 %v280, 16
      %v709 = vrot.slane %v707, 5
      %v710 = vor.u32 %v706, %v709
      %v711 = vrot.slane %v710, 4
      %v713 = vshll.u32 %v282, 16
      %v715 = vrot.slane %v713, 5
      %v716 = vsel %vm366, %v711, %v715
      %v718 = vshrl.u32 %v281, 16
      %v720 = vrot.slane %v718, 4
      %v721 = vshll.u32 %v281, 16
      %v723 = vrot.slane %v721, 5
      %v724 = vor.u32 %v720, %v723
      %v725 = vrot.slane %v724, 4
      %v727 = vshll.u32 %v283, 16
      %v729 = vrot.slane %v727, 5
      %v730 = vsel %vm366, %v725, %v729
      %v731 = vshrl.u32 %v282, 16
      %v733 = vrot.slane %v731, 4
      %v734 = vor.u32 %v733, %v715
      %v735 = vrot.slane %v734, 4
      %v737 = vshll.u32 %v362, 16
      %v739 = vrot.slane %v737, 5
      %v740 = vsel %vm366, %v735, %v739
      %v741 = vshrl.u32 %v283, 16
      %v743 = vrot.slane %v741, 4
      %v744 = vor.u32 %v743, %v729
      %v745 = vrot.slane %v744, 4
      %v747 = vshll.u32 %v363, 16
      %v749 = vrot.slane %v747, 5
      %v750 = vsel %vm366, %v745, %v749
      %s751 = scalar_lea.vmem %s1, 256
      %v752 = vld [vmem:[%s751] sm:$0xf]
      %v753 = vld [vmem:[%s751 + $0x4] sm:$0xf]
      %v754 = vld [vmem:[%s751 + $0x8] sm:$0xf]
      %v755 = vld [vmem:[%s751 + $0xc] sm:$0xf]
      %v756 = vld [vmem:[%s751 + $0x10] sm:$0xf]
      %v757 = vld [vmem:[%s751 + $0x14] sm:$0xf]
      %v758 = vld [vmem:[%s751 + $0x18] sm:$0xf]
      %v759 = vld [vmem:[%s751 + $0x1c] sm:$0xf]
      %v760 = vld [vmem:[%s751 + $0x20] sm:$0xf]
      %v761 = vld [vmem:[%s751 + $0x24] sm:$0xf]
      %v762 = vld [vmem:[%s751 + $0x28] sm:$0xf]
      %v763 = vld [vmem:[%s751 + $0x2c] sm:$0xf]
      %v764 = vld [vmem:[%s751 + $0x30] sm:$0xf]
      %v765 = vld [vmem:[%s751 + $0x34] sm:$0xf]
      %v766 = vld [vmem:[%s751 + $0x38] sm:$0xf]
      %v767 = vld [vmem:[%s751 + $0x3c] sm:$0xf]
      %v768 = vld [vmem:[%s751 + $0x40] sm:$0xf]
      %v769 = vld [vmem:[%s751 + $0x44] sm:$0xf]
      %v770 = vld [vmem:[%s751 + $0x48] sm:$0xf]
      %v771 = vld [vmem:[%s751 + $0x4c] sm:$0xf]
      %v772 = vld [vmem:[%s751 + $0x50] sm:$0xf]
      %v773 = vld [vmem:[%s751 + $0x54] sm:$0xf]
      %v774 = vld [vmem:[%s751 + $0x58] sm:$0xf]
      %v775 = vld [vmem:[%s751 + $0x5c] sm:$0xf]
      %v776 = vld [vmem:[%s751 + $0x60] sm:$0xf]
      %v777 = vld [vmem:[%s751 + $0x64] sm:$0xf]
      %v778 = vld [vmem:[%s751 + $0x68] sm:$0xf]
      %v779 = vld [vmem:[%s751 + $0x6c] sm:$0xf]
      %v780 = vld [vmem:[%s751 + $0x70] sm:$0xf]
      %v781 = vld [vmem:[%s751 + $0x74] sm:$0xf]
      %v782 = vld [vmem:[%s751 + $0x78] sm:$0xf]
      %v783 = vld [vmem:[%s751 + $0x7c] sm:$0xf]
      %v784 = vld [vmem:[%s751 + $0x80] sm:$0xf]
      %v785 = vld [vmem:[%s751 + $0x84] sm:$0xf]
      %v786 = vld [vmem:[%s751 + $0x88] sm:$0xf]
      %v787 = vld [vmem:[%s751 + $0x8c] sm:$0xf]
      %v788 = vld [vmem:[%s751 + $0x90] sm:$0xf]
      %v789 = vld [vmem:[%s751 + $0x94] sm:$0xf]
      %v790 = vld [vmem:[%s751 + $0x98] sm:$0xf]
      %v791 = vld [vmem:[%s751 + $0x9c] sm:$0xf]
      %v792 = vld [vmem:[%s751 + $0xa0] sm:$0xf]
      %v793 = vld [vmem:[%s751 + $0xa4] sm:$0xf]
      %v794 = vld [vmem:[%s751 + $0xa8] sm:$0xf]
      %v795 = vld [vmem:[%s751 + $0xac] sm:$0xf]
      %v796 = vld [vmem:[%s751 + $0xb0] sm:$0xf]
      %v797 = vld [vmem:[%s751 + $0xb4] sm:$0xf]
      %v798 = vld [vmem:[%s751 + $0xb8] sm:$0xf]
      %v799 = vld [vmem:[%s751 + $0xbc] sm:$0xf]
      %v800 = vld [vmem:[%s751 + $0xc0] sm:$0xf]
      %v801 = vld [vmem:[%s751 + $0xc4] sm:$0xf]
      %v802 = vld [vmem:[%s751 + $0xc8] sm:$0xf]
      %v803 = vld [vmem:[%s751 + $0xcc] sm:$0xf]
      %v804 = vld [vmem:[%s751 + $0xd0] sm:$0xf]
      %v805 = vld [vmem:[%s751 + $0xd4] sm:$0xf]
      %v806 = vld [vmem:[%s751 + $0xd8] sm:$0xf]
      %v807 = vld [vmem:[%s751 + $0xdc] sm:$0xf]
      %v808 = vld [vmem:[%s751 + $0xe0] sm:$0xf]
      %v809 = vld [vmem:[%s751 + $0xe4] sm:$0xf]
      %v810 = vld [vmem:[%s751 + $0xe8] sm:$0xf]
      %v811 = vld [vmem:[%s751 + $0xec] sm:$0xf]
      %v812 = vld [vmem:[%s751 + $0xf0] sm:$0xf]
      %v813 = vld [vmem:[%s751 + $0xf4] sm:$0xf]
      %v814 = vld [vmem:[%s751 + $0xf8] sm:$0xf]
      %v815 = vld [vmem:[%s751 + $0xfc] sm:$0xf]
      %v816 = vunpack.c.l.b16 %v380
      %v817 = vunpack.c.h.b16 %v380
      %v818 = vunpack.c.l.b16 %v394
      %v819 = vunpack.c.h.b16 %v394
      %v820 = vunpack.c.l.b16 %v404
      %v821 = vunpack.c.h.b16 %v404
      %v822 = vunpack.c.l.b16 %v414
      %v823 = vunpack.c.h.b16 %v414
      %v824 = vunpack.c.l.b16 %v428
      %v825 = vunpack.c.h.b16 %v428
      %v826 = vunpack.c.l.b16 %v442
      %v827 = vunpack.c.h.b16 %v442
      %v828 = vunpack.c.l.b16 %v452
      %v829 = vunpack.c.h.b16 %v452
      %v830 = vunpack.c.l.b16 %v462
      %v831 = vunpack.c.h.b16 %v462
      %v832 = vunpack.c.l.b16 %v476
      %v833 = vunpack.c.h.b16 %v476
      %v834 = vunpack.c.l.b16 %v490
      %v835 = vunpack.c.h.b16 %v490
      %v836 = vunpack.c.l.b16 %v500
      %v837 = vunpack.c.h.b16 %v500
      %v838 = vunpack.c.l.b16 %v510
      %v839 = vunpack.c.h.b16 %v510
      %v840 = vunpack.c.l.b16 %v524
      %v841 = vunpack.c.h.b16 %v524
      %v842 = vunpack.c.l.b16 %v538
      %v843 = vunpack.c.h.b16 %v538
      %v844 = vunpack.c.l.b16 %v548
      %v845 = vunpack.c.h.b16 %v548
      %v846 = vunpack.c.l.b16 %v558
      %v847 = vunpack.c.h.b16 %v558
      %v848 = vunpack.c.l.b16 %v572
      %v849 = vunpack.c.h.b16 %v572
      %v850 = vunpack.c.l.b16 %v586
      %v851 = vunpack.c.h.b16 %v586
      %v852 = vunpack.c.l.b16 %v596
      %v853 = vunpack.c.h.b16 %v596
      %v854 = vunpack.c.l.b16 %v606
      %v855 = vunpack.c.h.b16 %v606
      %v856 = vunpack.c.l.b16 %v620
      %v857 = vunpack.c.h.b16 %v620
      %v858 = vunpack.c.l.b16 %v634
      %v859 = vunpack.c.h.b16 %v634
      %v860 = vunpack.c.l.b16 %v644
      %v861 = vunpack.c.h.b16 %v644
      %v862 = vunpack.c.l.b16 %v654
      %v863 = vunpack.c.h.b16 %v654
      %v864 = vunpack.c.l.b16 %v668
      %v865 = vunpack.c.h.b16 %v668
      %v866 = vunpack.c.l.b16 %v682
      %v867 = vunpack.c.h.b16 %v682
      %v868 = vunpack.c.l.b16 %v692
      %v869 = vunpack.c.h.b16 %v692
      %v870 = vunpack.c.l.b16 %v702
      %v871 = vunpack.c.h.b16 %v702
      %v872 = vunpack.c.l.b16 %v716
      %v873 = vunpack.c.h.b16 %v716
      %v874 = vunpack.c.l.b16 %v730
      %v875 = vunpack.c.h.b16 %v730
      %v876 = vunpack.c.l.b16 %v740
      %v877 = vunpack.c.h.b16 %v740
      %v878 = vunpack.c.l.b16 %v750
      %v879 = vunpack.c.h.b16 %v750
      %v880 = vpack.c.b16 %v820, %v816
      %v881 = vpack.c.b16 %v821, %v817
      %v882 = vpack.c.b16 %v822, %v818
      %v883 = vpack.c.b16 %v823, %v819
      %v884 = vpack.c.b16 %v828, %v824
      %v885 = vpack.c.b16 %v829, %v825
      %v886 = vpack.c.b16 %v830, %v826
      %v887 = vpack.c.b16 %v831, %v827
      %v888 = vpack.c.b16 %v836, %v832
      %v889 = vpack.c.b16 %v837, %v833
      %v890 = vpack.c.b16 %v838, %v834
      %v891 = vpack.c.b16 %v839, %v835
      %v892 = vpack.c.b16 %v844, %v840
      %v893 = vpack.c.b16 %v845, %v841
      %v894 = vpack.c.b16 %v846, %v842
      %v895 = vpack.c.b16 %v847, %v843
      %v896 = vpack.c.b16 %v852, %v848
      %v897 = vpack.c.b16 %v853, %v849
      %v898 = vpack.c.b16 %v854, %v850
      %v899 = vpack.c.b16 %v855, %v851
      %v900 = vpack.c.b16 %v860, %v856
      %v901 = vpack.c.b16 %v861, %v857
      %v902 = vpack.c.b16 %v862, %v858
      %v903 = vpack.c.b16 %v863, %v859
      %v904 = vpack.c.b16 %v868, %v864
      %v905 = vpack.c.b16 %v869, %v865
      %v906 = vpack.c.b16 %v870, %v866
      %v907 = vpack.c.b16 %v871, %v867
      %v908 = vpack.c.b16 %v876, %v872
      %v909 = vpack.c.b16 %v877, %v873
      %v910 = vpack.c.b16 %v878, %v874
      %v911 = vpack.c.b16 %v879, %v875
      %v1008 = vunpack.c.l.b16 %v752
      %v1009 = vunpack.c.l.b16 %v753
      %v1010 = vunpack.c.l.b16 %v754
      %v1011 = vunpack.c.l.b16 %v755
      %v1012 = vunpack.c.l.b16 %v756
      %v1013 = vunpack.c.l.b16 %v757
      %v1014 = vunpack.c.l.b16 %v758
      %v1015 = vunpack.c.l.b16 %v759
      %v1016 = vunpack.c.l.b16 %v760
      %v1017 = vunpack.c.l.b16 %v761
      %v1018 = vunpack.c.l.b16 %v762
      %v1019 = vunpack.c.l.b16 %v763
      %v1020 = vunpack.c.l.b16 %v764
      %v1021 = vunpack.c.l.b16 %v765
      %v1022 = vunpack.c.l.b16 %v766
      %v1023 = vunpack.c.l.b16 %v767
      %v1024 = vunpack.c.l.b16 %v768
      %v1025 = vunpack.c.l.b16 %v769
      %v1026 = vunpack.c.l.b16 %v770
      %v1027 = vunpack.c.l.b16 %v771
      %v1028 = vunpack.c.l.b16 %v772
      %v1029 = vunpack.c.l.b16 %v773
      %v1030 = vunpack.c.l.b16 %v774
      %v1031 = vunpack.c.l.b16 %v775
      %v1032 = vunpack.c.l.b16 %v776
      %v1033 = vunpack.c.l.b16 %v777
      %v1034 = vunpack.c.l.b16 %v778
      %v1035 = vunpack.c.l.b16 %v779
      %v1036 = vunpack.c.l.b16 %v780
      %v1037 = vunpack.c.l.b16 %v781
      %v1038 = vunpack.c.l.b16 %v782
      %v1039 = vunpack.c.l.b16 %v783
      %v1040 = vunpack.c.l.b16 %v784
      %v1041 = vunpack.c.l.b16 %v785
      %v1042 = vunpack.c.l.b16 %v786
      %v1043 = vunpack.c.l.b16 %v787
      %v1044 = vunpack.c.l.b16 %v788
      %v1045 = vunpack.c.l.b16 %v789
      %v1046 = vunpack.c.l.b16 %v790
      %v1047 = vunpack.c.l.b16 %v791
      %v1048 = vunpack.c.l.b16 %v792
      %v1049 = vunpack.c.l.b16 %v793
      %v1050 = vunpack.c.l.b16 %v794
      %v1051 = vunpack.c.l.b16 %v795
      %v1052 = vunpack.c.l.b16 %v796
      %v1053 = vunpack.c.l.b16 %v797
      %v1054 = vunpack.c.l.b16 %v798
      %v1055 = vunpack.c.l.b16 %v799
      %v1056 = vunpack.c.l.b16 %v800
      %v1057 = vunpack.c.l.b16 %v801
      %v1058 = vunpack.c.l.b16 %v802
      %v1059 = vunpack.c.l.b16 %v803
      %v1060 = vunpack.c.l.b16 %v804
      %v1061 = vunpack.c.l.b16 %v805
      %v1062 = vunpack.c.l.b16 %v806
      %v1063 = vunpack.c.l.b16 %v807
      %v1064 = vunpack.c.l.b16 %v808
      %v1065 = vunpack.c.l.b16 %v809
      %v1066 = vunpack.c.l.b16 %v810
      %v1067 = vunpack.c.l.b16 %v811
      %v1068 = vunpack.c.l.b16 %v812
      %v1069 = vunpack.c.l.b16 %v813
      %v1070 = vunpack.c.l.b16 %v814
      %v1071 = vunpack.c.l.b16 %v815
      %v1072 = vpack.c.b16 %v1009, %v1008
      %v1073 = vpack.c.b16 %v1011, %v1010
      %v1074 = vpack.c.b16 %v1013, %v1012
      %v1075 = vpack.c.b16 %v1015, %v1014
      %v1076 = vpack.c.b16 %v1017, %v1016
      %v1077 = vpack.c.b16 %v1019, %v1018
      %v1078 = vpack.c.b16 %v1021, %v1020
      %v1079 = vpack.c.b16 %v1023, %v1022
      %v1080 = vpack.c.b16 %v1025, %v1024
      %v1081 = vpack.c.b16 %v1027, %v1026
      %v1082 = vpack.c.b16 %v1029, %v1028
      %v1083 = vpack.c.b16 %v1031, %v1030
      %v1084 = vpack.c.b16 %v1033, %v1032
      %v1085 = vpack.c.b16 %v1035, %v1034
      %v1086 = vpack.c.b16 %v1037, %v1036
      %v1087 = vpack.c.b16 %v1039, %v1038
      %v1088 = vpack.c.b16 %v1041, %v1040
      %v1089 = vpack.c.b16 %v1043, %v1042
      %v1090 = vpack.c.b16 %v1045, %v1044
      %v1091 = vpack.c.b16 %v1047, %v1046
      %v1092 = vpack.c.b16 %v1049, %v1048
      %v1093 = vpack.c.b16 %v1051, %v1050
      %v1094 = vpack.c.b16 %v1053, %v1052
      %v1095 = vpack.c.b16 %v1055, %v1054
      %v1096 = vpack.c.b16 %v1057, %v1056
      %v1097 = vpack.c.b16 %v1059, %v1058
      %v1098 = vpack.c.b16 %v1061, %v1060
      %v1099 = vpack.c.b16 %v1063, %v1062
      %v1100 = vpack.c.b16 %v1065, %v1064
      %v1101 = vpack.c.b16 %v1067, %v1066
      %v1102 = vpack.c.b16 %v1069, %v1068
      %v1103 = vpack.c.b16 %v1071, %v1070
      %1136 = vmatpush.bf16.msra.mxu0 %v1079
      %1137 = vmatpush.bf16.msra.mxu0 %v1078
      %1138 = vmatpush.bf16.msra.mxu0 %v1077
      %1139 = vmatpush.bf16.msra.mxu0 %v1076
      %1140 = vmatpush.bf16.msra.mxu0 %v1075
      %1141 = vmatpush.bf16.msra.mxu0 %v1074
      %1142 = vmatpush.bf16.msra.mxu0 %v1073
      %1143 = vmatpush.bf16.msra.mxu0 %v1072
      %1144 = vmatmul.bf16.gmra.mxu0 %v880
      %v1145 = vpop.f32.mrf.mxu0
      %v1146 = vadd.f32 0.0, %v1145
      %v1147 = vpop.f32.mrf.mxu0
      %v1148 = vadd.f32 0.0, %v1147
      %1149 = vmatmul.bf16.gmra.mxu0 %v884
      %v1150 = vpop.f32.mrf.mxu0
      %v1151 = vadd.f32 0.0, %v1150
      %v1152 = vpop.f32.mrf.mxu0
      %v1153 = vadd.f32 0.0, %v1152
      %1154 = vmatmul.bf16.gmra.mxu0 %v888
      %v1155 = vpop.f32.mrf.mxu0
      %v1156 = vadd.f32 0.0, %v1155
      %v1157 = vpop.f32.mrf.mxu0
      %v1158 = vadd.f32 0.0, %v1157
      %1159 = vmatmul.bf16.gmra.mxu0 %v892
      %v1160 = vpop.f32.mrf.mxu0
      %v1161 = vadd.f32 0.0, %v1160
      %v1162 = vpop.f32.mrf.mxu0
      %v1163 = vadd.f32 0.0, %v1162
      %1164 = vmatmul.bf16.gmra.mxu0 %v896
      %v1165 = vpop.f32.mrf.mxu0
      %v1166 = vadd.f32 0.0, %v1165
      %v1167 = vpop.f32.mrf.mxu0
      %v1168 = vadd.f32 0.0, %v1167
      %1169 = vmatmul.bf16.gmra.mxu0 %v900
      %v1170 = vpop.f32.mrf.mxu0
      %v1171 = vadd.f32 0.0, %v1170
      %v1172 = vpop.f32.mrf.mxu0
      %v1173 = vadd.f32 0.0, %v1172
      %1174 = vmatmul.bf16.gmra.mxu0 %v904
      %v1175 = vpop.f32.mrf.mxu0
      %v1176 = vadd.f32 0.0, %v1175
      %v1177 = vpop.f32.mrf.mxu0
      %v1178 = vadd.f32 0.0, %v1177
      %1179 = vmatmul.bf16.gmra.mxu0 %v908
      %v1180 = vpop.f32.mrf.mxu0
      %v1181 = vadd.f32 0.0, %v1180
      %v1182 = vpop.f32.mrf.mxu0
      %v1183 = vadd.f32 0.0, %v1182
      %1184 = vdwg.mxu0
      %1185 = vmatpush.bf16.msra.mxu0 %v1087
      %1186 = vmatpush.bf16.msra.mxu0 %v1086
      %1187 = vmatpush.bf16.msra.mxu0 %v1085
      %1188 = vmatpush.bf16.msra.mxu0 %v1084
      %1189 = vmatpush.bf16.msra.mxu0 %v1083
      %1190 = vmatpush.bf16.msra.mxu0 %v1082
      %1191 = vmatpush.bf16.msra.mxu0 %v1081
      %1192 = vmatpush.bf16.msra.mxu0 %v1080
      %1193 = vmatmul.bf16.gmra.mxu0 %v881
      %v1194 = vpop.f32.mrf.mxu0
      %v1195 = vadd.f32 %v1146, %v1194
      %v1196 = vpop.f32.mrf.mxu0
      %v1197 = vadd.f32 %v1148, %v1196
      %1198 = vmatmul.bf16.gmra.mxu0 %v885
      %v1199 = vpop.f32.mrf.mxu0
      %v1200 = vadd.f32 %v1151, %v1199
      %v1201 = vpop.f32.mrf.mxu0
      %v1202 = vadd.f32 %v1153, %v1201
      %1203 = vmatmul.bf16.gmra.mxu0 %v889
      %v1204 = vpop.f32.mrf.mxu0
      %v1205 = vadd.f32 %v1156, %v1204
      %v1206 = vpop.f32.mrf.mxu0
      %v1207 = vadd.f32 %v1158, %v1206
      %1208 = vmatmul.bf16.gmra.mxu0 %v893
      %v1209 = vpop.f32.mrf.mxu0
      %v1210 = vadd.f32 %v1161, %v1209
      %v1211 = vpop.f32.mrf.mxu0
      %v1212 = vadd.f32 %v1163, %v1211
      %1213 = vmatmul.bf16.gmra.mxu0 %v897
      %v1214 = vpop.f32.mrf.mxu0
      %v1215 = vadd.f32 %v1166, %v1214
      %v1216 = vpop.f32.mrf.mxu0
      %v1217 = vadd.f32 %v1168, %v1216
      %1218 = vmatmul.bf16.gmra.mxu0 %v901
      %v1219 = vpop.f32.mrf.mxu0
      %v1220 = vadd.f32 %v1171, %v1219
      %v1221 = vpop.f32.mrf.mxu0
      %v1222 = vadd.f32 %v1173, %v1221
      %1223 = vmatmul.bf16.gmra.mxu0 %v905
      %v1224 = vpop.f32.mrf.mxu0
      %v1225 = vadd.f32 %v1176, %v1224
      %v1226 = vpop.f32.mrf.mxu0
      %v1227 = vadd.f32 %v1178, %v1226
      %1228 = vmatmul.bf16.gmra.mxu0 %v909
      %v1229 = vpop.f32.mrf.mxu0
      %v1230 = vadd.f32 %v1181, %v1229
      %v1231 = vpop.f32.mrf.mxu0
      %v1232 = vadd.f32 %v1183, %v1231
      %1233 = vdwg.mxu0
      %1234 = vmatpush.bf16.msra.mxu0 %v1095
      %1235 = vmatpush.bf16.msra.mxu0 %v1094
      %1236 = vmatpush.bf16.msra.mxu0 %v1093
      %1237 = vmatpush.bf16.msra.mxu0 %v1092
      %1238 = vmatpush.bf16.msra.mxu0 %v1091
      %1239 = vmatpush.bf16.msra.mxu0 %v1090
      %1240 = vmatpush.bf16.msra.mxu0 %v1089
      %1241 = vmatpush.bf16.msra.mxu0 %v1088
      %1242 = vmatmul.bf16.gmra.mxu0 %v882
      %v1243 = vpop.f32.mrf.mxu0
      %v1244 = vadd.f32 %v1195, %v1243
      %v1245 = vpop.f32.mrf.mxu0
      %v1246 = vadd.f32 %v1197, %v1245
      %1247 = vmatmul.bf16.gmra.mxu0 %v886
      %v1248 = vpop.f32.mrf.mxu0
      %v1249 = vadd.f32 %v1200, %v1248
      %v1250 = vpop.f32.mrf.mxu0
      %v1251 = vadd.f32 %v1202, %v1250
      %1252 = vmatmul.bf16.gmra.mxu0 %v890
      %v1253 = vpop.f32.mrf.mxu0
      %v1254 = vadd.f32 %v1205, %v1253
      %v1255 = vpop.f32.mrf.mxu0
      %v1256 = vadd.f32 %v1207, %v1255
      %1257 = vmatmul.bf16.gmra.mxu0 %v894
      %v1258 = vpop.f32.mrf.mxu0
      %v1259 = vadd.f32 %v1210, %v1258
      %v1260 = vpop.f32.mrf.mxu0
      %v1261 = vadd.f32 %v1212, %v1260
      %1262 = vmatmul.bf16.gmra.mxu0 %v898
      %v1263 = vpop.f32.mrf.mxu0
      %v1264 = vadd.f32 %v1215, %v1263
      %v1265 = vpop.f32.mrf.mxu0
      %v1266 = vadd.f32 %v1217, %v1265
      %1267 = vmatmul.bf16.gmra.mxu0 %v902
      %v1268 = vpop.f32.mrf.mxu0
      %v1269 = vadd.f32 %v1220, %v1268
      %v1270 = vpop.f32.mrf.mxu0
      %v1271 = vadd.f32 %v1222, %v1270
      %1272 = vmatmul.bf16.gmra.mxu0 %v906
      %v1273 = vpop.f32.mrf.mxu0
      %v1274 = vadd.f32 %v1225, %v1273
      %v1275 = vpop.f32.mrf.mxu0
      %v1276 = vadd.f32 %v1227, %v1275
      %1277 = vmatmul.bf16.gmra.mxu0 %v910
      %v1278 = vpop.f32.mrf.mxu0
      %v1279 = vadd.f32 %v1230, %v1278
      %v1280 = vpop.f32.mrf.mxu0
      %v1281 = vadd.f32 %v1232, %v1280
      %1282 = vdwg.mxu0
      %1283 = vmatpush.bf16.msra.mxu0 %v1103
      %1284 = vmatpush.bf16.msra.mxu0 %v1102
      %1285 = vmatpush.bf16.msra.mxu0 %v1101
      %1286 = vmatpush.bf16.msra.mxu0 %v1100
      %1287 = vmatpush.bf16.msra.mxu0 %v1099
      %1288 = vmatpush.bf16.msra.mxu0 %v1098
      %1289 = vmatpush.bf16.msra.mxu0 %v1097
      %1290 = vmatpush.bf16.msra.mxu0 %v1096
      %1291 = vmatmul.bf16.gmra.mxu0 %v883
      %v1292 = vpop.f32.mrf.mxu0
      %v1293 = vadd.f32 %v1244, %v1292
      %v1294 = vpop.f32.mrf.mxu0
      %v1295 = vadd.f32 %v1246, %v1294
      %1296 = vmatmul.bf16.gmra.mxu0 %v887
      %v1297 = vpop.f32.mrf.mxu0
      %v1298 = vadd.f32 %v1249, %v1297
      %v1299 = vpop.f32.mrf.mxu0
      %v1300 = vadd.f32 %v1251, %v1299
      %1301 = vmatmul.bf16.gmra.mxu0 %v891
      %v1302 = vpop.f32.mrf.mxu0
      %v1303 = vadd.f32 %v1254, %v1302
      %v1304 = vpop.f32.mrf.mxu0
      %v1305 = vadd.f32 %v1256, %v1304
      %1306 = vmatmul.bf16.gmra.mxu0 %v895
      %v1307 = vpop.f32.mrf.mxu0
      %v1308 = vadd.f32 %v1259, %v1307
      %v1309 = vpop.f32.mrf.mxu0
      %v1310 = vadd.f32 %v1261, %v1309
      %1311 = vmatmul.bf16.gmra.mxu0 %v899
      %v1312 = vpop.f32.mrf.mxu0
      %v1313 = vadd.f32 %v1264, %v1312
      %v1314 = vpop.f32.mrf.mxu0
      %v1315 = vadd.f32 %v1266, %v1314
      %1316 = vmatmul.bf16.gmra.mxu0 %v903
      %v1317 = vpop.f32.mrf.mxu0
      %v1318 = vadd.f32 %v1269, %v1317
      %v1319 = vpop.f32.mrf.mxu0
      %v1320 = vadd.f32 %v1271, %v1319
      %1321 = vmatmul.bf16.gmra.mxu0 %v907
      %v1322 = vpop.f32.mrf.mxu0
      %v1323 = vadd.f32 %v1274, %v1322
      %v1324 = vpop.f32.mrf.mxu0
      %v1325 = vadd.f32 %v1276, %v1324
      %1326 = vmatmul.bf16.gmra.mxu0 %v911
      %v1327 = vpop.f32.mrf.mxu0
      %v1328 = vadd.f32 %v1279, %v1327
      %v1329 = vpop.f32.mrf.mxu0
      %v1330 = vadd.f32 %v1281, %v1329
      %1331 = vdwg.mxu0
      %v1364 = vunpack.c.l.b16 %v252
      %v1365 = vunpack.c.h.b16 %v252
      %v1366 = vunpack.c.l.b16 %v253
      %v1367 = vunpack.c.h.b16 %v253
      %v1368 = vunpack.c.l.b16 %v254
      %v1369 = vunpack.c.h.b16 %v254
      %v1370 = vunpack.c.l.b16 %v255
      %v1371 = vunpack.c.h.b16 %v255
      %v1372 = vunpack.c.l.b16 %v256
      %v1373 = vunpack.c.h.b16 %v256
      %v1374 = vunpack.c.l.b16 %v257
      %v1375 = vunpack.c.h.b16 %v257
      %v1376 = vunpack.c.l.b16 %v258
      %v1377 = vunpack.c.h.b16 %v258
      %v1378 = vunpack.c.l.b16 %v259
      %v1379 = vunpack.c.h.b16 %v259
      %v1380 = vunpack.c.l.b16 %v260
      %v1381 = vunpack.c.h.b16 %v260
      %v1382 = vunpack.c.l.b16 %v261
      %v1383 = vunpack.c.h.b16 %v261
      %v1384 = vunpack.c.l.b16 %v262
      %v1385 = vunpack.c.h.b16 %v262
      %v1386 = vunpack.c.l.b16 %v263
      %v1387 = vunpack.c.h.b16 %v263
      %v1388 = vunpack.c.l.b16 %v264
      %v1389 = vunpack.c.h.b16 %v264
      %v1390 = vunpack.c.l.b16 %v265
      %v1391 = vunpack.c.h.b16 %v265
      %v1392 = vunpack.c.l.b16 %v266
      %v1393 = vunpack.c.h.b16 %v266
      %v1394 = vunpack.c.l.b16 %v267
      %v1395 = vunpack.c.h.b16 %v267
      %v1396 = vunpack.c.l.b16 %v268
      %v1397 = vunpack.c.h.b16 %v268
      %v1398 = vunpack.c.l.b16 %v269
      %v1399 = vunpack.c.h.b16 %v269
      %v1400 = vunpack.c.l.b16 %v270
      %v1401 = vunpack.c.h.b16 %v270
      %v1402 = vunpack.c.l.b16 %v271
      %v1403 = vunpack.c.h.b16 %v271
      %v1404 = vunpack.c.l.b16 %v272
      %v1405 = vunpack.c.h.b16 %v272
      %v1406 = vunpack.c.l.b16 %v273
      %v1407 = vunpack.c.h.b16 %v273
      %v1408 = vunpack.c.l.b16 %v274
      %v1409 = vunpack.c.h.b16 %v274
      %v1410 = vunpack.c.l.b16 %v275
      %v1411 = vunpack.c.h.b16 %v275
      %v1412 = vunpack.c.l.b16 %v276
      %v1413 = vunpack.c.h.b16 %v276
      %v1414 = vunpack.c.l.b16 %v277
      %v1415 = vunpack.c.h.b16 %v277
      %v1416 = vunpack.c.l.b16 %v278
      %v1417 = vunpack.c.h.b16 %v278
      %v1418 = vunpack.c.l.b16 %v279
      %v1419 = vunpack.c.h.b16 %v279
      %v1420 = vunpack.c.l.b16 %v280
      %v1421 = vunpack.c.h.b16 %v280
      %v1422 = vunpack.c.l.b16 %v281
      %v1423 = vunpack.c.h.b16 %v281
      %v1424 = vunpack.c.l.b16 %v282
      %v1425 = vunpack.c.h.b16 %v282
      %v1426 = vunpack.c.l.b16 %v283
      %v1427 = vunpack.c.h.b16 %v283
      %v1428 = vpack.c.b16 %v1368, %v1364
      %v1429 = vpack.c.b16 %v1369, %v1365
      %v1430 = vpack.c.b16 %v1370, %v1366
      %v1431 = vpack.c.b16 %v1371, %v1367
      %v1432 = vpack.c.b16 %v1376, %v1372
      %v1433 = vpack.c.b16 %v1377, %v1373
      %v1434 = vpack.c.b16 %v1378, %v1374
      %v1435 = vpack.c.b16 %v1379, %v1375
      %v1436 = vpack.c.b16 %v1384, %v1380
      %v1437 = vpack.c.b16 %v1385, %v1381
      %v1438 = vpack.c.b16 %v1386, %v1382
      %v1439 = vpack.c.b16 %v1387, %v1383
      %v1440 = vpack.c.b16 %v1392, %v1388
      %v1441 = vpack.c.b16 %v1393, %v1389
      %v1442 = vpack.c.b16 %v1394, %v1390
      %v1443 = vpack.c.b16 %v1395, %v1391
      %v1444 = vpack.c.b16 %v1400, %v1396
      %v1445 = vpack.c.b16 %v1401, %v1397
      %v1446 = vpack.c.b16 %v1402, %v1398
      %v1447 = vpack.c.b16 %v1403, %v1399
      %v1448 = vpack.c.b16 %v1408, %v1404
      %v1449 = vpack.c.b16 %v1409, %v1405
      %v1450 = vpack.c.b16 %v1410, %v1406
      %v1451 = vpack.c.b16 %v1411, %v1407
      %v1452 = vpack.c.b16 %v1416, %v1412
      %v1453 = vpack.c.b16 %v1417, %v1413
      %v1454 = vpack.c.b16 %v1418, %v1414
      %v1455 = vpack.c.b16 %v1419, %v1415
      %v1456 = vpack.c.b16 %v1424, %v1420
      %v1457 = vpack.c.b16 %v1425, %v1421
      %v1458 = vpack.c.b16 %v1426, %v1422
      %v1459 = vpack.c.b16 %v1427, %v1423
      %v1556 = vunpack.c.l.b16 %v284
      %v1557 = vunpack.c.l.b16 %v285
      %v1558 = vunpack.c.l.b16 %v286
      %v1559 = vunpack.c.l.b16 %v287
      %v1560 = vunpack.c.l.b16 %v288
      %v1561 = vunpack.c.l.b16 %v289
      %v1562 = vunpack.c.l.b16 %v290
      %v1563 = vunpack.c.l.b16 %v291
      %v1564 = vunpack.c.l.b16 %v292
      %v1565 = vunpack.c.l.b16 %v293
      %v1566 = vunpack.c.l.b16 %v294
      %v1567 = vunpack.c.l.b16 %v295
      %v1568 = vunpack.c.l.b16 %v296
      %v1569 = vunpack.c.l.b16 %v297
      %v1570 = vunpack.c.l.b16 %v298
      %v1571 = vunpack.c.l.b16 %v299
      %v1572 = vunpack.c.l.b16 %v300
      %v1573 = vunpack.c.l.b16 %v301
      %v1574 = vunpack.c.l.b16 %v302
      %v1575 = vunpack.c.l.b16 %v303
      %v1576 = vunpack.c.l.b16 %v304
      %v1577 = vunpack.c.l.b16 %v305
      %v1578 = vunpack.c.l.b16 %v306
      %v1579 = vunpack.c.l.b16 %v307
      %v1580 = vunpack.c.l.b16 %v308
      %v1581 = vunpack.c.l.b16 %v309
      %v1582 = vunpack.c.l.b16 %v310
      %v1583 = vunpack.c.l.b16 %v311
      %v1584 = vunpack.c.l.b16 %v312
      %v1585 = vunpack.c.l.b16 %v313
      %v1586 = vunpack.c.l.b16 %v314
      %v1587 = vunpack.c.l.b16 %v315
      %v1588 = vunpack.c.l.b16 %v316
      %v1589 = vunpack.c.l.b16 %v317
      %v1590 = vunpack.c.l.b16 %v318
      %v1591 = vunpack.c.l.b16 %v319
      %v1592 = vunpack.c.l.b16 %v320
      %v1593 = vunpack.c.l.b16 %v321
      %v1594 = vunpack.c.l.b16 %v322
      %v1595 = vunpack.c.l.b16 %v323
      %v1596 = vunpack.c.l.b16 %v324
      %v1597 = vunpack.c.l.b16 %v325
      %v1598 = vunpack.c.l.b16 %v326
      %v1599 = vunpack.c.l.b16 %v327
      %v1600 = vunpack.c.l.b16 %v328
      %v1601 = vunpack.c.l.b16 %v329
      %v1602 = vunpack.c.l.b16 %v330
      %v1603 = vunpack.c.l.b16 %v331
      %v1604 = vunpack.c.l.b16 %v332
      %v1605 = vunpack.c.l.b16 %v333
      %v1606 = vunpack.c.l.b16 %v334
      %v1607 = vunpack.c.l.b16 %v335
      %v1608 = vunpack.c.l.b16 %v336
      %v1609 = vunpack.c.l.b16 %v337
      %v1610 = vunpack.c.l.b16 %v338
      %v1611 = vunpack.c.l.b16 %v339
      %v1612 = vunpack.c.l.b16 %v340
      %v1613 = vunpack.c.l.b16 %v341
      %v1614 = vunpack.c.l.b16 %v342
      %v1615 = vunpack.c.l.b16 %v343
      %v1616 = vunpack.c.l.b16 %v344
      %v1617 = vunpack.c.l.b16 %v345
      %v1618 = vunpack.c.l.b16 %v346
      %v1619 = vunpack.c.l.b16 %v347
      %v1620 = vpack.c.b16 %v1557, %v1556
      %v1621 = vpack.c.b16 %v1559, %v1558
      %v1622 = vpack.c.b16 %v1561, %v1560
      %v1623 = vpack.c.b16 %v1563, %v1562
      %v1624 = vpack.c.b16 %v1565, %v1564
      %v1625 = vpack.c.b16 %v1567, %v1566
      %v1626 = vpack.c.b16 %v1569, %v1568
      %v1627 = vpack.c.b16 %v1571, %v1570
      %v1628 = vpack.c.b16 %v1573, %v1572
      %v1629 = vpack.c.b16 %v1575, %v1574
      %v1630 = vpack.c.b16 %v1577, %v1576
      %v1631 = vpack.c.b16 %v1579, %v1578
      %v1632 = vpack.c.b16 %v1581, %v1580
      %v1633 = vpack.c.b16 %v1583, %v1582
      %v1634 = vpack.c.b16 %v1585, %v1584
      %v1635 = vpack.c.b16 %v1587, %v1586
      %v1636 = vpack.c.b16 %v1589, %v1588
      %v1637 = vpack.c.b16 %v1591, %v1590
      %v1638 = vpack.c.b16 %v1593, %v1592
      %v1639 = vpack.c.b16 %v1595, %v1594
      %v1640 = vpack.c.b16 %v1597, %v1596
      %v1641 = vpack.c.b16 %v1599, %v1598
      %v1642 = vpack.c.b16 %v1601, %v1600
      %v1643 = vpack.c.b16 %v1603, %v1602
      %v1644 = vpack.c.b16 %v1605, %v1604
      %v1645 = vpack.c.b16 %v1607, %v1606
      %v1646 = vpack.c.b16 %v1609, %v1608
      %v1647 = vpack.c.b16 %v1611, %v1610
      %v1648 = vpack.c.b16 %v1613, %v1612
      %v1649 = vpack.c.b16 %v1615, %v1614
      %v1650 = vpack.c.b16 %v1617, %v1616
      %v1651 = vpack.c.b16 %v1619, %v1618
      %1684 = vmatpush.bf16.msra.mxu0 %v1627
      %1685 = vmatpush.bf16.msra.mxu0 %v1626
      %1686 = vmatpush.bf16.msra.mxu0 %v1625
      %1687 = vmatpush.bf16.msra.mxu0 %v1624
      %1688 = vmatpush.bf16.msra.mxu0 %v1623
      %1689 = vmatpush.bf16.msra.mxu0 %v1622
      %1690 = vmatpush.bf16.msra.mxu0 %v1621
      %1691 = vmatpush.bf16.msra.mxu0 %v1620
      %1692 = vmatmul.bf16.gmra.mxu0 %v1428
      %v1693 = vpop.f32.mrf.mxu0
      %v1694 = vadd.f32 %v1293, %v1693
      %v1695 = vpop.f32.mrf.mxu0
      %v1696 = vadd.f32 %v1295, %v1695
      %1697 = vmatmul.bf16.gmra.mxu0 %v1432
      %v1698 = vpop.f32.mrf.mxu0
      %v1699 = vadd.f32 %v1298, %v1698
      %v1700 = vpop.f32.mrf.mxu0
      %v1701 = vadd.f32 %v1300, %v1700
      %1702 = vmatmul.bf16.gmra.mxu0 %v1436
      %v1703 = vpop.f32.mrf.mxu0
      %v1704 = vadd.f32 %v1303, %v1703
      %v1705 = vpop.f32.mrf.mxu0
      %v1706 = vadd.f32 %v1305, %v1705
      %1707 = vmatmul.bf16.gmra.mxu0 %v1440
      %v1708 = vpop.f32.mrf.mxu0
      %v1709 = vadd.f32 %v1308, %v1708
      %v1710 = vpop.f32.mrf.mxu0
      %v1711 = vadd.f32 %v1310, %v1710
      %1712 = vmatmul.bf16.gmra.mxu0 %v1444
      %v1713 = vpop.f32.mrf.mxu0
      %v1714 = vadd.f32 %v1313, %v1713
      %v1715 = vpop.f32.mrf.mxu0
      %v1716 = vadd.f32 %v1315, %v1715
      %1717 = vmatmul.bf16.gmra.mxu0 %v1448
      %v1718 = vpop.f32.mrf.mxu0
      %v1719 = vadd.f32 %v1318, %v1718
      %v1720 = vpop.f32.mrf.mxu0
      %v1721 = vadd.f32 %v1320, %v1720
      %1722 = vmatmul.bf16.gmra.mxu0 %v1452
      %v1723 = vpop.f32.mrf.mxu0
      %v1724 = vadd.f32 %v1323, %v1723
      %v1725 = vpop.f32.mrf.mxu0
      %v1726 = vadd.f32 %v1325, %v1725
      %1727 = vmatmul.bf16.gmra.mxu0 %v1456
      %v1728 = vpop.f32.mrf.mxu0
      %v1729 = vadd.f32 %v1328, %v1728
      %v1730 = vpop.f32.mrf.mxu0
      %v1731 = vadd.f32 %v1330, %v1730
      %1732 = vdwg.mxu0
      %1733 = vmatpush.bf16.msra.mxu0 %v1635
      %1734 = vmatpush.bf16.msra.mxu0 %v1634
      %1735 = vmatpush.bf16.msra.mxu0 %v1633
      %1736 = vmatpush.bf16.msra.mxu0 %v1632
      %1737 = vmatpush.bf16.msra.mxu0 %v1631
      %1738 = vmatpush.bf16.msra.mxu0 %v1630
      %1739 = vmatpush.bf16.msra.mxu0 %v1629
      %1740 = vmatpush.bf16.msra.mxu0 %v1628
      %1741 = vmatmul.bf16.gmra.mxu0 %v1429
      %v1742 = vpop.f32.mrf.mxu0
      %v1743 = vadd.f32 %v1694, %v1742
      %v1744 = vpop.f32.mrf.mxu0
      %v1745 = vadd.f32 %v1696, %v1744
      %1746 = vmatmul.bf16.gmra.mxu0 %v1433
      %v1747 = vpop.f32.mrf.mxu0
      %v1748 = vadd.f32 %v1699, %v1747
      %v1749 = vpop.f32.mrf.mxu0
      %v1750 = vadd.f32 %v1701, %v1749
      %1751 = vmatmul.bf16.gmra.mxu0 %v1437
      %v1752 = vpop.f32.mrf.mxu0
      %v1753 = vadd.f32 %v1704, %v1752
      %v1754 = vpop.f32.mrf.mxu0
      %v1755 = vadd.f32 %v1706, %v1754
      %1756 = vmatmul.bf16.gmra.mxu0 %v1441
      %v1757 = vpop.f32.mrf.mxu0
      %v1758 = vadd.f32 %v1709, %v1757
      %v1759 = vpop.f32.mrf.mxu0
      %v1760 = vadd.f32 %v1711, %v1759
      %1761 = vmatmul.bf16.gmra.mxu0 %v1445
      %v1762 = vpop.f32.mrf.mxu0
      %v1763 = vadd.f32 %v1714, %v1762
      %v1764 = vpop.f32.mrf.mxu0
      %v1765 = vadd.f32 %v1716, %v1764
      %1766 = vmatmul.bf16.gmra.mxu0 %v1449
      %v1767 = vpop.f32.mrf.mxu0
      %v1768 = vadd.f32 %v1719, %v1767
      %v1769 = vpop.f32.mrf.mxu0
      %v1770 = vadd.f32 %v1721, %v1769
      %1771 = vmatmul.bf16.gmra.mxu0 %v1453
      %v1772 = vpop.f32.mrf.mxu0
      %v1773 = vadd.f32 %v1724, %v1772
      %v1774 = vpop.f32.mrf.mxu0
      %v1775 = vadd.f32 %v1726, %v1774
      %1776 = vmatmul.bf16.gmra.mxu0 %v1457
      %v1777 = vpop.f32.mrf.mxu0
      %v1778 = vadd.f32 %v1729, %v1777
      %v1779 = vpop.f32.mrf.mxu0
      %v1780 = vadd.f32 %v1731, %v1779
      %1781 = vdwg.mxu0
      %1782 = vmatpush.bf16.msra.mxu0 %v1643
      %1783 = vmatpush.bf16.msra.mxu0 %v1642
      %1784 = vmatpush.bf16.msra.mxu0 %v1641
      %1785 = vmatpush.bf16.msra.mxu0 %v1640
      %1786 = vmatpush.bf16.msra.mxu0 %v1639
      %1787 = vmatpush.bf16.msra.mxu0 %v1638
      %1788 = vmatpush.bf16.msra.mxu0 %v1637
      %1789 = vmatpush.bf16.msra.mxu0 %v1636
      %1790 = vmatmul.bf16.gmra.mxu0 %v1430
      %v1791 = vpop.f32.mrf.mxu0
      %v1792 = vadd.f32 %v1743, %v1791
      %v1793 = vpop.f32.mrf.mxu0
      %v1794 = vadd.f32 %v1745, %v1793
      %1795 = vmatmul.bf16.gmra.mxu0 %v1434
      %v1796 = vpop.f32.mrf.mxu0
      %v1797 = vadd.f32 %v1748, %v1796
      %v1798 = vpop.f32.mrf.mxu0
      %v1799 = vadd.f32 %v1750, %v1798
      %1800 = vmatmul.bf16.gmra.mxu0 %v1438
      %v1801 = vpop.f32.mrf.mxu0
      %v1802 = vadd.f32 %v1753, %v1801
      %v1803 = vpop.f32.mrf.mxu0
      %v1804 = vadd.f32 %v1755, %v1803
      %1805 = vmatmul.bf16.gmra.mxu0 %v1442
      %v1806 = vpop.f32.mrf.mxu0
      %v1807 = vadd.f32 %v1758, %v1806
      %v1808 = vpop.f32.mrf.mxu0
      %v1809 = vadd.f32 %v1760, %v1808
      %1810 = vmatmul.bf16.gmra.mxu0 %v1446
      %v1811 = vpop.f32.mrf.mxu0
      %v1812 = vadd.f32 %v1763, %v1811
      %v1813 = vpop.f32.mrf.mxu0
      %v1814 = vadd.f32 %v1765, %v1813
      %1815 = vmatmul.bf16.gmra.mxu0 %v1450
      %v1816 = vpop.f32.mrf.mxu0
      %v1817 = vadd.f32 %v1768, %v1816
      %v1818 = vpop.f32.mrf.mxu0
      %v1819 = vadd.f32 %v1770, %v1818
      %1820 = vmatmul.bf16.gmra.mxu0 %v1454
      %v1821 = vpop.f32.mrf.mxu0
      %v1822 = vadd.f32 %v1773, %v1821
      %v1823 = vpop.f32.mrf.mxu0
      %v1824 = vadd.f32 %v1775, %v1823
      %1825 = vmatmul.bf16.gmra.mxu0 %v1458
      %v1826 = vpop.f32.mrf.mxu0
      %v1827 = vadd.f32 %v1778, %v1826
      %v1828 = vpop.f32.mrf.mxu0
      %v1829 = vadd.f32 %v1780, %v1828
      %1830 = vdwg.mxu0
      %1831 = vmatpush.bf16.msra.mxu0 %v1651
      %1832 = vmatpush.bf16.msra.mxu0 %v1650
      %1833 = vmatpush.bf16.msra.mxu0 %v1649
      %1834 = vmatpush.bf16.msra.mxu0 %v1648
      %1835 = vmatpush.bf16.msra.mxu0 %v1647
      %1836 = vmatpush.bf16.msra.mxu0 %v1646
      %1837 = vmatpush.bf16.msra.mxu0 %v1645
      %1838 = vmatpush.bf16.msra.mxu0 %v1644
      %1839 = vmatmul.bf16.gmra.mxu0 %v1431
      %v1840 = vpop.f32.mrf.mxu0
      %v1841 = vadd.f32 %v1792, %v1840
      %v1842 = vpop.f32.mrf.mxu0
      %v1843 = vadd.f32 %v1794, %v1842
      %1844 = vmatmul.bf16.gmra.mxu0 %v1435
      %v1845 = vpop.f32.mrf.mxu0
      %v1846 = vadd.f32 %v1797, %v1845
      %v1847 = vpop.f32.mrf.mxu0
      %v1848 = vadd.f32 %v1799, %v1847
      %1849 = vmatmul.bf16.gmra.mxu0 %v1439
      %v1850 = vpop.f32.mrf.mxu0
      %v1851 = vadd.f32 %v1802, %v1850
      %v1852 = vpop.f32.mrf.mxu0
      %v1853 = vadd.f32 %v1804, %v1852
      %1854 = vmatmul.bf16.gmra.mxu0 %v1443
      %v1855 = vpop.f32.mrf.mxu0
      %v1856 = vadd.f32 %v1807, %v1855
      %v1857 = vpop.f32.mrf.mxu0
      %v1858 = vadd.f32 %v1809, %v1857
      %1859 = vmatmul.bf16.gmra.mxu0 %v1447
      %v1860 = vpop.f32.mrf.mxu0
      %v1861 = vadd.f32 %v1812, %v1860
      %v1862 = vpop.f32.mrf.mxu0
      %v1863 = vadd.f32 %v1814, %v1862
      %1864 = vmatmul.bf16.gmra.mxu0 %v1451
      %v1865 = vpop.f32.mrf.mxu0
      %v1866 = vadd.f32 %v1817, %v1865
      %v1867 = vpop.f32.mrf.mxu0
      %v1868 = vadd.f32 %v1819, %v1867
      %1869 = vmatmul.bf16.gmra.mxu0 %v1455
      %v1870 = vpop.f32.mrf.mxu0
      %v1871 = vadd.f32 %v1822, %v1870
      %v1872 = vpop.f32.mrf.mxu0
      %v1873 = vadd.f32 %v1824, %v1872
      %1874 = vmatmul.bf16.gmra.mxu0 %v1459
      %v1875 = vpop.f32.mrf.mxu0
      %v1876 = vadd.f32 %v1827, %v1875
      %v1877 = vpop.f32.mrf.mxu0
      %v1878 = vadd.f32 %v1829, %v1877
      %1879 = vdwg.mxu0
      %v1880 = vld [vmem:[%s251] sm:$0xee]
      %v1881 = vld [vmem:[%s251 + $0x8] sm:$0xee]
      %v1882 = vld [vmem:[%s251 + $0x30] sm:$0xee]
      %v1883 = vld [vmem:[%s251 + $0x38] sm:$0xee]
      %v1884 = vld [vmem:[%s251 + $0x60] sm:$0xee]
      %v1885 = vld [vmem:[%s251 + $0x68] sm:$0xee]
      %v1886 = vld [vmem:[%s251 + $0x90] sm:$0xee]
      %v1887 = vld [vmem:[%s251 + $0x98] sm:$0xee]
      %v1888 = vld [vmem:[%s251 + $0xc0] sm:$0xee]
      %v1889 = vld [vmem:[%s251 + $0xc8] sm:$0xee]
      %v1890 = vld [vmem:[%s251 + $0xf0] sm:$0xee]
      %v1891 = vld [vmem:[%s251 + $0xf8] sm:$0xee]
      %v1892 = vld [vmem:[%s251 + $0x120] sm:$0xee]
      %v1893 = vld [vmem:[%s251 + $0x128] sm:$0xee]
      %v1894 = vld [vmem:[%s251 + $0x150] sm:$0xee]
      %v1895 = vld [vmem:[%s251 + $0x158] sm:$0xee]
      %vm1928 = vcmask 1042432
      %vm1929 = vcmask 1046532
      %vm1930 = vmor %vm1928, %vm1929
      %v1931 = vrot.slane %v1880, 5
      %v1932 = vrot.slane %v1931, 4
      %v1933 = vrot.slane %v254, 5
      %v1934 = vsel %vm1930, %v1932, %v1933
      %v1935 = vrot.slane %v1881, 5
      %v1936 = vrot.slane %v1935, 4
      %v1937 = vrot.slane %v255, 5
      %v1938 = vsel %vm1930, %v1936, %v1937
      %v1939 = vrot.slane %v1933, 4
      %v1940 = vrot.slane %v348, 5
      %v1941 = vsel %vm1930, %v1939, %v1940
      %v1942 = vrot.slane %v1937, 4
      %v1943 = vrot.slane %v349, 5
      %v1944 = vsel %vm1930, %v1942, %v1943
      %v1945 = vrot.slane %v1882, 5
      %v1946 = vrot.slane %v1945, 4
      %v1947 = vrot.slane %v258, 5
      %v1948 = vsel %vm1930, %v1946, %v1947
      %v1949 = vrot.slane %v1883, 5
      %v1950 = vrot.slane %v1949, 4
      %v1951 = vrot.slane %v259, 5
      %v1952 = vsel %vm1930, %v1950, %v1951
      %v1953 = vrot.slane %v1947, 4
      %v1954 = vrot.slane %v350, 5
      %v1955 = vsel %vm1930, %v1953, %v1954
      %v1956 = vrot.slane %v1951, 4
      %v1957 = vrot.slane %v351, 5
      %v1958 = vsel %vm1930, %v1956, %v1957
      %v1959 = vrot.slane %v1884, 5
      %v1960 = vrot.slane %v1959, 4
      %v1961 = vrot.slane %v262, 5
      %v1962 = vsel %vm1930, %v1960, %v1961
      %v1963 = vrot.slane %v1885, 5
      %v1964 = vrot.slane %v1963, 4
      %v1965 = vrot.slane %v263, 5
      %v1966 = vsel %vm1930, %v1964, %v1965
      %v1967 = vrot.slane %v1961, 4
      %v1968 = vrot.slane %v352, 5
      %v1969 = vsel %vm1930, %v1967, %v1968
      %v1970 = vrot.slane %v1965, 4
      %v1971 = vrot.slane %v353, 5
      %v1972 = vsel %vm1930, %v1970, %v1971
      %v1973 = vrot.slane %v1886, 5
      %v1974 = vrot.slane %v1973, 4
      %v1975 = vrot.slane %v266, 5
      %v1976 = vsel %vm1930, %v1974, %v1975
      %v1977 = vrot.slane %v1887, 5
      %v1978 = vrot.slane %v1977, 4
      %v1979 = vrot.slane %v267, 5
      %v1980 = vsel %vm1930, %v1978, %v1979
      %v1981 = vrot.slane %v1975, 4
      %v1982 = vrot.slane %v354, 5
      %v1983 = vsel %vm1930, %v1981, %v1982
      %v1984 = vrot.slane %v1979, 4
      %v1985 = vrot.slane %v355, 5
      %v1986 = vsel %vm1930, %v1984, %v1985
      %v1987 = vrot.slane %v1888, 5
      %v1988 = vrot.slane %v1987, 4
      %v1989 = vrot.slane %v270, 5
      %v1990 = vsel %vm1930, %v1988, %v1989
      %v1991 = vrot.slane %v1889, 5
      %v1992 = vrot.slane %v1991, 4
      %v1993 = vrot.slane %v271, 5
      %v1994 = vsel %vm1930, %v1992, %v1993
      %v1995 = vrot.slane %v1989, 4
      %v1996 = vrot.slane %v356, 5
      %v1997 = vsel %vm1930, %v1995, %v1996
      %v1998 = vrot.slane %v1993, 4
      %v1999 = vrot.slane %v357, 5
      %v2000 = vsel %vm1930, %v1998, %v1999
      %v2001 = vrot.slane %v1890, 5
      %v2002 = vrot.slane %v2001, 4
      %v2003 = vrot.slane %v274, 5
      %v2004 = vsel %vm1930, %v2002, %v2003
      %v2005 = vrot.slane %v1891, 5
      %v2006 = vrot.slane %v2005, 4
      %v2007 = vrot.slane %v275, 5
      %v2008 = vsel %vm1930, %v2006, %v2007
      %v2009 = vrot.slane %v2003, 4
      %v2010 = vrot.slane %v358, 5
      %v2011 = vsel %vm1930, %v2009, %v2010
      %v2012 = vrot.slane %v2007, 4
      %v2013 = vrot.slane %v359, 5
      %v2014 = vsel %vm1930, %v2012, %v2013
      %v2015 = vrot.slane %v1892, 5
      %v2016 = vrot.slane %v2015, 4
      %v2017 = vrot.slane %v278, 5
      %v2018 = vsel %vm1930, %v2016, %v2017
      %v2019 = vrot.slane %v1893, 5
      %v2020 = vrot.slane %v2019, 4
      %v2021 = vrot.slane %v279, 5
      %v2022 = vsel %vm1930, %v2020, %v2021
      %v2023 = vrot.slane %v2017, 4
      %v2024 = vrot.slane %v360, 5
      %v2025 = vsel %vm1930, %v2023, %v2024
      %v2026 = vrot.slane %v2021, 4
      %v2027 = vrot.slane %v361, 5
      %v2028 = vsel %vm1930, %v2026, %v2027
      %v2029 = vrot.slane %v1894, 5
      %v2030 = vrot.slane %v2029, 4
      %v2031 = vrot.slane %v282, 5
      %v2032 = vsel %vm1930, %v2030, %v2031
      %v2033 = vrot.slane %v1895, 5
      %v2034 = vrot.slane %v2033, 4
      %v2035 = vrot.slane %v283, 5
      %v2036 = vsel %vm1930, %v2034, %v2035
      %v2037 = vrot.slane %v2031, 4
      %v2038 = vrot.slane %v362, 5
      %v2039 = vsel %vm1930, %v2037, %v2038
      %v2040 = vrot.slane %v2035, 4
      %v2041 = vrot.slane %v363, 5
      %v2042 = vsel %vm1930, %v2040, %v2041
      %s2043 = scalar_lea.vmem %s1, 512
      %v2044 = vld [vmem:[%s2043] sm:$0xf]
      %v2045 = vld [vmem:[%s2043 + $0x4] sm:$0xf]
      %v2046 = vld [vmem:[%s2043 + $0x8] sm:$0xf]
      %v2047 = vld [vmem:[%s2043 + $0xc] sm:$0xf]
      %v2048 = vld [vmem:[%s2043 + $0x10] sm:$0xf]
      %v2049 = vld [vmem:[%s2043 + $0x14] sm:$0xf]
      %v2050 = vld [vmem:[%s2043 + $0x18] sm:$0xf]
      %v2051 = vld [vmem:[%s2043 + $0x1c] sm:$0xf]
      %v2052 = vld [vmem:[%s2043 + $0x20] sm:$0xf]
      %v2053 = vld [vmem:[%s2043 + $0x24] sm:$0xf]
      %v2054 = vld [vmem:[%s2043 + $0x28] sm:$0xf]
      %v2055 = vld [vmem:[%s2043 + $0x2c] sm:$0xf]
      %v2056 = vld [vmem:[%s2043 + $0x30] sm:$0xf]
      %v2057 = vld [vmem:[%s2043 + $0x34] sm:$0xf]
      %v2058 = vld [vmem:[%s2043 + $0x38] sm:$0xf]
      %v2059 = vld [vmem:[%s2043 + $0x3c] sm:$0xf]
      %v2060 = vld [vmem:[%s2043 + $0x40] sm:$0xf]
      %v2061 = vld [vmem:[%s2043 + $0x44] sm:$0xf]
      %v2062 = vld [vmem:[%s2043 + $0x48] sm:$0xf]
      %v2063 = vld [vmem:[%s2043 + $0x4c] sm:$0xf]
      %v2064 = vld [vmem:[%s2043 + $0x50] sm:$0xf]
      %v2065 = vld [vmem:[%s2043 + $0x54] sm:$0xf]
      %v2066 = vld [vmem:[%s2043 + $0x58] sm:$0xf]
      %v2067 = vld [vmem:[%s2043 + $0x5c] sm:$0xf]
      %v2068 = vld [vmem:[%s2043 + $0x60] sm:$0xf]
      %v2069 = vld [vmem:[%s2043 + $0x64] sm:$0xf]
      %v2070 = vld [vmem:[%s2043 + $0x68] sm:$0xf]
      %v2071 = vld [vmem:[%s2043 + $0x6c] sm:$0xf]
      %v2072 = vld [vmem:[%s2043 + $0x70] sm:$0xf]
      %v2073 = vld [vmem:[%s2043 + $0x74] sm:$0xf]
      %v2074 = vld [vmem:[%s2043 + $0x78] sm:$0xf]
      %v2075 = vld [vmem:[%s2043 + $0x7c] sm:$0xf]
      %v2076 = vld [vmem:[%s2043 + $0x80] sm:$0xf]
      %v2077 = vld [vmem:[%s2043 + $0x84] sm:$0xf]
      %v2078 = vld [vmem:[%s2043 + $0x88] sm:$0xf]
      %v2079 = vld [vmem:[%s2043 + $0x8c] sm:$0xf]
      %v2080 = vld [vmem:[%s2043 + $0x90] sm:$0xf]
      %v2081 = vld [vmem:[%s2043 + $0x94] sm:$0xf]
      %v2082 = vld [vmem:[%s2043 + $0x98] sm:$0xf]
      %v2083 = vld [vmem:[%s2043 + $0x9c] sm:$0xf]
      %v2084 = vld [vmem:[%s2043 + $0xa0] sm:$0xf]
      %v2085 = vld [vmem:[%s2043 + $0xa4] sm:$0xf]
      %v2086 = vld [vmem:[%s2043 + $0xa8] sm:$0xf]
      %v2087 = vld [vmem:[%s2043 + $0xac] sm:$0xf]
      %v2088 = vld [vmem:[%s2043 + $0xb0] sm:$0xf]
      %v2089 = vld [vmem:[%s2043 + $0xb4] sm:$0xf]
      %v2090 = vld [vmem:[%s2043 + $0xb8] sm:$0xf]
      %v2091 = vld [vmem:[%s2043 + $0xbc] sm:$0xf]
      %v2092 = vld [vmem:[%s2043 + $0xc0] sm:$0xf]
      %v2093 = vld [vmem:[%s2043 + $0xc4] sm:$0xf]
      %v2094 = vld [vmem:[%s2043 + $0xc8] sm:$0xf]
      %v2095 = vld [vmem:[%s2043 + $0xcc] sm:$0xf]
      %v2096 = vld [vmem:[%s2043 + $0xd0] sm:$0xf]
      %v2097 = vld [vmem:[%s2043 + $0xd4] sm:$0xf]
      %v2098 = vld [vmem:[%s2043 + $0xd8] sm:$0xf]
      %v2099 = vld [vmem:[%s2043 + $0xdc] sm:$0xf]
      %v2100 = vld [vmem:[%s2043 + $0xe0] sm:$0xf]
      %v2101 = vld [vmem:[%s2043 + $0xe4] sm:$0xf]
      %v2102 = vld [vmem:[%s2043 + $0xe8] sm:$0xf]
      %v2103 = vld [vmem:[%s2043 + $0xec] sm:$0xf]
      %v2104 = vld [vmem:[%s2043 + $0xf0] sm:$0xf]
      %v2105 = vld [vmem:[%s2043 + $0xf4] sm:$0xf]
      %v2106 = vld [vmem:[%s2043 + $0xf8] sm:$0xf]
      %v2107 = vld [vmem:[%s2043 + $0xfc] sm:$0xf]
      %v2108 = vunpack.c.l.b16 %v1934
      %v2109 = vunpack.c.h.b16 %v1934
      %v2110 = vunpack.c.l.b16 %v1938
      %v2111 = vunpack.c.h.b16 %v1938
      %v2112 = vunpack.c.l.b16 %v1941
      %v2113 = vunpack.c.h.b16 %v1941
      %v2114 = vunpack.c.l.b16 %v1944
      %v2115 = vunpack.c.h.b16 %v1944
      %v2116 = vunpack.c.l.b16 %v1948
      %v2117 = vunpack.c.h.b16 %v1948
      %v2118 = vunpack.c.l.b16 %v1952
      %v2119 = vunpack.c.h.b16 %v1952
      %v2120 = vunpack.c.l.b16 %v1955
      %v2121 = vunpack.c.h.b16 %v1955
      %v2122 = vunpack.c.l.b16 %v1958
      %v2123 = vunpack.c.h.b16 %v1958
      %v2124 = vunpack.c.l.b16 %v1962
      %v2125 = vunpack.c.h.b16 %v1962
      %v2126 = vunpack.c.l.b16 %v1966
      %v2127 = vunpack.c.h.b16 %v1966
      %v2128 = vunpack.c.l.b16 %v1969
      %v2129 = vunpack.c.h.b16 %v1969
      %v2130 = vunpack.c.l.b16 %v1972
      %v2131 = vunpack.c.h.b16 %v1972
      %v2132 = vunpack.c.l.b16 %v1976
      %v2133 = vunpack.c.h.b16 %v1976
      %v2134 = vunpack.c.l.b16 %v1980
      %v2135 = vunpack.c.h.b16 %v1980
      %v2136 = vunpack.c.l.b16 %v1983
      %v2137 = vunpack.c.h.b16 %v1983
      %v2138 = vunpack.c.l.b16 %v1986
      %v2139 = vunpack.c.h.b16 %v1986
      %v2140 = vunpack.c.l.b16 %v1990
      %v2141 = vunpack.c.h.b16 %v1990
      %v2142 = vunpack.c.l.b16 %v1994
      %v2143 = vunpack.c.h.b16 %v1994
      %v2144 = vunpack.c.l.b16 %v1997
      %v2145 = vunpack.c.h.b16 %v1997
      %v2146 = vunpack.c.l.b16 %v2000
      %v2147 = vunpack.c.h.b16 %v2000
      %v2148 = vunpack.c.l.b16 %v2004
      %v2149 = vunpack.c.h.b16 %v2004
      %v2150 = vunpack.c.l.b16 %v2008
      %v2151 = vunpack.c.h.b16 %v2008
      %v2152 = vunpack.c.l.b16 %v2011
      %v2153 = vunpack.c.h.b16 %v2011
      %v2154 = vunpack.c.l.b16 %v2014
      %v2155 = vunpack.c.h.b16 %v2014
      %v2156 = vunpack.c.l.b16 %v2018
      %v2157 = vunpack.c.h.b16 %v2018
      %v2158 = vunpack.c.l.b16 %v2022
      %v2159 = vunpack.c.h.b16 %v2022
      %v2160 = vunpack.c.l.b16 %v2025
      %v2161 = vunpack.c.h.b16 %v2025
      %v2162 = vunpack.c.l.b16 %v2028
      %v2163 = vunpack.c.h.b16 %v2028
      %v2164 = vunpack.c.l.b16 %v2032
      %v2165 = vunpack.c.h.b16 %v2032
      %v2166 = vunpack.c.l.b16 %v2036
      %v2167 = vunpack.c.h.b16 %v2036
      %v2168 = vunpack.c.l.b16 %v2039
      %v2169 = vunpack.c.h.b16 %v2039
      %v2170 = vunpack.c.l.b16 %v2042
      %v2171 = vunpack.c.h.b16 %v2042
      %v2172 = vpack.c.b16 %v2112, %v2108
      %v2173 = vpack.c.b16 %v2113, %v2109
      %v2174 = vpack.c.b16 %v2114, %v2110
      %v2175 = vpack.c.b16 %v2115, %v2111
      %v2176 = vpack.c.b16 %v2120, %v2116
      %v2177 = vpack.c.b16 %v2121, %v2117
      %v2178 = vpack.c.b16 %v2122, %v2118
      %v2179 = vpack.c.b16 %v2123, %v2119
      %v2180 = vpack.c.b16 %v2128, %v2124
      %v2181 = vpack.c.b16 %v2129, %v2125
      %v2182 = vpack.c.b16 %v2130, %v2126
      %v2183 = vpack.c.b16 %v2131, %v2127
      %v2184 = vpack.c.b16 %v2136, %v2132
      %v2185 = vpack.c.b16 %v2137, %v2133
      %v2186 = vpack.c.b16 %v2138, %v2134
      %v2187 = vpack.c.b16 %v2139, %v2135
      %v2188 = vpack.c.b16 %v2144, %v2140
      %v2189 = vpack.c.b16 %v2145, %v2141
      %v2190 = vpack.c.b16 %v2146, %v2142
      %v2191 = vpack.c.b16 %v2147, %v2143
      %v2192 = vpack.c.b16 %v2152, %v2148
      %v2193 = vpack.c.b16 %v2153, %v2149
      %v2194 = vpack.c.b16 %v2154, %v2150
      %v2195 = vpack.c.b16 %v2155, %v2151
      %v2196 = vpack.c.b16 %v2160, %v2156
      %v2197 = vpack.c.b16 %v2161, %v2157
      %v2198 = vpack.c.b16 %v2162, %v2158
      %v2199 = vpack.c.b16 %v2163, %v2159
      %v2200 = vpack.c.b16 %v2168, %v2164
      %v2201 = vpack.c.b16 %v2169, %v2165
      %v2202 = vpack.c.b16 %v2170, %v2166
      %v2203 = vpack.c.b16 %v2171, %v2167
      %v2300 = vunpack.c.l.b16 %v2044
      %v2301 = vunpack.c.l.b16 %v2045
      %v2302 = vunpack.c.l.b16 %v2046
      %v2303 = vunpack.c.l.b16 %v2047
      %v2304 = vunpack.c.l.b16 %v2048
      %v2305 = vunpack.c.l.b16 %v2049
      %v2306 = vunpack.c.l.b16 %v2050
      %v2307 = vunpack.c.l.b16 %v2051
      %v2308 = vunpack.c.l.b16 %v2052
      %v2309 = vunpack.c.l.b16 %v2053
      %v2310 = vunpack.c.l.b16 %v2054
      %v2311 = vunpack.c.l.b16 %v2055
      %v2312 = vunpack.c.l.b16 %v2056
      %v2313 = vunpack.c.l.b16 %v2057
      %v2314 = vunpack.c.l.b16 %v2058
      %v2315 = vunpack.c.l.b16 %v2059
      %v2316 = vunpack.c.l.b16 %v2060
      %v2317 = vunpack.c.l.b16 %v2061
      %v2318 = vunpack.c.l.b16 %v2062
      %v2319 = vunpack.c.l.b16 %v2063
      %v2320 = vunpack.c.l.b16 %v2064
      %v2321 = vunpack.c.l.b16 %v2065
      %v2322 = vunpack.c.l.b16 %v2066
      %v2323 = vunpack.c.l.b16 %v2067
      %v2324 = vunpack.c.l.b16 %v2068
      %v2325 = vunpack.c.l.b16 %v2069
      %v2326 = vunpack.c.l.b16 %v2070
      %v2327 = vunpack.c.l.b16 %v2071
      %v2328 = vunpack.c.l.b16 %v2072
      %v2329 = vunpack.c.l.b16 %v2073
      %v2330 = vunpack.c.l.b16 %v2074
      %v2331 = vunpack.c.l.b16 %v2075
      %v2332 = vunpack.c.l.b16 %v2076
      %v2333 = vunpack.c.l.b16 %v2077
      %v2334 = vunpack.c.l.b16 %v2078
      %v2335 = vunpack.c.l.b16 %v2079
      %v2336 = vunpack.c.l.b16 %v2080
      %v2337 = vunpack.c.l.b16 %v2081
      %v2338 = vunpack.c.l.b16 %v2082
      %v2339 = vunpack.c.l.b16 %v2083
      %v2340 = vunpack.c.l.b16 %v2084
      %v2341 = vunpack.c.l.b16 %v2085
      %v2342 = vunpack.c.l.b16 %v2086
      %v2343 = vunpack.c.l.b16 %v2087
      %v2344 = vunpack.c.l.b16 %v2088
      %v2345 = vunpack.c.l.b16 %v2089
      %v2346 = vunpack.c.l.b16 %v2090
      %v2347 = vunpack.c.l.b16 %v2091
      %v2348 = vunpack.c.l.b16 %v2092
      %v2349 = vunpack.c.l.b16 %v2093
      %v2350 = vunpack.c.l.b16 %v2094
      %v2351 = vunpack.c.l.b16 %v2095
      %v2352 = vunpack.c.l.b16 %v2096
      %v2353 = vunpack.c.l.b16 %v2097
      %v2354 = vunpack.c.l.b16 %v2098
      %v2355 = vunpack.c.l.b16 %v2099
      %v2356 = vunpack.c.l.b16 %v2100
      %v2357 = vunpack.c.l.b16 %v2101
      %v2358 = vunpack.c.l.b16 %v2102
      %v2359 = vunpack.c.l.b16 %v2103
      %v2360 = vunpack.c.l.b16 %v2104
      %v2361 = vunpack.c.l.b16 %v2105
      %v2362 = vunpack.c.l.b16 %v2106
      %v2363 = vunpack.c.l.b16 %v2107
      %v2364 = vpack.c.b16 %v2301, %v2300
      %v2365 = vpack.c.b16 %v2303, %v2302
      %v2366 = vpack.c.b16 %v2305, %v2304
      %v2367 = vpack.c.b16 %v2307, %v2306
      %v2368 = vpack.c.b16 %v2309, %v2308
      %v2369 = vpack.c.b16 %v2311, %v2310
      %v2370 = vpack.c.b16 %v2313, %v2312
      %v2371 = vpack.c.b16 %v2315, %v2314
      %v2372 = vpack.c.b16 %v2317, %v2316
      %v2373 = vpack.c.b16 %v2319, %v2318
      %v2374 = vpack.c.b16 %v2321, %v2320
      %v2375 = vpack.c.b16 %v2323, %v2322
      %v2376 = vpack.c.b16 %v2325, %v2324
      %v2377 = vpack.c.b16 %v2327, %v2326
      %v2378 = vpack.c.b16 %v2329, %v2328
      %v2379 = vpack.c.b16 %v2331, %v2330
      %v2380 = vpack.c.b16 %v2333, %v2332
      %v2381 = vpack.c.b16 %v2335, %v2334
      %v2382 = vpack.c.b16 %v2337, %v2336
      %v2383 = vpack.c.b16 %v2339, %v2338
      %v2384 = vpack.c.b16 %v2341, %v2340
      %v2385 = vpack.c.b16 %v2343, %v2342
      %v2386 = vpack.c.b16 %v2345, %v2344
      %v2387 = vpack.c.b16 %v2347, %v2346
      %v2388 = vpack.c.b16 %v2349, %v2348
      %v2389 = vpack.c.b16 %v2351, %v2350
      %v2390 = vpack.c.b16 %v2353, %v2352
      %v2391 = vpack.c.b16 %v2355, %v2354
      %v2392 = vpack.c.b16 %v2357, %v2356
      %v2393 = vpack.c.b16 %v2359, %v2358
      %v2394 = vpack.c.b16 %v2361, %v2360
      %v2395 = vpack.c.b16 %v2363, %v2362
      %2428 = vmatpush.bf16.msra.mxu0 %v2371
      %2429 = vmatpush.bf16.msra.mxu0 %v2370
      %2430 = vmatpush.bf16.msra.mxu0 %v2369
      %2431 = vmatpush.bf16.msra.mxu0 %v2368
      %2432 = vmatpush.bf16.msra.mxu0 %v2367
      %2433 = vmatpush.bf16.msra.mxu0 %v2366
      %2434 = vmatpush.bf16.msra.mxu0 %v2365
      %2435 = vmatpush.bf16.msra.mxu0 %v2364
      %2436 = vmatmul.bf16.gmra.mxu0 %v2172
      %v2437 = vpop.f32.mrf.mxu0
      %v2438 = vadd.f32 0.0, %v2437
      %v2439 = vpop.f32.mrf.mxu0
      %v2440 = vadd.f32 0.0, %v2439
      %2441 = vmatmul.bf16.gmra.mxu0 %v2176
      %v2442 = vpop.f32.mrf.mxu0
      %v2443 = vadd.f32 0.0, %v2442
      %v2444 = vpop.f32.mrf.mxu0
      %v2445 = vadd.f32 0.0, %v2444
      %2446 = vmatmul.bf16.gmra.mxu0 %v2180
      %v2447 = vpop.f32.mrf.mxu0
      %v2448 = vadd.f32 0.0, %v2447
      %v2449 = vpop.f32.mrf.mxu0
      %v2450 = vadd.f32 0.0, %v2449
      %2451 = vmatmul.bf16.gmra.mxu0 %v2184
      %v2452 = vpop.f32.mrf.mxu0
      %v2453 = vadd.f32 0.0, %v2452
      %v2454 = vpop.f32.mrf.mxu0
      %v2455 = vadd.f32 0.0, %v2454
      %2456 = vmatmul.bf16.gmra.mxu0 %v2188
      %v2457 = vpop.f32.mrf.mxu0
      %v2458 = vadd.f32 0.0, %v2457
      %v2459 = vpop.f32.mrf.mxu0
      %v2460 = vadd.f32 0.0, %v2459
      %2461 = vmatmul.bf16.gmra.mxu0 %v2192
      %v2462 = vpop.f32.mrf.mxu0
      %v2463 = vadd.f32 0.0, %v2462
      %v2464 = vpop.f32.mrf.mxu0
      %v2465 = vadd.f32 0.0, %v2464
      %2466 = vmatmul.bf16.gmra.mxu0 %v2196
      %v2467 = vpop.f32.mrf.mxu0
      %v2468 = vadd.f32 0.0, %v2467
      %v2469 = vpop.f32.mrf.mxu0
      %v2470 = vadd.f32 0.0, %v2469
      %2471 = vmatmul.bf16.gmra.mxu0 %v2200
      %v2472 = vpop.f32.mrf.mxu0
      %v2473 = vadd.f32 0.0, %v2472
      %v2474 = vpop.f32.mrf.mxu0
      %v2475 = vadd.f32 0.0, %v2474
      %2476 = vdwg.mxu0
      %2477 = vmatpush.bf16.msra.mxu0 %v2379
      %2478 = vmatpush.bf16.msra.mxu0 %v2378
      %2479 = vmatpush.bf16.msra.mxu0 %v2377
      %2480 = vmatpush.bf16.msra.mxu0 %v2376
      %2481 = vmatpush.bf16.msra.mxu0 %v2375
      %2482 = vmatpush.bf16.msra.mxu0 %v2374
      %2483 = vmatpush.bf16.msra.mxu0 %v2373
      %2484 = vmatpush.bf16.msra.mxu0 %v2372
      %2485 = vmatmul.bf16.gmra.mxu0 %v2173
      %v2486 = vpop.f32.mrf.mxu0
      %v2487 = vadd.f32 %v2438, %v2486
      %v2488 = vpop.f32.mrf.mxu0
      %v2489 = vadd.f32 %v2440, %v2488
      %2490 = vmatmul.bf16.gmra.mxu0 %v2177
      %v2491 = vpop.f32.mrf.mxu0
      %v2492 = vadd.f32 %v2443, %v2491
      %v2493 = vpop.f32.mrf.mxu0
      %v2494 = vadd.f32 %v2445, %v2493
      %2495 = vmatmul.bf16.gmra.mxu0 %v2181
      %v2496 = vpop.f32.mrf.mxu0
      %v2497 = vadd.f32 %v2448, %v2496
      %v2498 = vpop.f32.mrf.mxu0
      %v2499 = vadd.f32 %v2450, %v2498
      %2500 = vmatmul.bf16.gmra.mxu0 %v2185
      %v2501 = vpop.f32.mrf.mxu0
      %v2502 = vadd.f32 %v2453, %v2501
      %v2503 = vpop.f32.mrf.mxu0
      %v2504 = vadd.f32 %v2455, %v2503
      %2505 = vmatmul.bf16.gmra.mxu0 %v2189
      %v2506 = vpop.f32.mrf.mxu0
      %v2507 = vadd.f32 %v2458, %v2506
      %v2508 = vpop.f32.mrf.mxu0
      %v2509 = vadd.f32 %v2460, %v2508
      %2510 = vmatmul.bf16.gmra.mxu0 %v2193
      %v2511 = vpop.f32.mrf.mxu0
      %v2512 = vadd.f32 %v2463, %v2511
      %v2513 = vpop.f32.mrf.mxu0
      %v2514 = vadd.f32 %v2465, %v2513
      %2515 = vmatmul.bf16.gmra.mxu0 %v2197
      %v2516 = vpop.f32.mrf.mxu0
      %v2517 = vadd.f32 %v2468, %v2516
      %v2518 = vpop.f32.mrf.mxu0
      %v2519 = vadd.f32 %v2470, %v2518
      %2520 = vmatmul.bf16.gmra.mxu0 %v2201
      %v2521 = vpop.f32.mrf.mxu0
      %v2522 = vadd.f32 %v2473, %v2521
      %v2523 = vpop.f32.mrf.mxu0
      %v2524 = vadd.f32 %v2475, %v2523
      %2525 = vdwg.mxu0
      %2526 = vmatpush.bf16.msra.mxu0 %v2387
      %2527 = vmatpush.bf16.msra.mxu0 %v2386
      %2528 = vmatpush.bf16.msra.mxu0 %v2385
      %2529 = vmatpush.bf16.msra.mxu0 %v2384
      %2530 = vmatpush.bf16.msra.mxu0 %v2383
      %2531 = vmatpush.bf16.msra.mxu0 %v2382
      %2532 = vmatpush.bf16.msra.mxu0 %v2381
      %2533 = vmatpush.bf16.msra.mxu0 %v2380
      %2534 = vmatmul.bf16.gmra.mxu0 %v2174
      %v2535 = vpop.f32.mrf.mxu0
      %v2536 = vadd.f32 %v2487, %v2535
      %v2537 = vpop.f32.mrf.mxu0
      %v2538 = vadd.f32 %v2489, %v2537
      %2539 = vmatmul.bf16.gmra.mxu0 %v2178
      %v2540 = vpop.f32.mrf.mxu0
      %v2541 = vadd.f32 %v2492, %v2540
      %v2542 = vpop.f32.mrf.mxu0
      %v2543 = vadd.f32 %v2494, %v2542
      %2544 = vmatmul.bf16.gmra.mxu0 %v2182
      %v2545 = vpop.f32.mrf.mxu0
      %v2546 = vadd.f32 %v2497, %v2545
      %v2547 = vpop.f32.mrf.mxu0
      %v2548 = vadd.f32 %v2499, %v2547
      %2549 = vmatmul.bf16.gmra.mxu0 %v2186
      %v2550 = vpop.f32.mrf.mxu0
      %v2551 = vadd.f32 %v2502, %v2550
      %v2552 = vpop.f32.mrf.mxu0
      %v2553 = vadd.f32 %v2504, %v2552
      %2554 = vmatmul.bf16.gmra.mxu0 %v2190
      %v2555 = vpop.f32.mrf.mxu0
      %v2556 = vadd.f32 %v2507, %v2555
      %v2557 = vpop.f32.mrf.mxu0
      %v2558 = vadd.f32 %v2509, %v2557
      %2559 = vmatmul.bf16.gmra.mxu0 %v2194
      %v2560 = vpop.f32.mrf.mxu0
      %v2561 = vadd.f32 %v2512, %v2560
      %v2562 = vpop.f32.mrf.mxu0
      %v2563 = vadd.f32 %v2514, %v2562
      %2564 = vmatmul.bf16.gmra.mxu0 %v2198
      %v2565 = vpop.f32.mrf.mxu0
      %v2566 = vadd.f32 %v2517, %v2565
      %v2567 = vpop.f32.mrf.mxu0
      %v2568 = vadd.f32 %v2519, %v2567
      %2569 = vmatmul.bf16.gmra.mxu0 %v2202
      %v2570 = vpop.f32.mrf.mxu0
      %v2571 = vadd.f32 %v2522, %v2570
      %v2572 = vpop.f32.mrf.mxu0
      %v2573 = vadd.f32 %v2524, %v2572
      %2574 = vdwg.mxu0
      %2575 = vmatpush.bf16.msra.mxu0 %v2395
      %2576 = vmatpush.bf16.msra.mxu0 %v2394
      %2577 = vmatpush.bf16.msra.mxu0 %v2393
      %2578 = vmatpush.bf16.msra.mxu0 %v2392
      %2579 = vmatpush.bf16.msra.mxu0 %v2391
      %2580 = vmatpush.bf16.msra.mxu0 %v2390
      %2581 = vmatpush.bf16.msra.mxu0 %v2389
      %2582 = vmatpush.bf16.msra.mxu0 %v2388
      %2583 = vmatmul.bf16.gmra.mxu0 %v2175
      %v2584 = vpop.f32.mrf.mxu0
      %v2585 = vadd.f32 %v2536, %v2584
      %v2586 = vpop.f32.mrf.mxu0
      %v2587 = vadd.f32 %v2538, %v2586
      %2588 = vmatmul.bf16.gmra.mxu0 %v2179
      %v2589 = vpop.f32.mrf.mxu0
      %v2590 = vadd.f32 %v2541, %v2589
      %v2591 = vpop.f32.mrf.mxu0
      %v2592 = vadd.f32 %v2543, %v2591
      %2593 = vmatmul.bf16.gmra.mxu0 %v2183
      %v2594 = vpop.f32.mrf.mxu0
      %v2595 = vadd.f32 %v2546, %v2594
      %v2596 = vpop.f32.mrf.mxu0
      %v2597 = vadd.f32 %v2548, %v2596
      %2598 = vmatmul.bf16.gmra.mxu0 %v2187
      %v2599 = vpop.f32.mrf.mxu0
      %v2600 = vadd.f32 %v2551, %v2599
      %v2601 = vpop.f32.mrf.mxu0
      %v2602 = vadd.f32 %v2553, %v2601
      %2603 = vmatmul.bf16.gmra.mxu0 %v2191
      %v2604 = vpop.f32.mrf.mxu0
      %v2605 = vadd.f32 %v2556, %v2604
      %v2606 = vpop.f32.mrf.mxu0
      %v2607 = vadd.f32 %v2558, %v2606
      %2608 = vmatmul.bf16.gmra.mxu0 %v2195
      %v2609 = vpop.f32.mrf.mxu0
      %v2610 = vadd.f32 %v2561, %v2609
      %v2611 = vpop.f32.mrf.mxu0
      %v2612 = vadd.f32 %v2563, %v2611
      %2613 = vmatmul.bf16.gmra.mxu0 %v2199
      %v2614 = vpop.f32.mrf.mxu0
      %v2615 = vadd.f32 %v2566, %v2614
      %v2616 = vpop.f32.mrf.mxu0
      %v2617 = vadd.f32 %v2568, %v2616
      %2618 = vmatmul.bf16.gmra.mxu0 %v2203
      %v2619 = vpop.f32.mrf.mxu0
      %v2620 = vadd.f32 %v2571, %v2619
      %v2621 = vpop.f32.mrf.mxu0
      %v2622 = vadd.f32 %v2573, %v2621
      %2623 = vdwg.mxu0
      %v2624 = vadd.f32 %v1841, %v2585
      %v2625 = vadd.f32 %v1843, %v2587
      %v2626 = vadd.f32 %v1846, %v2590
      %v2627 = vadd.f32 %v1848, %v2592
      %v2628 = vadd.f32 %v1851, %v2595
      %v2629 = vadd.f32 %v1853, %v2597
      %v2630 = vadd.f32 %v1856, %v2600
      %v2631 = vadd.f32 %v1858, %v2602
      %v2632 = vadd.f32 %v1861, %v2605
      %v2633 = vadd.f32 %v1863, %v2607
      %v2634 = vadd.f32 %v1866, %v2610
      %v2635 = vadd.f32 %v1868, %v2612
      %v2636 = vadd.f32 %v1871, %v2615
      %v2637 = vadd.f32 %v1873, %v2617
      %v2638 = vadd.f32 %v1876, %v2620
      %v2639 = vadd.f32 %v1878, %v2622
      %s2640 = sadd.s32 %s248, 1
      %s2641 = smul.u32 %s2640, 12
      %s2642 = smul.addr %s2641, 4
      %s2643 = scalar_lea.vmem %s237, %s2642
      %v2644 = vld [vmem:[%s2643] sm:$0xff]
      %v2645 = vld [vmem:[%s2643 + $0x8] sm:$0xff]
      %v2646 = vld [vmem:[%s2643 + $0x10] sm:$0xff]
      %v2647 = vld [vmem:[%s2643 + $0x18] sm:$0xff]
      %v2648 = vld [vmem:[%s2643 + $0x30] sm:$0xff]
      %v2649 = vld [vmem:[%s2643 + $0x38] sm:$0xff]
      %v2650 = vld [vmem:[%s2643 + $0x40] sm:$0xff]
      %v2651 = vld [vmem:[%s2643 + $0x48] sm:$0xff]
      %v2652 = vld [vmem:[%s2643 + $0x60] sm:$0xff]
      %v2653 = vld [vmem:[%s2643 + $0x68] sm:$0xff]
      %v2654 = vld [vmem:[%s2643 + $0x70] sm:$0xff]
      %v2655 = vld [vmem:[%s2643 + $0x78] sm:$0xff]
      %v2656 = vld [vmem:[%s2643 + $0x90] sm:$0xff]
      %v2657 = vld [vmem:[%s2643 + $0x98] sm:$0xff]
      %v2658 = vld [vmem:[%s2643 + $0xa0] sm:$0xff]
      %v2659 = vld [vmem:[%s2643 + $0xa8] sm:$0xff]
      %v2660 = vld [vmem:[%s2643 + $0xc0] sm:$0xff]
      %v2661 = vld [vmem:[%s2643 + $0xc8] sm:$0xff]
      %v2662 = vld [vmem:[%s2643 + $0xd0] sm:$0xff]
      %v2663 = vld [vmem:[%s2643 + $0xd8] sm:$0xff]
      %v2664 = vld [vmem:[%s2643 + $0xf0] sm:$0xff]
      %v2665 = vld [vmem:[%s2643 + $0xf8] sm:$0xff]
      %v2666 = vld [vmem:[%s2643 + $0x100] sm:$0xff]
      %v2667 = vld [vmem:[%s2643 + $0x108] sm:$0xff]
      %v2668 = vld [vmem:[%s2643 + $0x120] sm:$0xff]
      %v2669 = vld [vmem:[%s2643 + $0x128] sm:$0xff]
      %v2670 = vld [vmem:[%s2643 + $0x130] sm:$0xff]
      %v2671 = vld [vmem:[%s2643 + $0x138] sm:$0xff]
      %v2672 = vld [vmem:[%s2643 + $0x150] sm:$0xff]
      %v2673 = vld [vmem:[%s2643 + $0x158] sm:$0xff]
      %v2674 = vld [vmem:[%s2643 + $0x160] sm:$0xff]
      %v2675 = vld [vmem:[%s2643 + $0x168] sm:$0xff]
      %s2676 = scalar_lea.vmem %s1, 768
      %v2677 = vld [vmem:[%s2676] sm:$0xf]
      %v2678 = vld [vmem:[%s2676 + $0x4] sm:$0xf]
      %v2679 = vld [vmem:[%s2676 + $0x8] sm:$0xf]
      %v2680 = vld [vmem:[%s2676 + $0xc] sm:$0xf]
      %v2681 = vld [vmem:[%s2676 + $0x10] sm:$0xf]
      %v2682 = vld [vmem:[%s2676 + $0x14] sm:$0xf]
      %v2683 = vld [vmem:[%s2676 + $0x18] sm:$0xf]
      %v2684 = vld [vmem:[%s2676 + $0x1c] sm:$0xf]
      %v2685 = vld [vmem:[%s2676 + $0x20] sm:$0xf]
      %v2686 = vld [vmem:[%s2676 + $0x24] sm:$0xf]
      %v2687 = vld [vmem:[%s2676 + $0x28] sm:$0xf]
      %v2688 = vld [vmem:[%s2676 + $0x2c] sm:$0xf]
      %v2689 = vld [vmem:[%s2676 + $0x30] sm:$0xf]
      %v2690 = vld [vmem:[%s2676 + $0x34] sm:$0xf]
      %v2691 = vld [vmem:[%s2676 + $0x38] sm:$0xf]
      %v2692 = vld [vmem:[%s2676 + $0x3c] sm:$0xf]
      %v2693 = vld [vmem:[%s2676 + $0x40] sm:$0xf]
      %v2694 = vld [vmem:[%s2676 + $0x44] sm:$0xf]
      %v2695 = vld [vmem:[%s2676 + $0x48] sm:$0xf]
      %v2696 = vld [vmem:[%s2676 + $0x4c] sm:$0xf]
      %v2697 = vld [vmem:[%s2676 + $0x50] sm:$0xf]
      %v2698 = vld [vmem:[%s2676 + $0x54] sm:$0xf]
      %v2699 = vld [vmem:[%s2676 + $0x58] sm:$0xf]
      %v2700 = vld [vmem:[%s2676 + $0x5c] sm:$0xf]
      %v2701 = vld [vmem:[%s2676 + $0x60] sm:$0xf]
      %v2702 = vld [vmem:[%s2676 + $0x64] sm:$0xf]
      %v2703 = vld [vmem:[%s2676 + $0x68] sm:$0xf]
      %v2704 = vld [vmem:[%s2676 + $0x6c] sm:$0xf]
      %v2705 = vld [vmem:[%s2676 + $0x70] sm:$0xf]
      %v2706 = vld [vmem:[%s2676 + $0x74] sm:$0xf]
      %v2707 = vld [vmem:[%s2676 + $0x78] sm:$0xf]
      %v2708 = vld [vmem:[%s2676 + $0x7c] sm:$0xf]
      %v2709 = vld [vmem:[%s2676 + $0x80] sm:$0xf]
      %v2710 = vld [vmem:[%s2676 + $0x84] sm:$0xf]
      %v2711 = vld [vmem:[%s2676 + $0x88] sm:$0xf]
      %v2712 = vld [vmem:[%s2676 + $0x8c] sm:$0xf]
      %v2713 = vld [vmem:[%s2676 + $0x90] sm:$0xf]
      %v2714 = vld [vmem:[%s2676 + $0x94] sm:$0xf]
      %v2715 = vld [vmem:[%s2676 + $0x98] sm:$0xf]
      %v2716 = vld [vmem:[%s2676 + $0x9c] sm:$0xf]
      %v2717 = vld [vmem:[%s2676 + $0xa0] sm:$0xf]
      %v2718 = vld [vmem:[%s2676 + $0xa4] sm:$0xf]
      %v2719 = vld [vmem:[%s2676 + $0xa8] sm:$0xf]
      %v2720 = vld [vmem:[%s2676 + $0xac] sm:$0xf]
      %v2721 = vld [vmem:[%s2676 + $0xb0] sm:$0xf]
      %v2722 = vld [vmem:[%s2676 + $0xb4] sm:$0xf]
      %v2723 = vld [vmem:[%s2676 + $0xb8] sm:$0xf]
      %v2724 = vld [vmem:[%s2676 + $0xbc] sm:$0xf]
      %v2725 = vld [vmem:[%s2676 + $0xc0] sm:$0xf]
      %v2726 = vld [vmem:[%s2676 + $0xc4] sm:$0xf]
      %v2727 = vld [vmem:[%s2676 + $0xc8] sm:$0xf]
      %v2728 = vld [vmem:[%s2676 + $0xcc] sm:$0xf]
      %v2729 = vld [vmem:[%s2676 + $0xd0] sm:$0xf]
      %v2730 = vld [vmem:[%s2676 + $0xd4] sm:$0xf]
      %v2731 = vld [vmem:[%s2676 + $0xd8] sm:$0xf]
      %v2732 = vld [vmem:[%s2676 + $0xdc] sm:$0xf]
      %v2733 = vld [vmem:[%s2676 + $0xe0] sm:$0xf]
      %v2734 = vld [vmem:[%s2676 + $0xe4] sm:$0xf]
      %v2735 = vld [vmem:[%s2676 + $0xe8] sm:$0xf]
      %v2736 = vld [vmem:[%s2676 + $0xec] sm:$0xf]
      %v2737 = vld [vmem:[%s2676 + $0xf0] sm:$0xf]
      %v2738 = vld [vmem:[%s2676 + $0xf4] sm:$0xf]
      %v2739 = vld [vmem:[%s2676 + $0xf8] sm:$0xf]
      %v2740 = vld [vmem:[%s2676 + $0xfc] sm:$0xf]
      %v2773 = vunpack.c.l.b16 %v2644
      %v2774 = vunpack.c.h.b16 %v2644
      %v2775 = vunpack.c.l.b16 %v2645
      %v2776 = vunpack.c.h.b16 %v2645
      %v2777 = vunpack.c.l.b16 %v2646
      %v2778 = vunpack.c.h.b16 %v2646
      %v2779 = vunpack.c.l.b16 %v2647
      %v2780 = vunpack.c.h.b16 %v2647
      %v2781 = vunpack.c.l.b16 %v2648
      %v2782 = vunpack.c.h.b16 %v2648
      %v2783 = vunpack.c.l.b16 %v2649
      %v2784 = vunpack.c.h.b16 %v2649
      %v2785 = vunpack.c.l.b16 %v2650
      %v2786 = vunpack.c.h.b16 %v2650
      %v2787 = vunpack.c.l.b16 %v2651
      %v2788 = vunpack.c.h.b16 %v2651
      %v2789 = vunpack.c.l.b16 %v2652
      %v2790 = vunpack.c.h.b16 %v2652
      %v2791 = vunpack.c.l.b16 %v2653
      %v2792 = vunpack.c.h.b16 %v2653
      %v2793 = vunpack.c.l.b16 %v2654
      %v2794 = vunpack.c.h.b16 %v2654
      %v2795 = vunpack.c.l.b16 %v2655
      %v2796 = vunpack.c.h.b16 %v2655
      %v2797 = vunpack.c.l.b16 %v2656
      %v2798 = vunpack.c.h.b16 %v2656
      %v2799 = vunpack.c.l.b16 %v2657
      %v2800 = vunpack.c.h.b16 %v2657
      %v2801 = vunpack.c.l.b16 %v2658
      %v2802 = vunpack.c.h.b16 %v2658
      %v2803 = vunpack.c.l.b16 %v2659
      %v2804 = vunpack.c.h.b16 %v2659
      %v2805 = vunpack.c.l.b16 %v2660
      %v2806 = vunpack.c.h.b16 %v2660
      %v2807 = vunpack.c.l.b16 %v2661
      %v2808 = vunpack.c.h.b16 %v2661
      %v2809 = vunpack.c.l.b16 %v2662
      %v2810 = vunpack.c.h.b16 %v2662
      %v2811 = vunpack.c.l.b16 %v2663
      %v2812 = vunpack.c.h.b16 %v2663
      %v2813 = vunpack.c.l.b16 %v2664
      %v2814 = vunpack.c.h.b16 %v2664
      %v2815 = vunpack.c.l.b16 %v2665
      %v2816 = vunpack.c.h.b16 %v2665
      %v2817 = vunpack.c.l.b16 %v2666
      %v2818 = vunpack.c.h.b16 %v2666
      %v2819 = vunpack.c.l.b16 %v2667
      %v2820 = vunpack.c.h.b16 %v2667
      %v2821 = vunpack.c.l.b16 %v2668
      %v2822 = vunpack.c.h.b16 %v2668
      %v2823 = vunpack.c.l.b16 %v2669
      %v2824 = vunpack.c.h.b16 %v2669
      %v2825 = vunpack.c.l.b16 %v2670
      %v2826 = vunpack.c.h.b16 %v2670
      %v2827 = vunpack.c.l.b16 %v2671
      %v2828 = vunpack.c.h.b16 %v2671
      %v2829 = vunpack.c.l.b16 %v2672
      %v2830 = vunpack.c.h.b16 %v2672
      %v2831 = vunpack.c.l.b16 %v2673
      %v2832 = vunpack.c.h.b16 %v2673
      %v2833 = vunpack.c.l.b16 %v2674
      %v2834 = vunpack.c.h.b16 %v2674
      %v2835 = vunpack.c.l.b16 %v2675
      %v2836 = vunpack.c.h.b16 %v2675
      %v2837 = vpack.c.b16 %v2777, %v2773
      %v2838 = vpack.c.b16 %v2778, %v2774
      %v2839 = vpack.c.b16 %v2779, %v2775
      %v2840 = vpack.c.b16 %v2780, %v2776
      %v2841 = vpack.c.b16 %v2785, %v2781
      %v2842 = vpack.c.b16 %v2786, %v2782
      %v2843 = vpack.c.b16 %v2787, %v2783
      %v2844 = vpack.c.b16 %v2788, %v2784
      %v2845 = vpack.c.b16 %v2793, %v2789
      %v2846 = vpack.c.b16 %v2794, %v2790
      %v2847 = vpack.c.b16 %v2795, %v2791
      %v2848 = vpack.c.b16 %v2796, %v2792
      %v2849 = vpack.c.b16 %v2801, %v2797
      %v2850 = vpack.c.b16 %v2802, %v2798
      %v2851 = vpack.c.b16 %v2803, %v2799
      %v2852 = vpack.c.b16 %v2804, %v2800
      %v2853 = vpack.c.b16 %v2809, %v2805
      %v2854 = vpack.c.b16 %v2810, %v2806
      %v2855 = vpack.c.b16 %v2811, %v2807
      %v2856 = vpack.c.b16 %v2812, %v2808
      %v2857 = vpack.c.b16 %v2817, %v2813
      %v2858 = vpack.c.b16 %v2818, %v2814
      %v2859 = vpack.c.b16 %v2819, %v2815
      %v2860 = vpack.c.b16 %v2820, %v2816
      %v2861 = vpack.c.b16 %v2825, %v2821
      %v2862 = vpack.c.b16 %v2826, %v2822
      %v2863 = vpack.c.b16 %v2827, %v2823
      %v2864 = vpack.c.b16 %v2828, %v2824
      %v2865 = vpack.c.b16 %v2833, %v2829
      %v2866 = vpack.c.b16 %v2834, %v2830
      %v2867 = vpack.c.b16 %v2835, %v2831
      %v2868 = vpack.c.b16 %v2836, %v2832
      %v2965 = vunpack.c.l.b16 %v2677
      %v2966 = vunpack.c.l.b16 %v2678
      %v2967 = vunpack.c.l.b16 %v2679
      %v2968 = vunpack.c.l.b16 %v2680
      %v2969 = vunpack.c.l.b16 %v2681
      %v2970 = vunpack.c.l.b16 %v2682
      %v2971 = vunpack.c.l.b16 %v2683
      %v2972 = vunpack.c.l.b16 %v2684
      %v2973 = vunpack.c.l.b16 %v2685
      %v2974 = vunpack.c.l.b16 %v2686
      %v2975 = vunpack.c.l.b16 %v2687
      %v2976 = vunpack.c.l.b16 %v2688
      %v2977 = vunpack.c.l.b16 %v2689
      %v2978 = vunpack.c.l.b16 %v2690
      %v2979 = vunpack.c.l.b16 %v2691
      %v2980 = vunpack.c.l.b16 %v2692
      %v2981 = vunpack.c.l.b16 %v2693
      %v2982 = vunpack.c.l.b16 %v2694
      %v2983 = vunpack.c.l.b16 %v2695
      %v2984 = vunpack.c.l.b16 %v2696
      %v2985 = vunpack.c.l.b16 %v2697
      %v2986 = vunpack.c.l.b16 %v2698
      %v2987 = vunpack.c.l.b16 %v2699
      %v2988 = vunpack.c.l.b16 %v2700
      %v2989 = vunpack.c.l.b16 %v2701
      %v2990 = vunpack.c.l.b16 %v2702
      %v2991 = vunpack.c.l.b16 %v2703
      %v2992 = vunpack.c.l.b16 %v2704
      %v2993 = vunpack.c.l.b16 %v2705
      %v2994 = vunpack.c.l.b16 %v2706
      %v2995 = vunpack.c.l.b16 %v2707
      %v2996 = vunpack.c.l.b16 %v2708
      %v2997 = vunpack.c.l.b16 %v2709
      %v2998 = vunpack.c.l.b16 %v2710
      %v2999 = vunpack.c.l.b16 %v2711
      %v3000 = vunpack.c.l.b16 %v2712
      %v3001 = vunpack.c.l.b16 %v2713
      %v3002 = vunpack.c.l.b16 %v2714
      %v3003 = vunpack.c.l.b16 %v2715
      %v3004 = vunpack.c.l.b16 %v2716
      %v3005 = vunpack.c.l.b16 %v2717
      %v3006 = vunpack.c.l.b16 %v2718
      %v3007 = vunpack.c.l.b16 %v2719
      %v3008 = vunpack.c.l.b16 %v2720
      %v3009 = vunpack.c.l.b16 %v2721
      %v3010 = vunpack.c.l.b16 %v2722
      %v3011 = vunpack.c.l.b16 %v2723
      %v3012 = vunpack.c.l.b16 %v2724
      %v3013 = vunpack.c.l.b16 %v2725
      %v3014 = vunpack.c.l.b16 %v2726
      %v3015 = vunpack.c.l.b16 %v2727
      %v3016 = vunpack.c.l.b16 %v2728
      %v3017 = vunpack.c.l.b16 %v2729
      %v3018 = vunpack.c.l.b16 %v2730
      %v3019 = vunpack.c.l.b16 %v2731
      %v3020 = vunpack.c.l.b16 %v2732
      %v3021 = vunpack.c.l.b16 %v2733
      %v3022 = vunpack.c.l.b16 %v2734
      %v3023 = vunpack.c.l.b16 %v2735
      %v3024 = vunpack.c.l.b16 %v2736
      %v3025 = vunpack.c.l.b16 %v2737
      %v3026 = vunpack.c.l.b16 %v2738
      %v3027 = vunpack.c.l.b16 %v2739
      %v3028 = vunpack.c.l.b16 %v2740
      %v3029 = vpack.c.b16 %v2966, %v2965
      %v3030 = vpack.c.b16 %v2968, %v2967
      %v3031 = vpack.c.b16 %v2970, %v2969
      %v3032 = vpack.c.b16 %v2972, %v2971
      %v3033 = vpack.c.b16 %v2974, %v2973
      %v3034 = vpack.c.b16 %v2976, %v2975
      %v3035 = vpack.c.b16 %v2978, %v2977
      %v3036 = vpack.c.b16 %v2980, %v2979
      %v3037 = vpack.c.b16 %v2982, %v2981
      %v3038 = vpack.c.b16 %v2984, %v2983
      %v3039 = vpack.c.b16 %v2986, %v2985
      %v3040 = vpack.c.b16 %v2988, %v2987
      %v3041 = vpack.c.b16 %v2990, %v2989
      %v3042 = vpack.c.b16 %v2992, %v2991
      %v3043 = vpack.c.b16 %v2994, %v2993
      %v3044 = vpack.c.b16 %v2996, %v2995
      %v3045 = vpack.c.b16 %v2998, %v2997
      %v3046 = vpack.c.b16 %v3000, %v2999
      %v3047 = vpack.c.b16 %v3002, %v3001
      %v3048 = vpack.c.b16 %v3004, %v3003
      %v3049 = vpack.c.b16 %v3006, %v3005
      %v3050 = vpack.c.b16 %v3008, %v3007
      %v3051 = vpack.c.b16 %v3010, %v3009
      %v3052 = vpack.c.b16 %v3012, %v3011
      %v3053 = vpack.c.b16 %v3014, %v3013
      %v3054 = vpack.c.b16 %v3016, %v3015
      %v3055 = vpack.c.b16 %v3018, %v3017
      %v3056 = vpack.c.b16 %v3020, %v3019
      %v3057 = vpack.c.b16 %v3022, %v3021
      %v3058 = vpack.c.b16 %v3024, %v3023
      %v3059 = vpack.c.b16 %v3026, %v3025
      %v3060 = vpack.c.b16 %v3028, %v3027
      %3093 = vmatpush.bf16.msra.mxu0 %v3036
      %3094 = vmatpush.bf16.msra.mxu0 %v3035
      %3095 = vmatpush.bf16.msra.mxu0 %v3034
      %3096 = vmatpush.bf16.msra.mxu0 %v3033
      %3097 = vmatpush.bf16.msra.mxu0 %v3032
      %3098 = vmatpush.bf16.msra.mxu0 %v3031
      %3099 = vmatpush.bf16.msra.mxu0 %v3030
      %3100 = vmatpush.bf16.msra.mxu0 %v3029
      %3101 = vmatmul.bf16.gmra.mxu0 %v2837
      %v3102 = vpop.f32.mrf.mxu0
      %v3103 = vadd.f32 0.0, %v3102
      %v3104 = vpop.f32.mrf.mxu0
      %v3105 = vadd.f32 0.0, %v3104
      %3106 = vmatmul.bf16.gmra.mxu0 %v2841
      %v3107 = vpop.f32.mrf.mxu0
      %v3108 = vadd.f32 0.0, %v3107
      %v3109 = vpop.f32.mrf.mxu0
      %v3110 = vadd.f32 0.0, %v3109
      %3111 = vmatmul.bf16.gmra.mxu0 %v2845
      %v3112 = vpop.f32.mrf.mxu0
      %v3113 = vadd.f32 0.0, %v3112
      %v3114 = vpop.f32.mrf.mxu0
      %v3115 = vadd.f32 0.0, %v3114
      %3116 = vmatmul.bf16.gmra.mxu0 %v2849
      %v3117 = vpop.f32.mrf.mxu0
      %v3118 = vadd.f32 0.0, %v3117
      %v3119 = vpop.f32.mrf.mxu0
      %v3120 = vadd.f32 0.0, %v3119
      %3121 = vmatmul.bf16.gmra.mxu0 %v2853
      %v3122 = vpop.f32.mrf.mxu0
      %v3123 = vadd.f32 0.0, %v3122
      %v3124 = vpop.f32.mrf.mxu0
      %v3125 = vadd.f32 0.0, %v3124
      %3126 = vmatmul.bf16.gmra.mxu0 %v2857
      %v3127 = vpop.f32.mrf.mxu0
      %v3128 = vadd.f32 0.0, %v3127
      %v3129 = vpop.f32.mrf.mxu0
      %v3130 = vadd.f32 0.0, %v3129
      %3131 = vmatmul.bf16.gmra.mxu0 %v2861
      %v3132 = vpop.f32.mrf.mxu0
      %v3133 = vadd.f32 0.0, %v3132
      %v3134 = vpop.f32.mrf.mxu0
      %v3135 = vadd.f32 0.0, %v3134
      %3136 = vmatmul.bf16.gmra.mxu0 %v2865
      %v3137 = vpop.f32.mrf.mxu0
      %v3138 = vadd.f32 0.0, %v3137
      %v3139 = vpop.f32.mrf.mxu0
      %v3140 = vadd.f32 0.0, %v3139
      %3141 = vdwg.mxu0
      %3142 = vmatpush.bf16.msra.mxu0 %v3044
      %3143 = vmatpush.bf16.msra.mxu0 %v3043
      %3144 = vmatpush.bf16.msra.mxu0 %v3042
      %3145 = vmatpush.bf16.msra.mxu0 %v3041
      %3146 = vmatpush.bf16.msra.mxu0 %v3040
      %3147 = vmatpush.bf16.msra.mxu0 %v3039
      %3148 = vmatpush.bf16.msra.mxu0 %v3038
      %3149 = vmatpush.bf16.msra.mxu0 %v3037
      %3150 = vmatmul.bf16.gmra.mxu0 %v2838
      %v3151 = vpop.f32.mrf.mxu0
      %v3152 = vadd.f32 %v3103, %v3151
      %v3153 = vpop.f32.mrf.mxu0
      %v3154 = vadd.f32 %v3105, %v3153
      %3155 = vmatmul.bf16.gmra.mxu0 %v2842
      %v3156 = vpop.f32.mrf.mxu0
      %v3157 = vadd.f32 %v3108, %v3156
      %v3158 = vpop.f32.mrf.mxu0
      %v3159 = vadd.f32 %v3110, %v3158
      %3160 = vmatmul.bf16.gmra.mxu0 %v2846
      %v3161 = vpop.f32.mrf.mxu0
      %v3162 = vadd.f32 %v3113, %v3161
      %v3163 = vpop.f32.mrf.mxu0
      %v3164 = vadd.f32 %v3115, %v3163
      %3165 = vmatmul.bf16.gmra.mxu0 %v2850
      %v3166 = vpop.f32.mrf.mxu0
      %v3167 = vadd.f32 %v3118, %v3166
      %v3168 = vpop.f32.mrf.mxu0
      %v3169 = vadd.f32 %v3120, %v3168
      %3170 = vmatmul.bf16.gmra.mxu0 %v2854
      %v3171 = vpop.f32.mrf.mxu0
      %v3172 = vadd.f32 %v3123, %v3171
      %v3173 = vpop.f32.mrf.mxu0
      %v3174 = vadd.f32 %v3125, %v3173
      %3175 = vmatmul.bf16.gmra.mxu0 %v2858
      %v3176 = vpop.f32.mrf.mxu0
      %v3177 = vadd.f32 %v3128, %v3176
      %v3178 = vpop.f32.mrf.mxu0
      %v3179 = vadd.f32 %v3130, %v3178
      %3180 = vmatmul.bf16.gmra.mxu0 %v2862
      %v3181 = vpop.f32.mrf.mxu0
      %v3182 = vadd.f32 %v3133, %v3181
      %v3183 = vpop.f32.mrf.mxu0
      %v3184 = vadd.f32 %v3135, %v3183
      %3185 = vmatmul.bf16.gmra.mxu0 %v2866
      %v3186 = vpop.f32.mrf.mxu0
      %v3187 = vadd.f32 %v3138, %v3186
      %v3188 = vpop.f32.mrf.mxu0
      %v3189 = vadd.f32 %v3140, %v3188
      %3190 = vdwg.mxu0
      %3191 = vmatpush.bf16.msra.mxu0 %v3052
      %3192 = vmatpush.bf16.msra.mxu0 %v3051
      %3193 = vmatpush.bf16.msra.mxu0 %v3050
      %3194 = vmatpush.bf16.msra.mxu0 %v3049
      %3195 = vmatpush.bf16.msra.mxu0 %v3048
      %3196 = vmatpush.bf16.msra.mxu0 %v3047
      %3197 = vmatpush.bf16.msra.mxu0 %v3046
      %3198 = vmatpush.bf16.msra.mxu0 %v3045
      %3199 = vmatmul.bf16.gmra.mxu0 %v2839
      %v3200 = vpop.f32.mrf.mxu0
      %v3201 = vadd.f32 %v3152, %v3200
      %v3202 = vpop.f32.mrf.mxu0
      %v3203 = vadd.f32 %v3154, %v3202
      %3204 = vmatmul.bf16.gmra.mxu0 %v2843
      %v3205 = vpop.f32.mrf.mxu0
      %v3206 = vadd.f32 %v3157, %v3205
      %v3207 = vpop.f32.mrf.mxu0
      %v3208 = vadd.f32 %v3159, %v3207
      %3209 = vmatmul.bf16.gmra.mxu0 %v2847
      %v3210 = vpop.f32.mrf.mxu0
      %v3211 = vadd.f32 %v3162, %v3210
      %v3212 = vpop.f32.mrf.mxu0
      %v3213 = vadd.f32 %v3164, %v3212
      %3214 = vmatmul.bf16.gmra.mxu0 %v2851
      %v3215 = vpop.f32.mrf.mxu0
      %v3216 = vadd.f32 %v3167, %v3215
      %v3217 = vpop.f32.mrf.mxu0
      %v3218 = vadd.f32 %v3169, %v3217
      %3219 = vmatmul.bf16.gmra.mxu0 %v2855
      %v3220 = vpop.f32.mrf.mxu0
      %v3221 = vadd.f32 %v3172, %v3220
      %v3222 = vpop.f32.mrf.mxu0
      %v3223 = vadd.f32 %v3174, %v3222
      %3224 = vmatmul.bf16.gmra.mxu0 %v2859
      %v3225 = vpop.f32.mrf.mxu0
      %v3226 = vadd.f32 %v3177, %v3225
      %v3227 = vpop.f32.mrf.mxu0
      %v3228 = vadd.f32 %v3179, %v3227
      %3229 = vmatmul.bf16.gmra.mxu0 %v2863
      %v3230 = vpop.f32.mrf.mxu0
      %v3231 = vadd.f32 %v3182, %v3230
      %v3232 = vpop.f32.mrf.mxu0
      %v3233 = vadd.f32 %v3184, %v3232
      %3234 = vmatmul.bf16.gmra.mxu0 %v2867
      %v3235 = vpop.f32.mrf.mxu0
      %v3236 = vadd.f32 %v3187, %v3235
      %v3237 = vpop.f32.mrf.mxu0
      %v3238 = vadd.f32 %v3189, %v3237
      %3239 = vdwg.mxu0
      %3240 = vmatpush.bf16.msra.mxu0 %v3060
      %3241 = vmatpush.bf16.msra.mxu0 %v3059
      %3242 = vmatpush.bf16.msra.mxu0 %v3058
      %3243 = vmatpush.bf16.msra.mxu0 %v3057
      %3244 = vmatpush.bf16.msra.mxu0 %v3056
      %3245 = vmatpush.bf16.msra.mxu0 %v3055
      %3246 = vmatpush.bf16.msra.mxu0 %v3054
      %3247 = vmatpush.bf16.msra.mxu0 %v3053
      %3248 = vmatmul.bf16.gmra.mxu0 %v2840
      %v3249 = vpop.f32.mrf.mxu0
      %v3250 = vadd.f32 %v3201, %v3249
      %v3251 = vpop.f32.mrf.mxu0
      %v3252 = vadd.f32 %v3203, %v3251
      %3253 = vmatmul.bf16.gmra.mxu0 %v2844
      %v3254 = vpop.f32.mrf.mxu0
      %v3255 = vadd.f32 %v3206, %v3254
      %v3256 = vpop.f32.mrf.mxu0
      %v3257 = vadd.f32 %v3208, %v3256
      %3258 = vmatmul.bf16.gmra.mxu0 %v2848
      %v3259 = vpop.f32.mrf.mxu0
      %v3260 = vadd.f32 %v3211, %v3259
      %v3261 = vpop.f32.mrf.mxu0
      %v3262 = vadd.f32 %v3213, %v3261
      %3263 = vmatmul.bf16.gmra.mxu0 %v2852
      %v3264 = vpop.f32.mrf.mxu0
      %v3265 = vadd.f32 %v3216, %v3264
      %v3266 = vpop.f32.mrf.mxu0
      %v3267 = vadd.f32 %v3218, %v3266
      %3268 = vmatmul.bf16.gmra.mxu0 %v2856
      %v3269 = vpop.f32.mrf.mxu0
      %v3270 = vadd.f32 %v3221, %v3269
      %v3271 = vpop.f32.mrf.mxu0
      %v3272 = vadd.f32 %v3223, %v3271
      %3273 = vmatmul.bf16.gmra.mxu0 %v2860
      %v3274 = vpop.f32.mrf.mxu0
      %v3275 = vadd.f32 %v3226, %v3274
      %v3276 = vpop.f32.mrf.mxu0
      %v3277 = vadd.f32 %v3228, %v3276
      %3278 = vmatmul.bf16.gmra.mxu0 %v2864
      %v3279 = vpop.f32.mrf.mxu0
      %v3280 = vadd.f32 %v3231, %v3279
      %v3281 = vpop.f32.mrf.mxu0
      %v3282 = vadd.f32 %v3233, %v3281
      %3283 = vmatmul.bf16.gmra.mxu0 %v2868
      %v3284 = vpop.f32.mrf.mxu0
      %v3285 = vadd.f32 %v3236, %v3284
      %v3286 = vpop.f32.mrf.mxu0
      %v3287 = vadd.f32 %v3238, %v3286
      %3288 = vdwg.mxu0
      %v3289 = vadd.f32 %v2624, %v3250
      %v3290 = vadd.f32 %v2625, %v3252
      %v3291 = vadd.f32 %v2626, %v3255
      %v3292 = vadd.f32 %v2627, %v3257
      %v3293 = vadd.f32 %v2628, %v3260
      %v3294 = vadd.f32 %v2629, %v3262
      %v3295 = vadd.f32 %v2630, %v3265
      %v3296 = vadd.f32 %v2631, %v3267
      %v3297 = vadd.f32 %v2632, %v3270
      %v3298 = vadd.f32 %v2633, %v3272
      %v3299 = vadd.f32 %v2634, %v3275
      %v3300 = vadd.f32 %v2635, %v3277
      %v3301 = vadd.f32 %v2636, %v3280
      %v3302 = vadd.f32 %v2637, %v3282
      %v3303 = vadd.f32 %v2638, %v3285
      %v3304 = vadd.f32 %v2639, %v3287
      %v3305 = vld [vmem:[%s2643] sm:$0xff]
      %v3306 = vld [vmem:[%s2643 + $0x8] sm:$0xff]
      %v3307 = vld [vmem:[%s2643 + $0x10] sm:$0xff]
      %v3308 = vld [vmem:[%s2643 + $0x18] sm:$0xff]
      %v3309 = vld [vmem:[%s2643 + $0x20] sm:$0x11]
      %v3310 = vld [vmem:[%s2643 + $0x28] sm:$0x11]
      %v3311 = vld [vmem:[%s2643 + $0x30] sm:$0xff]
      %v3312 = vld [vmem:[%s2643 + $0x38] sm:$0xff]
      %v3313 = vld [vmem:[%s2643 + $0x40] sm:$0xff]
      %v3314 = vld [vmem:[%s2643 + $0x48] sm:$0xff]
      %v3315 = vld [vmem:[%s2643 + $0x50] sm:$0x11]
      %v3316 = vld [vmem:[%s2643 + $0x58] sm:$0x11]
      %v3317 = vld [vmem:[%s2643 + $0x60] sm:$0xff]
      %v3318 = vld [vmem:[%s2643 + $0x68] sm:$0xff]
      %v3319 = vld [vmem:[%s2643 + $0x70] sm:$0xff]
      %v3320 = vld [vmem:[%s2643 + $0x78] sm:$0xff]
      %v3321 = vld [vmem:[%s2643 + $0x80] sm:$0x11]
      %v3322 = vld [vmem:[%s2643 + $0x88] sm:$0x11]
      %v3323 = vld [vmem:[%s2643 + $0x90] sm:$0xff]
      %v3324 = vld [vmem:[%s2643 + $0x98] sm:$0xff]
      %v3325 = vld [vmem:[%s2643 + $0xa0] sm:$0xff]
      %v3326 = vld [vmem:[%s2643 + $0xa8] sm:$0xff]
      %v3327 = vld [vmem:[%s2643 + $0xb0] sm:$0x11]
      %v3328 = vld [vmem:[%s2643 + $0xb8] sm:$0x11]
      %v3329 = vld [vmem:[%s2643 + $0xc0] sm:$0xff]
      %v3330 = vld [vmem:[%s2643 + $0xc8] sm:$0xff]
      %v3331 = vld [vmem:[%s2643 + $0xd0] sm:$0xff]
      %v3332 = vld [vmem:[%s2643 + $0xd8] sm:$0xff]
      %v3333 = vld [vmem:[%s2643 + $0xe0] sm:$0x11]
      %v3334 = vld [vmem:[%s2643 + $0xe8] sm:$0x11]
      %v3335 = vld [vmem:[%s2643 + $0xf0] sm:$0xff]
      %v3336 = vld [vmem:[%s2643 + $0xf8] sm:$0xff]
      %v3337 = vld [vmem:[%s2643 + $0x100] sm:$0xff]
      %v3338 = vld [vmem:[%s2643 + $0x108] sm:$0xff]
      %v3339 = vld [vmem:[%s2643 + $0x110] sm:$0x11]
      %v3340 = vld [vmem:[%s2643 + $0x118] sm:$0x11]
      %v3341 = vld [vmem:[%s2643 + $0x120] sm:$0xff]
      %v3342 = vld [vmem:[%s2643 + $0x128] sm:$0xff]
      %v3343 = vld [vmem:[%s2643 + $0x130] sm:$0xff]
      %v3344 = vld [vmem:[%s2643 + $0x138] sm:$0xff]
      %v3345 = vld [vmem:[%s2643 + $0x140] sm:$0x11]
      %v3346 = vld [vmem:[%s2643 + $0x148] sm:$0x11]
      %v3347 = vld [vmem:[%s2643 + $0x150] sm:$0xff]
      %v3348 = vld [vmem:[%s2643 + $0x158] sm:$0xff]
      %v3349 = vld [vmem:[%s2643 + $0x160] sm:$0xff]
      %v3350 = vld [vmem:[%s2643 + $0x168] sm:$0xff]
      %v3351 = vld [vmem:[%s2643 + $0x170] sm:$0x11]
      %v3352 = vld [vmem:[%s2643 + $0x178] sm:$0x11]
      %v3354 = vshrl.u32 %v3305, 16
      %v3356 = vrot.slane %v3354, 4
      %v3357 = vshll.u32 %v3305, 16
      %v3359 = vrot.slane %v3357, 5
      %v3360 = vor.u32 %v3356, %v3359
      %v3361 = vrot.slane %v3360, 4
      %v3363 = vshll.u32 %v3307, 16
      %v3365 = vrot.slane %v3363, 5
      %v3366 = vsel %vm366, %v3361, %v3365
      %v3368 = vshrl.u32 %v3306, 16
      %v3370 = vrot.slane %v3368, 4
      %v3371 = vshll.u32 %v3306, 16
      %v3373 = vrot.slane %v3371, 5
      %v3374 = vor.u32 %v3370, %v3373
      %v3375 = vrot.slane %v3374, 4
      %v3377 = vshll.u32 %v3308, 16
      %v3379 = vrot.slane %v3377, 5
      %v3380 = vsel %vm366, %v3375, %v3379
      %v3381 = vshrl.u32 %v3307, 16
      %v3383 = vrot.slane %v3381, 4
      %v3384 = vor.u32 %v3383, %v3365
      %v3385 = vrot.slane %v3384, 4
      %v3387 = vshll.u32 %v3309, 16
      %v3389 = vrot.slane %v3387, 5
      %v3390 = vsel %vm366, %v3385, %v3389
      %v3391 = vshrl.u32 %v3308, 16
      %v3393 = vrot.slane %v3391, 4
      %v3394 = vor.u32 %v3393, %v3379
      %v3395 = vrot.slane %v3394, 4
      %v3397 = vshll.u32 %v3310, 16
      %v3399 = vrot.slane %v3397, 5
      %v3400 = vsel %vm366, %v3395, %v3399
      %v3402 = vshrl.u32 %v3311, 16
      %v3404 = vrot.slane %v3402, 4
      %v3405 = vshll.u32 %v3311, 16
      %v3407 = vrot.slane %v3405, 5
      %v3408 = vor.u32 %v3404, %v3407
      %v3409 = vrot.slane %v3408, 4
      %v3411 = vshll.u32 %v3313, 16
      %v3413 = vrot.slane %v3411, 5
      %v3414 = vsel %vm366, %v3409, %v3413
      %v3416 = vshrl.u32 %v3312, 16
      %v3418 = vrot.slane %v3416, 4
      %v3419 = vshll.u32 %v3312, 16
      %v3421 = vrot.slane %v3419, 5
      %v3422 = vor.u32 %v3418, %v3421
      %v3423 = vrot.slane %v3422, 4
      %v3425 = vshll.u32 %v3314, 16
      %v3427 = vrot.slane %v3425, 5
      %v3428 = vsel %vm366, %v3423, %v3427
      %v3429 = vshrl.u32 %v3313, 16
      %v3431 = vrot.slane %v3429, 4
      %v3432 = vor.u32 %v3431, %v3413
      %v3433 = vrot.slane %v3432, 4
      %v3435 = vshll.u32 %v3315, 16
      %v3437 = vrot.slane %v3435, 5
      %v3438 = vsel %vm366, %v3433, %v3437
      %v3439 = vshrl.u32 %v3314, 16
      %v3441 = vrot.slane %v3439, 4
      %v3442 = vor.u32 %v3441, %v3427
      %v3443 = vrot.slane %v3442, 4
      %v3445 = vshll.u32 %v3316, 16
      %v3447 = vrot.slane %v3445, 5
      %v3448 = vsel %vm366, %v3443, %v3447
      %v3450 = vshrl.u32 %v3317, 16
      %v3452 = vrot.slane %v3450, 4
      %v3453 = vshll.u32 %v3317, 16
      %v3455 = vrot.slane %v3453, 5
      %v3456 = vor.u32 %v3452, %v3455
      %v3457 = vrot.slane %v3456, 4
      %v3459 = vshll.u32 %v3319, 16
      %v3461 = vrot.slane %v3459, 5
      %v3462 = vsel %vm366, %v3457, %v3461
      %v3464 = vshrl.u32 %v3318, 16
      %v3466 = vrot.slane %v3464, 4
      %v3467 = vshll.u32 %v3318, 16
      %v3469 = vrot.slane %v3467, 5
      %v3470 = vor.u32 %v3466, %v3469
      %v3471 = vrot.slane %v3470, 4
      %v3473 = vshll.u32 %v3320, 16
      %v3475 = vrot.slane %v3473, 5
      %v3476 = vsel %vm366, %v3471, %v3475
      %v3477 = vshrl.u32 %v3319, 16
      %v3479 = vrot.slane %v3477, 4
      %v3480 = vor.u32 %v3479, %v3461
      %v3481 = vrot.slane %v3480, 4
      %v3483 = vshll.u32 %v3321, 16
      %v3485 = vrot.slane %v3483, 5
      %v3486 = vsel %vm366, %v3481, %v3485
      %v3487 = vshrl.u32 %v3320, 16
      %v3489 = vrot.slane %v3487, 4
      %v3490 = vor.u32 %v3489, %v3475
      %v3491 = vrot.slane %v3490, 4
      %v3493 = vshll.u32 %v3322, 16
      %v3495 = vrot.slane %v3493, 5
      %v3496 = vsel %vm366, %v3491, %v3495
      %v3498 = vshrl.u32 %v3323, 16
      %v3500 = vrot.slane %v3498, 4
      %v3501 = vshll.u32 %v3323, 16
      %v3503 = vrot.slane %v3501, 5
      %v3504 = vor.u32 %v3500, %v3503
      %v3505 = vrot.slane %v3504, 4
      %v3507 = vshll.u32 %v3325, 16
      %v3509 = vrot.slane %v3507, 5
      %v3510 = vsel %vm366, %v3505, %v3509
      %v3512 = vshrl.u32 %v3324, 16
      %v3514 = vrot.slane %v3512, 4
      %v3515 = vshll.u32 %v3324, 16
      %v3517 = vrot.slane %v3515, 5
      %v3518 = vor.u32 %v3514, %v3517
      %v3519 = vrot.slane %v3518, 4
      %v3521 = vshll.u32 %v3326, 16
      %v3523 = vrot.slane %v3521, 5
      %v3524 = vsel %vm366, %v3519, %v3523
      %v3525 = vshrl.u32 %v3325, 16
      %v3527 = vrot.slane %v3525, 4
      %v3528 = vor.u32 %v3527, %v3509
      %v3529 = vrot.slane %v3528, 4
      %v3531 = vshll.u32 %v3327, 16
      %v3533 = vrot.slane %v3531, 5
      %v3534 = vsel %vm366, %v3529, %v3533
      %v3535 = vshrl.u32 %v3326, 16
      %v3537 = vrot.slane %v3535, 4
      %v3538 = vor.u32 %v3537, %v3523
      %v3539 = vrot.slane %v3538, 4
      %v3541 = vshll.u32 %v3328, 16
      %v3543 = vrot.slane %v3541, 5
      %v3544 = vsel %vm366, %v3539, %v3543
      %v3546 = vshrl.u32 %v3329, 16
      %v3548 = vrot.slane %v3546, 4
      %v3549 = vshll.u32 %v3329, 16
      %v3551 = vrot.slane %v3549, 5
      %v3552 = vor.u32 %v3548, %v3551
      %v3553 = vrot.slane %v3552, 4
      %v3555 = vshll.u32 %v3331, 16
      %v3557 = vrot.slane %v3555, 5
      %v3558 = vsel %vm366, %v3553, %v3557
      %v3560 = vshrl.u32 %v3330, 16
      %v3562 = vrot.slane %v3560, 4
      %v3563 = vshll.u32 %v3330, 16
      %v3565 = vrot.slane %v3563, 5
      %v3566 = vor.u32 %v3562, %v3565
      %v3567 = vrot.slane %v3566, 4
      %v3569 = vshll.u32 %v3332, 16
      %v3571 = vrot.slane %v3569, 5
      %v3572 = vsel %vm366, %v3567, %v3571
      %v3573 = vshrl.u32 %v3331, 16
      %v3575 = vrot.slane %v3573, 4
      %v3576 = vor.u32 %v3575, %v3557
      %v3577 = vrot.slane %v3576, 4
      %v3579 = vshll.u32 %v3333, 16
      %v3581 = vrot.slane %v3579, 5
      %v3582 = vsel %vm366, %v3577, %v3581
      %v3583 = vshrl.u32 %v3332, 16
      %v3585 = vrot.slane %v3583, 4
      %v3586 = vor.u32 %v3585, %v3571
      %v3587 = vrot.slane %v3586, 4
      %v3589 = vshll.u32 %v3334, 16
      %v3591 = vrot.slane %v3589, 5
      %v3592 = vsel %vm366, %v3587, %v3591
      %v3594 = vshrl.u32 %v3335, 16
      %v3596 = vrot.slane %v3594, 4
      %v3597 = vshll.u32 %v3335, 16
      %v3599 = vrot.slane %v3597, 5
      %v3600 = vor.u32 %v3596, %v3599
      %v3601 = vrot.slane %v3600, 4
      %v3603 = vshll.u32 %v3337, 16
      %v3605 = vrot.slane %v3603, 5
      %v3606 = vsel %vm366, %v3601, %v3605
      %v3608 = vshrl.u32 %v3336, 16
      %v3610 = vrot.slane %v3608, 4
      %v3611 = vshll.u32 %v3336, 16
      %v3613 = vrot.slane %v3611, 5
      %v3614 = vor.u32 %v3610, %v3613
      %v3615 = vrot.slane %v3614, 4
      %v3617 = vshll.u32 %v3338, 16
      %v3619 = vrot.slane %v3617, 5
      %v3620 = vsel %vm366, %v3615, %v3619
      %v3621 = vshrl.u32 %v3337, 16
      %v3623 = vrot.slane %v3621, 4
      %v3624 = vor.u32 %v3623, %v3605
      %v3625 = vrot.slane %v3624, 4
      %v3627 = vshll.u32 %v3339, 16
      %v3629 = vrot.slane %v3627, 5
      %v3630 = vsel %vm366, %v3625, %v3629
      %v3631 = vshrl.u32 %v3338, 16
      %v3633 = vrot.slane %v3631, 4
      %v3634 = vor.u32 %v3633, %v3619
      %v3635 = vrot.slane %v3634, 4
      %v3637 = vshll.u32 %v3340, 16
      %v3639 = vrot.slane %v3637, 5
      %v3640 = vsel %vm366, %v3635, %v3639
      %v3642 = vshrl.u32 %v3341, 16
      %v3644 = vrot.slane %v3642, 4
      %v3645 = vshll.u32 %v3341, 16
      %v3647 = vrot.slane %v3645, 5
      %v3648 = vor.u32 %v3644, %v3647
      %v3649 = vrot.slane %v3648, 4
      %v3651 = vshll.u32 %v3343, 16
      %v3653 = vrot.slane %v3651, 5
      %v3654 = vsel %vm366, %v3649, %v3653
      %v3656 = vshrl.u32 %v3342, 16
      %v3658 = vrot.slane %v3656, 4
      %v3659 = vshll.u32 %v3342, 16
      %v3661 = vrot.slane %v3659, 5
      %v3662 = vor.u32 %v3658, %v3661
      %v3663 = vrot.slane %v3662, 4
      %v3665 = vshll.u32 %v3344, 16
      %v3667 = vrot.slane %v3665, 5
      %v3668 = vsel %vm366, %v3663, %v3667
      %v3669 = vshrl.u32 %v3343, 16
      %v3671 = vrot.slane %v3669, 4
      %v3672 = vor.u32 %v3671, %v3653
      %v3673 = vrot.slane %v3672, 4
      %v3675 = vshll.u32 %v3345, 16
      %v3677 = vrot.slane %v3675, 5
      %v3678 = vsel %vm366, %v3673, %v3677
      %v3679 = vshrl.u32 %v3344, 16
      %v3681 = vrot.slane %v3679, 4
      %v3682 = vor.u32 %v3681, %v3667
      %v3683 = vrot.slane %v3682, 4
      %v3685 = vshll.u32 %v3346, 16
      %v3687 = vrot.slane %v3685, 5
      %v3688 = vsel %vm366, %v3683, %v3687
      %v3690 = vshrl.u32 %v3347, 16
      %v3692 = vrot.slane %v3690, 4
      %v3693 = vshll.u32 %v3347, 16
      %v3695 = vrot.slane %v3693, 5
      %v3696 = vor.u32 %v3692, %v3695
      %v3697 = vrot.slane %v3696, 4
      %v3699 = vshll.u32 %v3349, 16
      %v3701 = vrot.slane %v3699, 5
      %v3702 = vsel %vm366, %v3697, %v3701
      %v3704 = vshrl.u32 %v3348, 16
      %v3706 = vrot.slane %v3704, 4
      %v3707 = vshll.u32 %v3348, 16
      %v3709 = vrot.slane %v3707, 5
      %v3710 = vor.u32 %v3706, %v3709
      %v3711 = vrot.slane %v3710, 4
      %v3713 = vshll.u32 %v3350, 16
      %v3715 = vrot.slane %v3713, 5
      %v3716 = vsel %vm366, %v3711, %v3715
      %v3717 = vshrl.u32 %v3349, 16
      %v3719 = vrot.slane %v3717, 4
      %v3720 = vor.u32 %v3719, %v3701
      %v3721 = vrot.slane %v3720, 4
      %v3723 = vshll.u32 %v3351, 16
      %v3725 = vrot.slane %v3723, 5
      %v3726 = vsel %vm366, %v3721, %v3725
      %v3727 = vshrl.u32 %v3350, 16
      %v3729 = vrot.slane %v3727, 4
      %v3730 = vor.u32 %v3729, %v3715
      %v3731 = vrot.slane %v3730, 4
      %v3733 = vshll.u32 %v3352, 16
      %v3735 = vrot.slane %v3733, 5
      %v3736 = vsel %vm366, %v3731, %v3735
      %s3737 = scalar_lea.vmem %s1, 1024
      %v3738 = vld [vmem:[%s3737] sm:$0xf]
      %v3739 = vld [vmem:[%s3737 + $0x4] sm:$0xf]
      %v3740 = vld [vmem:[%s3737 + $0x8] sm:$0xf]
      %v3741 = vld [vmem:[%s3737 + $0xc] sm:$0xf]
      %v3742 = vld [vmem:[%s3737 + $0x10] sm:$0xf]
      %v3743 = vld [vmem:[%s3737 + $0x14] sm:$0xf]
      %v3744 = vld [vmem:[%s3737 + $0x18] sm:$0xf]
      %v3745 = vld [vmem:[%s3737 + $0x1c] sm:$0xf]
      %v3746 = vld [vmem:[%s3737 + $0x20] sm:$0xf]
      %v3747 = vld [vmem:[%s3737 + $0x24] sm:$0xf]
      %v3748 = vld [vmem:[%s3737 + $0x28] sm:$0xf]
      %v3749 = vld [vmem:[%s3737 + $0x2c] sm:$0xf]
      %v3750 = vld [vmem:[%s3737 + $0x30] sm:$0xf]
      %v3751 = vld [vmem:[%s3737 + $0x34] sm:$0xf]
      %v3752 = vld [vmem:[%s3737 + $0x38] sm:$0xf]
      %v3753 = vld [vmem:[%s3737 + $0x3c] sm:$0xf]
      %v3754 = vld [vmem:[%s3737 + $0x40] sm:$0xf]
      %v3755 = vld [vmem:[%s3737 + $0x44] sm:$0xf]
      %v3756 = vld [vmem:[%s3737 + $0x48] sm:$0xf]
      %v3757 = vld [vmem:[%s3737 + $0x4c] sm:$0xf]
      %v3758 = vld [vmem:[%s3737 + $0x50] sm:$0xf]
      %v3759 = vld [vmem:[%s3737 + $0x54] sm:$0xf]
      %v3760 = vld [vmem:[%s3737 + $0x58] sm:$0xf]
      %v3761 = vld [vmem:[%s3737 + $0x5c] sm:$0xf]
      %v3762 = vld [vmem:[%s3737 + $0x60] sm:$0xf]
      %v3763 = vld [vmem:[%s3737 + $0x64] sm:$0xf]
      %v3764 = vld [vmem:[%s3737 + $0x68] sm:$0xf]
      %v3765 = vld [vmem:[%s3737 + $0x6c] sm:$0xf]
      %v3766 = vld [vmem:[%s3737 + $0x70] sm:$0xf]
      %v3767 = vld [vmem:[%s3737 + $0x74] sm:$0xf]
      %v3768 = vld [vmem:[%s3737 + $0x78] sm:$0xf]
      %v3769 = vld [vmem:[%s3737 + $0x7c] sm:$0xf]
      %v3770 = vld [vmem:[%s3737 + $0x80] sm:$0xf]
      %v3771 = vld [vmem:[%s3737 + $0x84] sm:$0xf]
      %v3772 = vld [vmem:[%s3737 + $0x88] sm:$0xf]
      %v3773 = vld [vmem:[%s3737 + $0x8c] sm:$0xf]
      %v3774 = vld [vmem:[%s3737 + $0x90] sm:$0xf]
      %v3775 = vld [vmem:[%s3737 + $0x94] sm:$0xf]
      %v3776 = vld [vmem:[%s3737 + $0x98] sm:$0xf]
      %v3777 = vld [vmem:[%s3737 + $0x9c] sm:$0xf]
      %v3778 = vld [vmem:[%s3737 + $0xa0] sm:$0xf]
      %v3779 = vld [vmem:[%s3737 + $0xa4] sm:$0xf]
      %v3780 = vld [vmem:[%s3737 + $0xa8] sm:$0xf]
      %v3781 = vld [vmem:[%s3737 + $0xac] sm:$0xf]
      %v3782 = vld [vmem:[%s3737 + $0xb0] sm:$0xf]
      %v3783 = vld [vmem:[%s3737 + $0xb4] sm:$0xf]
      %v3784 = vld [vmem:[%s3737 + $0xb8] sm:$0xf]
      %v3785 = vld [vmem:[%s3737 + $0xbc] sm:$0xf]
      %v3786 = vld [vmem:[%s3737 + $0xc0] sm:$0xf]
      %v3787 = vld [vmem:[%s3737 + $0xc4] sm:$0xf]
      %v3788 = vld [vmem:[%s3737 + $0xc8] sm:$0xf]
      %v3789 = vld [vmem:[%s3737 + $0xcc] sm:$0xf]
      %v3790 = vld [vmem:[%s3737 + $0xd0] sm:$0xf]
      %v3791 = vld [vmem:[%s3737 + $0xd4] sm:$0xf]
      %v3792 = vld [vmem:[%s3737 + $0xd8] sm:$0xf]
      %v3793 = vld [vmem:[%s3737 + $0xdc] sm:$0xf]
      %v3794 = vld [vmem:[%s3737 + $0xe0] sm:$0xf]
      %v3795 = vld [vmem:[%s3737 + $0xe4] sm:$0xf]
      %v3796 = vld [vmem:[%s3737 + $0xe8] sm:$0xf]
      %v3797 = vld [vmem:[%s3737 + $0xec] sm:$0xf]
      %v3798 = vld [vmem:[%s3737 + $0xf0] sm:$0xf]
      %v3799 = vld [vmem:[%s3737 + $0xf4] sm:$0xf]
      %v3800 = vld [vmem:[%s3737 + $0xf8] sm:$0xf]
      %v3801 = vld [vmem:[%s3737 + $0xfc] sm:$0xf]
      %v3802 = vunpack.c.l.b16 %v3366
      %v3803 = vunpack.c.h.b16 %v3366
      %v3804 = vunpack.c.l.b16 %v3380
      %v3805 = vunpack.c.h.b16 %v3380
      %v3806 = vunpack.c.l.b16 %v3390
      %v3807 = vunpack.c.h.b16 %v3390
      %v3808 = vunpack.c.l.b16 %v3400
      %v3809 = vunpack.c.h.b16 %v3400
      %v3810 = vunpack.c.l.b16 %v3414
      %v3811 = vunpack.c.h.b16 %v3414
      %v3812 = vunpack.c.l.b16 %v3428
      %v3813 = vunpack.c.h.b16 %v3428
      %v3814 = vunpack.c.l.b16 %v3438
      %v3815 = vunpack.c.h.b16 %v3438
      %v3816 = vunpack.c.l.b16 %v3448
      %v3817 = vunpack.c.h.b16 %v3448
      %v3818 = vunpack.c.l.b16 %v3462
      %v3819 = vunpack.c.h.b16 %v3462
      %v3820 = vunpack.c.l.b16 %v3476
      %v3821 = vunpack.c.h.b16 %v3476
      %v3822 = vunpack.c.l.b16 %v3486
      %v3823 = vunpack.c.h.b16 %v3486
      %v3824 = vunpack.c.l.b16 %v3496
      %v3825 = vunpack.c.h.b16 %v3496
      %v3826 = vunpack.c.l.b16 %v3510
      %v3827 = vunpack.c.h.b16 %v3510
      %v3828 = vunpack.c.l.b16 %v3524
      %v3829 = vunpack.c.h.b16 %v3524
      %v3830 = vunpack.c.l.b16 %v3534
      %v3831 = vunpack.c.h.b16 %v3534
      %v3832 = vunpack.c.l.b16 %v3544
      %v3833 = vunpack.c.h.b16 %v3544
      %v3834 = vunpack.c.l.b16 %v3558
      %v3835 = vunpack.c.h.b16 %v3558
      %v3836 = vunpack.c.l.b16 %v3572
      %v3837 = vunpack.c.h.b16 %v3572
      %v3838 = vunpack.c.l.b16 %v3582
      %v3839 = vunpack.c.h.b16 %v3582
      %v3840 = vunpack.c.l.b16 %v3592
      %v3841 = vunpack.c.h.b16 %v3592
      %v3842 = vunpack.c.l.b16 %v3606
      %v3843 = vunpack.c.h.b16 %v3606
      %v3844 = vunpack.c.l.b16 %v3620
      %v3845 = vunpack.c.h.b16 %v3620
      %v3846 = vunpack.c.l.b16 %v3630
      %v3847 = vunpack.c.h.b16 %v3630
      %v3848 = vunpack.c.l.b16 %v3640
      %v3849 = vunpack.c.h.b16 %v3640
      %v3850 = vunpack.c.l.b16 %v3654
      %v3851 = vunpack.c.h.b16 %v3654
      %v3852 = vunpack.c.l.b16 %v3668
      %v3853 = vunpack.c.h.b16 %v3668
      %v3854 = vunpack.c.l.b16 %v3678
      %v3855 = vunpack.c.h.b16 %v3678
      %v3856 = vunpack.c.l.b16 %v3688
      %v3857 = vunpack.c.h.b16 %v3688
      %v3858 = vunpack.c.l.b16 %v3702
      %v3859 = vunpack.c.h.b16 %v3702
      %v3860 = vunpack.c.l.b16 %v3716
      %v3861 = vunpack.c.h.b16 %v3716
      %v3862 = vunpack.c.l.b16 %v3726
      %v3863 = vunpack.c.h.b16 %v3726
      %v3864 = vunpack.c.l.b16 %v3736
      %v3865 = vunpack.c.h.b16 %v3736
      %v3866 = vpack.c.b16 %v3806, %v3802
      %v3867 = vpack.c.b16 %v3807, %v3803
      %v3868 = vpack.c.b16 %v3808, %v3804
      %v3869 = vpack.c.b16 %v3809, %v3805
      %v3870 = vpack.c.b16 %v3814, %v3810
      %v3871 = vpack.c.b16 %v3815, %v3811
      %v3872 = vpack.c.b16 %v3816, %v3812
      %v3873 = vpack.c.b16 %v3817, %v3813
      %v3874 = vpack.c.b16 %v3822, %v3818
      %v3875 = vpack.c.b16 %v3823, %v3819
      %v3876 = vpack.c.b16 %v3824, %v3820
      %v3877 = vpack.c.b16 %v3825, %v3821
      %v3878 = vpack.c.b16 %v3830, %v3826
      %v3879 = vpack.c.b16 %v3831, %v3827
      %v3880 = vpack.c.b16 %v3832, %v3828
      %v3881 = vpack.c.b16 %v3833, %v3829
      %v3882 = vpack.c.b16 %v3838, %v3834
      %v3883 = vpack.c.b16 %v3839, %v3835
      %v3884 = vpack.c.b16 %v3840, %v3836
      %v3885 = vpack.c.b16 %v3841, %v3837
      %v3886 = vpack.c.b16 %v3846, %v3842
      %v3887 = vpack.c.b16 %v3847, %v3843
      %v3888 = vpack.c.b16 %v3848, %v3844
      %v3889 = vpack.c.b16 %v3849, %v3845
      %v3890 = vpack.c.b16 %v3854, %v3850
      %v3891 = vpack.c.b16 %v3855, %v3851
      %v3892 = vpack.c.b16 %v3856, %v3852
      %v3893 = vpack.c.b16 %v3857, %v3853
      %v3894 = vpack.c.b16 %v3862, %v3858
      %v3895 = vpack.c.b16 %v3863, %v3859
      %v3896 = vpack.c.b16 %v3864, %v3860
      %v3897 = vpack.c.b16 %v3865, %v3861
      %v3994 = vunpack.c.l.b16 %v3738
      %v3995 = vunpack.c.l.b16 %v3739
      %v3996 = vunpack.c.l.b16 %v3740
      %v3997 = vunpack.c.l.b16 %v3741
      %v3998 = vunpack.c.l.b16 %v3742
      %v3999 = vunpack.c.l.b16 %v3743
      %v4000 = vunpack.c.l.b16 %v3744
      %v4001 = vunpack.c.l.b16 %v3745
      %v4002 = vunpack.c.l.b16 %v3746
      %v4003 = vunpack.c.l.b16 %v3747
      %v4004 = vunpack.c.l.b16 %v3748
      %v4005 = vunpack.c.l.b16 %v3749
      %v4006 = vunpack.c.l.b16 %v3750
      %v4007 = vunpack.c.l.b16 %v3751
      %v4008 = vunpack.c.l.b16 %v3752
      %v4009 = vunpack.c.l.b16 %v3753
      %v4010 = vunpack.c.l.b16 %v3754
      %v4011 = vunpack.c.l.b16 %v3755
      %v4012 = vunpack.c.l.b16 %v3756
      %v4013 = vunpack.c.l.b16 %v3757
      %v4014 = vunpack.c.l.b16 %v3758
      %v4015 = vunpack.c.l.b16 %v3759
      %v4016 = vunpack.c.l.b16 %v3760
      %v4017 = vunpack.c.l.b16 %v3761
      %v4018 = vunpack.c.l.b16 %v3762
      %v4019 = vunpack.c.l.b16 %v3763
      %v4020 = vunpack.c.l.b16 %v3764
      %v4021 = vunpack.c.l.b16 %v3765
      %v4022 = vunpack.c.l.b16 %v3766
      %v4023 = vunpack.c.l.b16 %v3767
      %v4024 = vunpack.c.l.b16 %v3768
      %v4025 = vunpack.c.l.b16 %v3769
      %v4026 = vunpack.c.l.b16 %v3770
      %v4027 = vunpack.c.l.b16 %v3771
      %v4028 = vunpack.c.l.b16 %v3772
      %v4029 = vunpack.c.l.b16 %v3773
      %v4030 = vunpack.c.l.b16 %v3774
      %v4031 = vunpack.c.l.b16 %v3775
      %v4032 = vunpack.c.l.b16 %v3776
      %v4033 = vunpack.c.l.b16 %v3777
      %v4034 = vunpack.c.l.b16 %v3778
      %v4035 = vunpack.c.l.b16 %v3779
      %v4036 = vunpack.c.l.b16 %v3780
      %v4037 = vunpack.c.l.b16 %v3781
      %v4038 = vunpack.c.l.b16 %v3782
      %v4039 = vunpack.c.l.b16 %v3783
      %v4040 = vunpack.c.l.b16 %v3784
      %v4041 = vunpack.c.l.b16 %v3785
      %v4042 = vunpack.c.l.b16 %v3786
      %v4043 = vunpack.c.l.b16 %v3787
      %v4044 = vunpack.c.l.b16 %v3788
      %v4045 = vunpack.c.l.b16 %v3789
      %v4046 = vunpack.c.l.b16 %v3790
      %v4047 = vunpack.c.l.b16 %v3791
      %v4048 = vunpack.c.l.b16 %v3792
      %v4049 = vunpack.c.l.b16 %v3793
      %v4050 = vunpack.c.l.b16 %v3794
      %v4051 = vunpack.c.l.b16 %v3795
      %v4052 = vunpack.c.l.b16 %v3796
      %v4053 = vunpack.c.l.b16 %v3797
      %v4054 = vunpack.c.l.b16 %v3798
      %v4055 = vunpack.c.l.b16 %v3799
      %v4056 = vunpack.c.l.b16 %v3800
      %v4057 = vunpack.c.l.b16 %v3801
      %v4058 = vpack.c.b16 %v3995, %v3994
      %v4059 = vpack.c.b16 %v3997, %v3996
      %v4060 = vpack.c.b16 %v3999, %v3998
      %v4061 = vpack.c.b16 %v4001, %v4000
      %v4062 = vpack.c.b16 %v4003, %v4002
      %v4063 = vpack.c.b16 %v4005, %v4004
      %v4064 = vpack.c.b16 %v4007, %v4006
      %v4065 = vpack.c.b16 %v4009, %v4008
      %v4066 = vpack.c.b16 %v4011, %v4010
      %v4067 = vpack.c.b16 %v4013, %v4012
      %v4068 = vpack.c.b16 %v4015, %v4014
      %v4069 = vpack.c.b16 %v4017, %v4016
      %v4070 = vpack.c.b16 %v4019, %v4018
      %v4071 = vpack.c.b16 %v4021, %v4020
      %v4072 = vpack.c.b16 %v4023, %v4022
      %v4073 = vpack.c.b16 %v4025, %v4024
      %v4074 = vpack.c.b16 %v4027, %v4026
      %v4075 = vpack.c.b16 %v4029, %v4028
      %v4076 = vpack.c.b16 %v4031, %v4030
      %v4077 = vpack.c.b16 %v4033, %v4032
      %v4078 = vpack.c.b16 %v4035, %v4034
      %v4079 = vpack.c.b16 %v4037, %v4036
      %v4080 = vpack.c.b16 %v4039, %v4038
      %v4081 = vpack.c.b16 %v4041, %v4040
      %v4082 = vpack.c.b16 %v4043, %v4042
      %v4083 = vpack.c.b16 %v4045, %v4044
      %v4084 = vpack.c.b16 %v4047, %v4046
      %v4085 = vpack.c.b16 %v4049, %v4048
      %v4086 = vpack.c.b16 %v4051, %v4050
      %v4087 = vpack.c.b16 %v4053, %v4052
      %v4088 = vpack.c.b16 %v4055, %v4054
      %v4089 = vpack.c.b16 %v4057, %v4056
      %4122 = vmatpush.bf16.msra.mxu0 %v4065
      %4123 = vmatpush.bf16.msra.mxu0 %v4064
      %4124 = vmatpush.bf16.msra.mxu0 %v4063
      %4125 = vmatpush.bf16.msra.mxu0 %v4062
      %4126 = vmatpush.bf16.msra.mxu0 %v4061
      %4127 = vmatpush.bf16.msra.mxu0 %v4060
      %4128 = vmatpush.bf16.msra.mxu0 %v4059
      %4129 = vmatpush.bf16.msra.mxu0 %v4058
      %4130 = vmatmul.bf16.gmra.mxu0 %v3866
      %v4131 = vpop.f32.mrf.mxu0
      %v4132 = vadd.f32 0.0, %v4131
      %v4133 = vpop.f32.mrf.mxu0
      %v4134 = vadd.f32 0.0, %v4133
      %4135 = vmatmul.bf16.gmra.mxu0 %v3870
      %v4136 = vpop.f32.mrf.mxu0
      %v4137 = vadd.f32 0.0, %v4136
      %v4138 = vpop.f32.mrf.mxu0
      %v4139 = vadd.f32 0.0, %v4138
      %4140 = vmatmul.bf16.gmra.mxu0 %v3874
      %v4141 = vpop.f32.mrf.mxu0
      %v4142 = vadd.f32 0.0, %v4141
      %v4143 = vpop.f32.mrf.mxu0
      %v4144 = vadd.f32 0.0, %v4143
      %4145 = vmatmul.bf16.gmra.mxu0 %v3878
      %v4146 = vpop.f32.mrf.mxu0
      %v4147 = vadd.f32 0.0, %v4146
      %v4148 = vpop.f32.mrf.mxu0
      %v4149 = vadd.f32 0.0, %v4148
      %4150 = vmatmul.bf16.gmra.mxu0 %v3882
      %v4151 = vpop.f32.mrf.mxu0
      %v4152 = vadd.f32 0.0, %v4151
      %v4153 = vpop.f32.mrf.mxu0
      %v4154 = vadd.f32 0.0, %v4153
      %4155 = vmatmul.bf16.gmra.mxu0 %v3886
      %v4156 = vpop.f32.mrf.mxu0
      %v4157 = vadd.f32 0.0, %v4156
      %v4158 = vpop.f32.mrf.mxu0
      %v4159 = vadd.f32 0.0, %v4158
      %4160 = vmatmul.bf16.gmra.mxu0 %v3890
      %v4161 = vpop.f32.mrf.mxu0
      %v4162 = vadd.f32 0.0, %v4161
      %v4163 = vpop.f32.mrf.mxu0
      %v4164 = vadd.f32 0.0, %v4163
      %4165 = vmatmul.bf16.gmra.mxu0 %v3894
      %v4166 = vpop.f32.mrf.mxu0
      %v4167 = vadd.f32 0.0, %v4166
      %v4168 = vpop.f32.mrf.mxu0
      %v4169 = vadd.f32 0.0, %v4168
      %4170 = vdwg.mxu0
      %4171 = vmatpush.bf16.msra.mxu0 %v4073
      %4172 = vmatpush.bf16.msra.mxu0 %v4072
      %4173 = vmatpush.bf16.msra.mxu0 %v4071
      %4174 = vmatpush.bf16.msra.mxu0 %v4070
      %4175 = vmatpush.bf16.msra.mxu0 %v4069
      %4176 = vmatpush.bf16.msra.mxu0 %v4068
      %4177 = vmatpush.bf16.msra.mxu0 %v4067
      %4178 = vmatpush.bf16.msra.mxu0 %v4066
      %4179 = vmatmul.bf16.gmra.mxu0 %v3867
      %v4180 = vpop.f32.mrf.mxu0
      %v4181 = vadd.f32 %v4132, %v4180
      %v4182 = vpop.f32.mrf.mxu0
      %v4183 = vadd.f32 %v4134, %v4182
      %4184 = vmatmul.bf16.gmra.mxu0 %v3871
      %v4185 = vpop.f32.mrf.mxu0
      %v4186 = vadd.f32 %v4137, %v4185
      %v4187 = vpop.f32.mrf.mxu0
      %v4188 = vadd.f32 %v4139, %v4187
      %4189 = vmatmul.bf16.gmra.mxu0 %v3875
      %v4190 = vpop.f32.mrf.mxu0
      %v4191 = vadd.f32 %v4142, %v4190
      %v4192 = vpop.f32.mrf.mxu0
      %v4193 = vadd.f32 %v4144, %v4192
      %4194 = vmatmul.bf16.gmra.mxu0 %v3879
      %v4195 = vpop.f32.mrf.mxu0
      %v4196 = vadd.f32 %v4147, %v4195
      %v4197 = vpop.f32.mrf.mxu0
      %v4198 = vadd.f32 %v4149, %v4197
      %4199 = vmatmul.bf16.gmra.mxu0 %v3883
      %v4200 = vpop.f32.mrf.mxu0
      %v4201 = vadd.f32 %v4152, %v4200
      %v4202 = vpop.f32.mrf.mxu0
      %v4203 = vadd.f32 %v4154, %v4202
      %4204 = vmatmul.bf16.gmra.mxu0 %v3887
      %v4205 = vpop.f32.mrf.mxu0
      %v4206 = vadd.f32 %v4157, %v4205
      %v4207 = vpop.f32.mrf.mxu0
      %v4208 = vadd.f32 %v4159, %v4207
      %4209 = vmatmul.bf16.gmra.mxu0 %v3891
      %v4210 = vpop.f32.mrf.mxu0
      %v4211 = vadd.f32 %v4162, %v4210
      %v4212 = vpop.f32.mrf.mxu0
      %v4213 = vadd.f32 %v4164, %v4212
      %4214 = vmatmul.bf16.gmra.mxu0 %v3895
      %v4215 = vpop.f32.mrf.mxu0
      %v4216 = vadd.f32 %v4167, %v4215
      %v4217 = vpop.f32.mrf.mxu0
      %v4218 = vadd.f32 %v4169, %v4217
      %4219 = vdwg.mxu0
      %4220 = vmatpush.bf16.msra.mxu0 %v4081
      %4221 = vmatpush.bf16.msra.mxu0 %v4080
      %4222 = vmatpush.bf16.msra.mxu0 %v4079
      %4223 = vmatpush.bf16.msra.mxu0 %v4078
      %4224 = vmatpush.bf16.msra.mxu0 %v4077
      %4225 = vmatpush.bf16.msra.mxu0 %v4076
      %4226 = vmatpush.bf16.msra.mxu0 %v4075
      %4227 = vmatpush.bf16.msra.mxu0 %v4074
      %4228 = vmatmul.bf16.gmra.mxu0 %v3868
      %v4229 = vpop.f32.mrf.mxu0
      %v4230 = vadd.f32 %v4181, %v4229
      %v4231 = vpop.f32.mrf.mxu0
      %v4232 = vadd.f32 %v4183, %v4231
      %4233 = vmatmul.bf16.gmra.mxu0 %v3872
      %v4234 = vpop.f32.mrf.mxu0
      %v4235 = vadd.f32 %v4186, %v4234
      %v4236 = vpop.f32.mrf.mxu0
      %v4237 = vadd.f32 %v4188, %v4236
      %4238 = vmatmul.bf16.gmra.mxu0 %v3876
      %v4239 = vpop.f32.mrf.mxu0
      %v4240 = vadd.f32 %v4191, %v4239
      %v4241 = vpop.f32.mrf.mxu0
      %v4242 = vadd.f32 %v4193, %v4241
      %4243 = vmatmul.bf16.gmra.mxu0 %v3880
      %v4244 = vpop.f32.mrf.mxu0
      %v4245 = vadd.f32 %v4196, %v4244
      %v4246 = vpop.f32.mrf.mxu0
      %v4247 = vadd.f32 %v4198, %v4246
      %4248 = vmatmul.bf16.gmra.mxu0 %v3884
      %v4249 = vpop.f32.mrf.mxu0
      %v4250 = vadd.f32 %v4201, %v4249
      %v4251 = vpop.f32.mrf.mxu0
      %v4252 = vadd.f32 %v4203, %v4251
      %4253 = vmatmul.bf16.gmra.mxu0 %v3888
      %v4254 = vpop.f32.mrf.mxu0
      %v4255 = vadd.f32 %v4206, %v4254
      %v4256 = vpop.f32.mrf.mxu0
      %v4257 = vadd.f32 %v4208, %v4256
      %4258 = vmatmul.bf16.gmra.mxu0 %v3892
      %v4259 = vpop.f32.mrf.mxu0
      %v4260 = vadd.f32 %v4211, %v4259
      %v4261 = vpop.f32.mrf.mxu0
      %v4262 = vadd.f32 %v4213, %v4261
      %4263 = vmatmul.bf16.gmra.mxu0 %v3896
      %v4264 = vpop.f32.mrf.mxu0
      %v4265 = vadd.f32 %v4216, %v4264
      %v4266 = vpop.f32.mrf.mxu0
      %v4267 = vadd.f32 %v4218, %v4266
      %4268 = vdwg.mxu0
      %4269 = vmatpush.bf16.msra.mxu0 %v4089
      %4270 = vmatpush.bf16.msra.mxu0 %v4088
      %4271 = vmatpush.bf16.msra.mxu0 %v4087
      %4272 = vmatpush.bf16.msra.mxu0 %v4086
      %4273 = vmatpush.bf16.msra.mxu0 %v4085
      %4274 = vmatpush.bf16.msra.mxu0 %v4084
      %4275 = vmatpush.bf16.msra.mxu0 %v4083
      %4276 = vmatpush.bf16.msra.mxu0 %v4082
      %4277 = vmatmul.bf16.gmra.mxu0 %v3869
      %v4278 = vpop.f32.mrf.mxu0
      %v4279 = vadd.f32 %v4230, %v4278
      %v4280 = vpop.f32.mrf.mxu0
      %v4281 = vadd.f32 %v4232, %v4280
      %4282 = vmatmul.bf16.gmra.mxu0 %v3873
      %v4283 = vpop.f32.mrf.mxu0
      %v4284 = vadd.f32 %v4235, %v4283
      %v4285 = vpop.f32.mrf.mxu0
      %v4286 = vadd.f32 %v4237, %v4285
      %4287 = vmatmul.bf16.gmra.mxu0 %v3877
      %v4288 = vpop.f32.mrf.mxu0
      %v4289 = vadd.f32 %v4240, %v4288
      %v4290 = vpop.f32.mrf.mxu0
      %v4291 = vadd.f32 %v4242, %v4290
      %4292 = vmatmul.bf16.gmra.mxu0 %v3881
      %v4293 = vpop.f32.mrf.mxu0
      %v4294 = vadd.f32 %v4245, %v4293
      %v4295 = vpop.f32.mrf.mxu0
      %v4296 = vadd.f32 %v4247, %v4295
      %4297 = vmatmul.bf16.gmra.mxu0 %v3885
      %v4298 = vpop.f32.mrf.mxu0
      %v4299 = vadd.f32 %v4250, %v4298
      %v4300 = vpop.f32.mrf.mxu0
      %v4301 = vadd.f32 %v4252, %v4300
      %4302 = vmatmul.bf16.gmra.mxu0 %v3889
      %v4303 = vpop.f32.mrf.mxu0
      %v4304 = vadd.f32 %v4255, %v4303
      %v4305 = vpop.f32.mrf.mxu0
      %v4306 = vadd.f32 %v4257, %v4305
      %4307 = vmatmul.bf16.gmra.mxu0 %v3893
      %v4308 = vpop.f32.mrf.mxu0
      %v4309 = vadd.f32 %v4260, %v4308
      %v4310 = vpop.f32.mrf.mxu0
      %v4311 = vadd.f32 %v4262, %v4310
      %4312 = vmatmul.bf16.gmra.mxu0 %v3897
      %v4313 = vpop.f32.mrf.mxu0
      %v4314 = vadd.f32 %v4265, %v4313
      %v4315 = vpop.f32.mrf.mxu0
      %v4316 = vadd.f32 %v4267, %v4315
      %4317 = vdwg.mxu0
      %v4318 = vadd.f32 %v3289, %v4279
      %v4319 = vadd.f32 %v3290, %v4281
      %v4320 = vadd.f32 %v3291, %v4284
      %v4321 = vadd.f32 %v3292, %v4286
      %v4322 = vadd.f32 %v3293, %v4289
      %v4323 = vadd.f32 %v3294, %v4291
      %v4324 = vadd.f32 %v3295, %v4294
      %v4325 = vadd.f32 %v3296, %v4296
      %v4326 = vadd.f32 %v3297, %v4299
      %v4327 = vadd.f32 %v3298, %v4301
      %v4328 = vadd.f32 %v3299, %v4304
      %v4329 = vadd.f32 %v3300, %v4306
      %v4330 = vadd.f32 %v3301, %v4309
      %v4331 = vadd.f32 %v3302, %v4311
      %v4332 = vadd.f32 %v3303, %v4314
      %v4333 = vadd.f32 %v3304, %v4316
      %v4334 = vld [vmem:[%s2643] sm:$0xee]
      %v4335 = vld [vmem:[%s2643 + $0x8] sm:$0xee]
      %v4336 = vld [vmem:[%s2643 + $0x30] sm:$0xee]
      %v4337 = vld [vmem:[%s2643 + $0x38] sm:$0xee]
      %v4338 = vld [vmem:[%s2643 + $0x60] sm:$0xee]
      %v4339 = vld [vmem:[%s2643 + $0x68] sm:$0xee]
      %v4340 = vld [vmem:[%s2643 + $0x90] sm:$0xee]
      %v4341 = vld [vmem:[%s2643 + $0x98] sm:$0xee]
      %v4342 = vld [vmem:[%s2643 + $0xc0] sm:$0xee]
      %v4343 = vld [vmem:[%s2643 + $0xc8] sm:$0xee]
      %v4344 = vld [vmem:[%s2643 + $0xf0] sm:$0xee]
      %v4345 = vld [vmem:[%s2643 + $0xf8] sm:$0xee]
      %v4346 = vld [vmem:[%s2643 + $0x120] sm:$0xee]
      %v4347 = vld [vmem:[%s2643 + $0x128] sm:$0xee]
      %v4348 = vld [vmem:[%s2643 + $0x150] sm:$0xee]
      %v4349 = vld [vmem:[%s2643 + $0x158] sm:$0xee]
      %v4398 = vrot.slane %v4334, 5
      %v4399 = vrot.slane %v4398, 4
      %v4400 = vrot.slane %v3307, 5
      %v4401 = vsel %vm1930, %v4399, %v4400
      %v4402 = vrot.slane %v4335, 5
      %v4403 = vrot.slane %v4402, 4
      %v4404 = vrot.slane %v3308, 5
      %v4405 = vsel %vm1930, %v4403, %v4404
      %v4406 = vrot.slane %v4400, 4
      %v4407 = vrot.slane %v3309, 5
      %v4408 = vsel %vm1930, %v4406, %v4407
      %v4409 = vrot.slane %v4404, 4
      %v4410 = vrot.slane %v3310, 5
      %v4411 = vsel %vm1930, %v4409, %v4410
      %v4412 = vrot.slane %v4336, 5
      %v4413 = vrot.slane %v4412, 4
      %v4414 = vrot.slane %v3313, 5
      %v4415 = vsel %vm1930, %v4413, %v4414
      %v4416 = vrot.slane %v4337, 5
      %v4417 = vrot.slane %v4416, 4
      %v4418 = vrot.slane %v3314, 5
      %v4419 = vsel %vm1930, %v4417, %v4418
      %v4420 = vrot.slane %v4414, 4
      %v4421 = vrot.slane %v3315, 5
      %v4422 = vsel %vm1930, %v4420, %v4421
      %v4423 = vrot.slane %v4418, 4
      %v4424 = vrot.slane %v3316, 5
      %v4425 = vsel %vm1930, %v4423, %v4424
      %v4426 = vrot.slane %v4338, 5
      %v4427 = vrot.slane %v4426, 4
      %v4428 = vrot.slane %v3319, 5
      %v4429 = vsel %vm1930, %v4427, %v4428
      %v4430 = vrot.slane %v4339, 5
      %v4431 = vrot.slane %v4430, 4
      %v4432 = vrot.slane %v3320, 5
      %v4433 = vsel %vm1930, %v4431, %v4432
      %v4434 = vrot.slane %v4428, 4
      %v4435 = vrot.slane %v3321, 5
      %v4436 = vsel %vm1930, %v4434, %v4435
      %v4437 = vrot.slane %v4432, 4
      %v4438 = vrot.slane %v3322, 5
      %v4439 = vsel %vm1930, %v4437, %v4438
      %v4440 = vrot.slane %v4340, 5
      %v4441 = vrot.slane %v4440, 4
      %v4442 = vrot.slane %v3325, 5
      %v4443 = vsel %vm1930, %v4441, %v4442
      %v4444 = vrot.slane %v4341, 5
      %v4445 = vrot.slane %v4444, 4
      %v4446 = vrot.slane %v3326, 5
      %v4447 = vsel %vm1930, %v4445, %v4446
      %v4448 = vrot.slane %v4442, 4
      %v4449 = vrot.slane %v3327, 5
      %v4450 = vsel %vm1930, %v4448, %v4449
      %v4451 = vrot.slane %v4446, 4
      %v4452 = vrot.slane %v3328, 5
      %v4453 = vsel %vm1930, %v4451, %v4452
      %v4454 = vrot.slane %v4342, 5
      %v4455 = vrot.slane %v4454, 4
      %v4456 = vrot.slane %v3331, 5
      %v4457 = vsel %vm1930, %v4455, %v4456
      %v4458 = vrot.slane %v4343, 5
      %v4459 = vrot.slane %v4458, 4
      %v4460 = vrot.slane %v3332, 5
      %v4461 = vsel %vm1930, %v4459, %v4460
      %v4462 = vrot.slane %v4456, 4
      %v4463 = vrot.slane %v3333, 5
      %v4464 = vsel %vm1930, %v4462, %v4463
      %v4465 = vrot.slane %v4460, 4
      %v4466 = vrot.slane %v3334, 5
      %v4467 = vsel %vm1930, %v4465, %v4466
      %v4468 = vrot.slane %v4344, 5
      %v4469 = vrot.slane %v4468, 4
      %v4470 = vrot.slane %v3337, 5
      %v4471 = vsel %vm1930, %v4469, %v4470
      %v4472 = vrot.slane %v4345, 5
      %v4473 = vrot.slane %v4472, 4
      %v4474 = vrot.slane %v3338, 5
      %v4475 = vsel %vm1930, %v4473, %v4474
      %v4476 = vrot.slane %v4470, 4
      %v4477 = vrot.slane %v3339, 5
      %v4478 = vsel %vm1930, %v4476, %v4477
      %v4479 = vrot.slane %v4474, 4
      %v4480 = vrot.slane %v3340, 5
      %v4481 = vsel %vm1930, %v4479, %v4480
      %v4482 = vrot.slane %v4346, 5
      %v4483 = vrot.slane %v4482, 4
      %v4484 = vrot.slane %v3343, 5
      %v4485 = vsel %vm1930, %v4483, %v4484
      %v4486 = vrot.slane %v4347, 5
      %v4487 = vrot.slane %v4486, 4
      %v4488 = vrot.slane %v3344, 5
      %v4489 = vsel %vm1930, %v4487, %v4488
      %v4490 = vrot.slane %v4484, 4
      %v4491 = vrot.slane %v3345, 5
      %v4492 = vsel %vm1930, %v4490, %v4491
      %v4493 = vrot.slane %v4488, 4
      %v4494 = vrot.slane %v3346, 5
      %v4495 = vsel %vm1930, %v4493, %v4494
      %v4496 = vrot.slane %v4348, 5
      %v4497 = vrot.slane %v4496, 4
      %v4498 = vrot.slane %v3349, 5
      %v4499 = vsel %vm1930, %v4497, %v4498
      %v4500 = vrot.slane %v4349, 5
      %v4501 = vrot.slane %v4500, 4
      %v4502 = vrot.slane %v3350, 5
      %v4503 = vsel %vm1930, %v4501, %v4502
      %v4504 = vrot.slane %v4498, 4
      %v4505 = vrot.slane %v3351, 5
      %v4506 = vsel %vm1930, %v4504, %v4505
      %v4507 = vrot.slane %v4502, 4
      %v4508 = vrot.slane %v3352, 5
      %v4509 = vsel %vm1930, %v4507, %v4508
      %s4510 = scalar_lea.vmem %s1, 1280
      %v4511 = vld [vmem:[%s4510] sm:$0xf]
      %v4512 = vld [vmem:[%s4510 + $0x4] sm:$0xf]
      %v4513 = vld [vmem:[%s4510 + $0x8] sm:$0xf]
      %v4514 = vld [vmem:[%s4510 + $0xc] sm:$0xf]
      %v4515 = vld [vmem:[%s4510 + $0x10] sm:$0xf]
      %v4516 = vld [vmem:[%s4510 + $0x14] sm:$0xf]
      %v4517 = vld [vmem:[%s4510 + $0x18] sm:$0xf]
      %v4518 = vld [vmem:[%s4510 + $0x1c] sm:$0xf]
      %v4519 = vld [vmem:[%s4510 + $0x20] sm:$0xf]
      %v4520 = vld [vmem:[%s4510 + $0x24] sm:$0xf]
      %v4521 = vld [vmem:[%s4510 + $0x28] sm:$0xf]
      %v4522 = vld [vmem:[%s4510 + $0x2c] sm:$0xf]
      %v4523 = vld [vmem:[%s4510 + $0x30] sm:$0xf]
      %v4524 = vld [vmem:[%s4510 + $0x34] sm:$0xf]
      %v4525 = vld [vmem:[%s4510 + $0x38] sm:$0xf]
      %v4526 = vld [vmem:[%s4510 + $0x3c] sm:$0xf]
      %v4527 = vld [vmem:[%s4510 + $0x40] sm:$0xf]
      %v4528 = vld [vmem:[%s4510 + $0x44] sm:$0xf]
      %v4529 = vld [vmem:[%s4510 + $0x48] sm:$0xf]
      %v4530 = vld [vmem:[%s4510 + $0x4c] sm:$0xf]
      %v4531 = vld [vmem:[%s4510 + $0x50] sm:$0xf]
      %v4532 = vld [vmem:[%s4510 + $0x54] sm:$0xf]
      %v4533 = vld [vmem:[%s4510 + $0x58] sm:$0xf]
      %v4534 = vld [vmem:[%s4510 + $0x5c] sm:$0xf]
      %v4535 = vld [vmem:[%s4510 + $0x60] sm:$0xf]
      %v4536 = vld [vmem:[%s4510 + $0x64] sm:$0xf]
      %v4537 = vld [vmem:[%s4510 + $0x68] sm:$0xf]
      %v4538 = vld [vmem:[%s4510 + $0x6c] sm:$0xf]
      %v4539 = vld [vmem:[%s4510 + $0x70] sm:$0xf]
      %v4540 = vld [vmem:[%s4510 + $0x74] sm:$0xf]
      %v4541 = vld [vmem:[%s4510 + $0x78] sm:$0xf]
      %v4542 = vld [vmem:[%s4510 + $0x7c] sm:$0xf]
      %v4543 = vld [vmem:[%s4510 + $0x80] sm:$0xf]
      %v4544 = vld [vmem:[%s4510 + $0x84] sm:$0xf]
      %v4545 = vld [vmem:[%s4510 + $0x88] sm:$0xf]
      %v4546 = vld [vmem:[%s4510 + $0x8c] sm:$0xf]
      %v4547 = vld [vmem:[%s4510 + $0x90] sm:$0xf]
      %v4548 = vld [vmem:[%s4510 + $0x94] sm:$0xf]
      %v4549 = vld [vmem:[%s4510 + $0x98] sm:$0xf]
      %v4550 = vld [vmem:[%s4510 + $0x9c] sm:$0xf]
      %v4551 = vld [vmem:[%s4510 + $0xa0] sm:$0xf]
      %v4552 = vld [vmem:[%s4510 + $0xa4] sm:$0xf]
      %v4553 = vld [vmem:[%s4510 + $0xa8] sm:$0xf]
      %v4554 = vld [vmem:[%s4510 + $0xac] sm:$0xf]
      %v4555 = vld [vmem:[%s4510 + $0xb0] sm:$0xf]
      %v4556 = vld [vmem:[%s4510 + $0xb4] sm:$0xf]
      %v4557 = vld [vmem:[%s4510 + $0xb8] sm:$0xf]
      %v4558 = vld [vmem:[%s4510 + $0xbc] sm:$0xf]
      %v4559 = vld [vmem:[%s4510 + $0xc0] sm:$0xf]
      %v4560 = vld [vmem:[%s4510 + $0xc4] sm:$0xf]
      %v4561 = vld [vmem:[%s4510 + $0xc8] sm:$0xf]
      %v4562 = vld [vmem:[%s4510 + $0xcc] sm:$0xf]
      %v4563 = vld [vmem:[%s4510 + $0xd0] sm:$0xf]
      %v4564 = vld [vmem:[%s4510 + $0xd4] sm:$0xf]
      %v4565 = vld [vmem:[%s4510 + $0xd8] sm:$0xf]
      %v4566 = vld [vmem:[%s4510 + $0xdc] sm:$0xf]
      %v4567 = vld [vmem:[%s4510 + $0xe0] sm:$0xf]
      %v4568 = vld [vmem:[%s4510 + $0xe4] sm:$0xf]
      %v4569 = vld [vmem:[%s4510 + $0xe8] sm:$0xf]
      %v4570 = vld [vmem:[%s4510 + $0xec] sm:$0xf]
      %v4571 = vld [vmem:[%s4510 + $0xf0] sm:$0xf]
      %v4572 = vld [vmem:[%s4510 + $0xf4] sm:$0xf]
      %v4573 = vld [vmem:[%s4510 + $0xf8] sm:$0xf]
      %v4574 = vld [vmem:[%s4510 + $0xfc] sm:$0xf]
      %v4575 = vunpack.c.l.b16 %v4401
      %v4576 = vunpack.c.h.b16 %v4401
      %v4577 = vunpack.c.l.b16 %v4405
      %v4578 = vunpack.c.h.b16 %v4405
      %v4579 = vunpack.c.l.b16 %v4408
      %v4580 = vunpack.c.h.b16 %v4408
      %v4581 = vunpack.c.l.b16 %v4411
      %v4582 = vunpack.c.h.b16 %v4411
      %v4583 = vunpack.c.l.b16 %v4415
      %v4584 = vunpack.c.h.b16 %v4415
      %v4585 = vunpack.c.l.b16 %v4419
      %v4586 = vunpack.c.h.b16 %v4419
      %v4587 = vunpack.c.l.b16 %v4422
      %v4588 = vunpack.c.h.b16 %v4422
      %v4589 = vunpack.c.l.b16 %v4425
      %v4590 = vunpack.c.h.b16 %v4425
      %v4591 = vunpack.c.l.b16 %v4429
      %v4592 = vunpack.c.h.b16 %v4429
      %v4593 = vunpack.c.l.b16 %v4433
      %v4594 = vunpack.c.h.b16 %v4433
      %v4595 = vunpack.c.l.b16 %v4436
      %v4596 = vunpack.c.h.b16 %v4436
      %v4597 = vunpack.c.l.b16 %v4439
      %v4598 = vunpack.c.h.b16 %v4439
      %v4599 = vunpack.c.l.b16 %v4443
      %v4600 = vunpack.c.h.b16 %v4443
      %v4601 = vunpack.c.l.b16 %v4447
      %v4602 = vunpack.c.h.b16 %v4447
      %v4603 = vunpack.c.l.b16 %v4450
      %v4604 = vunpack.c.h.b16 %v4450
      %v4605 = vunpack.c.l.b16 %v4453
      %v4606 = vunpack.c.h.b16 %v4453
      %v4607 = vunpack.c.l.b16 %v4457
      %v4608 = vunpack.c.h.b16 %v4457
      %v4609 = vunpack.c.l.b16 %v4461
      %v4610 = vunpack.c.h.b16 %v4461
      %v4611 = vunpack.c.l.b16 %v4464
      %v4612 = vunpack.c.h.b16 %v4464
      %v4613 = vunpack.c.l.b16 %v4467
      %v4614 = vunpack.c.h.b16 %v4467
      %v4615 = vunpack.c.l.b16 %v4471
      %v4616 = vunpack.c.h.b16 %v4471
      %v4617 = vunpack.c.l.b16 %v4475
      %v4618 = vunpack.c.h.b16 %v4475
      %v4619 = vunpack.c.l.b16 %v4478
      %v4620 = vunpack.c.h.b16 %v4478
      %v4621 = vunpack.c.l.b16 %v4481
      %v4622 = vunpack.c.h.b16 %v4481
      %v4623 = vunpack.c.l.b16 %v4485
      %v4624 = vunpack.c.h.b16 %v4485
      %v4625 = vunpack.c.l.b16 %v4489
      %v4626 = vunpack.c.h.b16 %v4489
      %v4627 = vunpack.c.l.b16 %v4492
      %v4628 = vunpack.c.h.b16 %v4492
      %v4629 = vunpack.c.l.b16 %v4495
      %v4630 = vunpack.c.h.b16 %v4495
      %v4631 = vunpack.c.l.b16 %v4499
      %v4632 = vunpack.c.h.b16 %v4499
      %v4633 = vunpack.c.l.b16 %v4503
      %v4634 = vunpack.c.h.b16 %v4503
      %v4635 = vunpack.c.l.b16 %v4506
      %v4636 = vunpack.c.h.b16 %v4506
      %v4637 = vunpack.c.l.b16 %v4509
      %v4638 = vunpack.c.h.b16 %v4509
      %v4639 = vpack.c.b16 %v4579, %v4575
      %v4640 = vpack.c.b16 %v4580, %v4576
      %v4641 = vpack.c.b16 %v4581, %v4577
      %v4642 = vpack.c.b16 %v4582, %v4578
      %v4643 = vpack.c.b16 %v4587, %v4583
      %v4644 = vpack.c.b16 %v4588, %v4584
      %v4645 = vpack.c.b16 %v4589, %v4585
      %v4646 = vpack.c.b16 %v4590, %v4586
      %v4647 = vpack.c.b16 %v4595, %v4591
      %v4648 = vpack.c.b16 %v4596, %v4592
      %v4649 = vpack.c.b16 %v4597, %v4593
      %v4650 = vpack.c.b16 %v4598, %v4594
      %v4651 = vpack.c.b16 %v4603, %v4599
      %v4652 = vpack.c.b16 %v4604, %v4600
      %v4653 = vpack.c.b16 %v4605, %v4601
      %v4654 = vpack.c.b16 %v4606, %v4602
      %v4655 = vpack.c.b16 %v4611, %v4607
      %v4656 = vpack.c.b16 %v4612, %v4608
      %v4657 = vpack.c.b16 %v4613, %v4609
      %v4658 = vpack.c.b16 %v4614, %v4610
      %v4659 = vpack.c.b16 %v4619, %v4615
      %v4660 = vpack.c.b16 %v4620, %v4616
      %v4661 = vpack.c.b16 %v4621, %v4617
      %v4662 = vpack.c.b16 %v4622, %v4618
      %v4663 = vpack.c.b16 %v4627, %v4623
      %v4664 = vpack.c.b16 %v4628, %v4624
      %v4665 = vpack.c.b16 %v4629, %v4625
      %v4666 = vpack.c.b16 %v4630, %v4626
      %v4667 = vpack.c.b16 %v4635, %v4631
      %v4668 = vpack.c.b16 %v4636, %v4632
      %v4669 = vpack.c.b16 %v4637, %v4633
      %v4670 = vpack.c.b16 %v4638, %v4634
      %v4767 = vunpack.c.l.b16 %v4511
      %v4768 = vunpack.c.l.b16 %v4512
      %v4769 = vunpack.c.l.b16 %v4513
      %v4770 = vunpack.c.l.b16 %v4514
      %v4771 = vunpack.c.l.b16 %v4515
      %v4772 = vunpack.c.l.b16 %v4516
      %v4773 = vunpack.c.l.b16 %v4517
      %v4774 = vunpack.c.l.b16 %v4518
      %v4775 = vunpack.c.l.b16 %v4519
      %v4776 = vunpack.c.l.b16 %v4520
      %v4777 = vunpack.c.l.b16 %v4521
      %v4778 = vunpack.c.l.b16 %v4522
      %v4779 = vunpack.c.l.b16 %v4523
      %v4780 = vunpack.c.l.b16 %v4524
      %v4781 = vunpack.c.l.b16 %v4525
      %v4782 = vunpack.c.l.b16 %v4526
      %v4783 = vunpack.c.l.b16 %v4527
      %v4784 = vunpack.c.l.b16 %v4528
      %v4785 = vunpack.c.l.b16 %v4529
      %v4786 = vunpack.c.l.b16 %v4530
      %v4787 = vunpack.c.l.b16 %v4531
      %v4788 = vunpack.c.l.b16 %v4532
      %v4789 = vunpack.c.l.b16 %v4533
      %v4790 = vunpack.c.l.b16 %v4534
      %v4791 = vunpack.c.l.b16 %v4535
      %v4792 = vunpack.c.l.b16 %v4536
      %v4793 = vunpack.c.l.b16 %v4537
      %v4794 = vunpack.c.l.b16 %v4538
      %v4795 = vunpack.c.l.b16 %v4539
      %v4796 = vunpack.c.l.b16 %v4540
      %v4797 = vunpack.c.l.b16 %v4541
      %v4798 = vunpack.c.l.b16 %v4542
      %v4799 = vunpack.c.l.b16 %v4543
      %v4800 = vunpack.c.l.b16 %v4544
      %v4801 = vunpack.c.l.b16 %v4545
      %v4802 = vunpack.c.l.b16 %v4546
      %v4803 = vunpack.c.l.b16 %v4547
      %v4804 = vunpack.c.l.b16 %v4548
      %v4805 = vunpack.c.l.b16 %v4549
      %v4806 = vunpack.c.l.b16 %v4550
      %v4807 = vunpack.c.l.b16 %v4551
      %v4808 = vunpack.c.l.b16 %v4552
      %v4809 = vunpack.c.l.b16 %v4553
      %v4810 = vunpack.c.l.b16 %v4554
      %v4811 = vunpack.c.l.b16 %v4555
      %v4812 = vunpack.c.l.b16 %v4556
      %v4813 = vunpack.c.l.b16 %v4557
      %v4814 = vunpack.c.l.b16 %v4558
      %v4815 = vunpack.c.l.b16 %v4559
      %v4816 = vunpack.c.l.b16 %v4560
      %v4817 = vunpack.c.l.b16 %v4561
      %v4818 = vunpack.c.l.b16 %v4562
      %v4819 = vunpack.c.l.b16 %v4563
      %v4820 = vunpack.c.l.b16 %v4564
      %v4821 = vunpack.c.l.b16 %v4565
      %v4822 = vunpack.c.l.b16 %v4566
      %v4823 = vunpack.c.l.b16 %v4567
      %v4824 = vunpack.c.l.b16 %v4568
      %v4825 = vunpack.c.l.b16 %v4569
      %v4826 = vunpack.c.l.b16 %v4570
      %v4827 = vunpack.c.l.b16 %v4571
      %v4828 = vunpack.c.l.b16 %v4572
      %v4829 = vunpack.c.l.b16 %v4573
      %v4830 = vunpack.c.l.b16 %v4574
      %v4831 = vpack.c.b16 %v4768, %v4767
      %v4832 = vpack.c.b16 %v4770, %v4769
      %v4833 = vpack.c.b16 %v4772, %v4771
      %v4834 = vpack.c.b16 %v4774, %v4773
      %v4835 = vpack.c.b16 %v4776, %v4775
      %v4836 = vpack.c.b16 %v4778, %v4777
      %v4837 = vpack.c.b16 %v4780, %v4779
      %v4838 = vpack.c.b16 %v4782, %v4781
      %v4839 = vpack.c.b16 %v4784, %v4783
      %v4840 = vpack.c.b16 %v4786, %v4785
      %v4841 = vpack.c.b16 %v4788, %v4787
      %v4842 = vpack.c.b16 %v4790, %v4789
      %v4843 = vpack.c.b16 %v4792, %v4791
      %v4844 = vpack.c.b16 %v4794, %v4793
      %v4845 = vpack.c.b16 %v4796, %v4795
      %v4846 = vpack.c.b16 %v4798, %v4797
      %v4847 = vpack.c.b16 %v4800, %v4799
      %v4848 = vpack.c.b16 %v4802, %v4801
      %v4849 = vpack.c.b16 %v4804, %v4803
      %v4850 = vpack.c.b16 %v4806, %v4805
      %v4851 = vpack.c.b16 %v4808, %v4807
      %v4852 = vpack.c.b16 %v4810, %v4809
      %v4853 = vpack.c.b16 %v4812, %v4811
      %v4854 = vpack.c.b16 %v4814, %v4813
      %v4855 = vpack.c.b16 %v4816, %v4815
      %v4856 = vpack.c.b16 %v4818, %v4817
      %v4857 = vpack.c.b16 %v4820, %v4819
      %v4858 = vpack.c.b16 %v4822, %v4821
      %v4859 = vpack.c.b16 %v4824, %v4823
      %v4860 = vpack.c.b16 %v4826, %v4825
      %v4861 = vpack.c.b16 %v4828, %v4827
      %v4862 = vpack.c.b16 %v4830, %v4829
      %4895 = vmatpush.bf16.msra.mxu0 %v4838
      %4896 = vmatpush.bf16.msra.mxu0 %v4837
      %4897 = vmatpush.bf16.msra.mxu0 %v4836
      %4898 = vmatpush.bf16.msra.mxu0 %v4835
      %4899 = vmatpush.bf16.msra.mxu0 %v4834
      %4900 = vmatpush.bf16.msra.mxu0 %v4833
      %4901 = vmatpush.bf16.msra.mxu0 %v4832
      %4902 = vmatpush.bf16.msra.mxu0 %v4831
      %4903 = vmatmul.bf16.gmra.mxu0 %v4639
      %v4904 = vpop.f32.mrf.mxu0
      %v4905 = vadd.f32 0.0, %v4904
      %v4906 = vpop.f32.mrf.mxu0
      %v4907 = vadd.f32 0.0, %v4906
      %4908 = vmatmul.bf16.gmra.mxu0 %v4643
      %v4909 = vpop.f32.mrf.mxu0
      %v4910 = vadd.f32 0.0, %v4909
      %v4911 = vpop.f32.mrf.mxu0
      %v4912 = vadd.f32 0.0, %v4911
      %4913 = vmatmul.bf16.gmra.mxu0 %v4647
      %v4914 = vpop.f32.mrf.mxu0
      %v4915 = vadd.f32 0.0, %v4914
      %v4916 = vpop.f32.mrf.mxu0
      %v4917 = vadd.f32 0.0, %v4916
      %4918 = vmatmul.bf16.gmra.mxu0 %v4651
      %v4919 = vpop.f32.mrf.mxu0
      %v4920 = vadd.f32 0.0, %v4919
      %v4921 = vpop.f32.mrf.mxu0
      %v4922 = vadd.f32 0.0, %v4921
      %4923 = vmatmul.bf16.gmra.mxu0 %v4655
      %v4924 = vpop.f32.mrf.mxu0
      %v4925 = vadd.f32 0.0, %v4924
      %v4926 = vpop.f32.mrf.mxu0
      %v4927 = vadd.f32 0.0, %v4926
      %4928 = vmatmul.bf16.gmra.mxu0 %v4659
      %v4929 = vpop.f32.mrf.mxu0
      %v4930 = vadd.f32 0.0, %v4929
      %v4931 = vpop.f32.mrf.mxu0
      %v4932 = vadd.f32 0.0, %v4931
      %4933 = vmatmul.bf16.gmra.mxu0 %v4663
      %v4934 = vpop.f32.mrf.mxu0
      %v4935 = vadd.f32 0.0, %v4934
      %v4936 = vpop.f32.mrf.mxu0
      %v4937 = vadd.f32 0.0, %v4936
      %4938 = vmatmul.bf16.gmra.mxu0 %v4667
      %v4939 = vpop.f32.mrf.mxu0
      %v4940 = vadd.f32 0.0, %v4939
      %v4941 = vpop.f32.mrf.mxu0
      %v4942 = vadd.f32 0.0, %v4941
      %4943 = vdwg.mxu0
      %4944 = vmatpush.bf16.msra.mxu0 %v4846
      %4945 = vmatpush.bf16.msra.mxu0 %v4845
      %4946 = vmatpush.bf16.msra.mxu0 %v4844
      %4947 = vmatpush.bf16.msra.mxu0 %v4843
      %4948 = vmatpush.bf16.msra.mxu0 %v4842
      %4949 = vmatpush.bf16.msra.mxu0 %v4841
      %4950 = vmatpush.bf16.msra.mxu0 %v4840
      %4951 = vmatpush.bf16.msra.mxu0 %v4839
      %4952 = vmatmul.bf16.gmra.mxu0 %v4640
      %v4953 = vpop.f32.mrf.mxu0
      %v4954 = vadd.f32 %v4905, %v4953
      %v4955 = vpop.f32.mrf.mxu0
      %v4956 = vadd.f32 %v4907, %v4955
      %4957 = vmatmul.bf16.gmra.mxu0 %v4644
      %v4958 = vpop.f32.mrf.mxu0
      %v4959 = vadd.f32 %v4910, %v4958
      %v4960 = vpop.f32.mrf.mxu0
      %v4961 = vadd.f32 %v4912, %v4960
      %4962 = vmatmul.bf16.gmra.mxu0 %v4648
      %v4963 = vpop.f32.mrf.mxu0
      %v4964 = vadd.f32 %v4915, %v4963
      %v4965 = vpop.f32.mrf.mxu0
      %v4966 = vadd.f32 %v4917, %v4965
      %4967 = vmatmul.bf16.gmra.mxu0 %v4652
      %v4968 = vpop.f32.mrf.mxu0
      %v4969 = vadd.f32 %v4920, %v4968
      %v4970 = vpop.f32.mrf.mxu0
      %v4971 = vadd.f32 %v4922, %v4970
      %4972 = vmatmul.bf16.gmra.mxu0 %v4656
      %v4973 = vpop.f32.mrf.mxu0
      %v4974 = vadd.f32 %v4925, %v4973
      %v4975 = vpop.f32.mrf.mxu0
      %v4976 = vadd.f32 %v4927, %v4975
      %4977 = vmatmul.bf16.gmra.mxu0 %v4660
      %v4978 = vpop.f32.mrf.mxu0
      %v4979 = vadd.f32 %v4930, %v4978
      %v4980 = vpop.f32.mrf.mxu0
      %v4981 = vadd.f32 %v4932, %v4980
      %4982 = vmatmul.bf16.gmra.mxu0 %v4664
      %v4983 = vpop.f32.mrf.mxu0
      %v4984 = vadd.f32 %v4935, %v4983
      %v4985 = vpop.f32.mrf.mxu0
      %v4986 = vadd.f32 %v4937, %v4985
      %4987 = vmatmul.bf16.gmra.mxu0 %v4668
      %v4988 = vpop.f32.mrf.mxu0
      %v4989 = vadd.f32 %v4940, %v4988
      %v4990 = vpop.f32.mrf.mxu0
      %v4991 = vadd.f32 %v4942, %v4990
      %4992 = vdwg.mxu0
      %4993 = vmatpush.bf16.msra.mxu0 %v4854
      %4994 = vmatpush.bf16.msra.mxu0 %v4853
      %4995 = vmatpush.bf16.msra.mxu0 %v4852
      %4996 = vmatpush.bf16.msra.mxu0 %v4851
      %4997 = vmatpush.bf16.msra.mxu0 %v4850
      %4998 = vmatpush.bf16.msra.mxu0 %v4849
      %4999 = vmatpush.bf16.msra.mxu0 %v4848
      %5000 = vmatpush.bf16.msra.mxu0 %v4847
      %5001 = vmatmul.bf16.gmra.mxu0 %v4641
      %v5002 = vpop.f32.mrf.mxu0
      %v5003 = vadd.f32 %v4954, %v5002
      %v5004 = vpop.f32.mrf.mxu0
      %v5005 = vadd.f32 %v4956, %v5004
      %5006 = vmatmul.bf16.gmra.mxu0 %v4645
      %v5007 = vpop.f32.mrf.mxu0
      %v5008 = vadd.f32 %v4959, %v5007
      %v5009 = vpop.f32.mrf.mxu0
      %v5010 = vadd.f32 %v4961, %v5009
      %5011 = vmatmul.bf16.gmra.mxu0 %v4649
      %v5012 = vpop.f32.mrf.mxu0
      %v5013 = vadd.f32 %v4964, %v5012
      %v5014 = vpop.f32.mrf.mxu0
      %v5015 = vadd.f32 %v4966, %v5014
      %5016 = vmatmul.bf16.gmra.mxu0 %v4653
      %v5017 = vpop.f32.mrf.mxu0
      %v5018 = vadd.f32 %v4969, %v5017
      %v5019 = vpop.f32.mrf.mxu0
      %v5020 = vadd.f32 %v4971, %v5019
      %5021 = vmatmul.bf16.gmra.mxu0 %v4657
      %v5022 = vpop.f32.mrf.mxu0
      %v5023 = vadd.f32 %v4974, %v5022
      %v5024 = vpop.f32.mrf.mxu0
      %v5025 = vadd.f32 %v4976, %v5024
      %5026 = vmatmul.bf16.gmra.mxu0 %v4661
      %v5027 = vpop.f32.mrf.mxu0
      %v5028 = vadd.f32 %v4979, %v5027
      %v5029 = vpop.f32.mrf.mxu0
      %v5030 = vadd.f32 %v4981, %v5029
      %5031 = vmatmul.bf16.gmra.mxu0 %v4665
      %v5032 = vpop.f32.mrf.mxu0
      %v5033 = vadd.f32 %v4984, %v5032
      %v5034 = vpop.f32.mrf.mxu0
      %v5035 = vadd.f32 %v4986, %v5034
      %5036 = vmatmul.bf16.gmra.mxu0 %v4669
      %v5037 = vpop.f32.mrf.mxu0
      %v5038 = vadd.f32 %v4989, %v5037
      %v5039 = vpop.f32.mrf.mxu0
      %v5040 = vadd.f32 %v4991, %v5039
      %5041 = vdwg.mxu0
      %5042 = vmatpush.bf16.msra.mxu0 %v4862
      %5043 = vmatpush.bf16.msra.mxu0 %v4861
      %5044 = vmatpush.bf16.msra.mxu0 %v4860
      %5045 = vmatpush.bf16.msra.mxu0 %v4859
      %5046 = vmatpush.bf16.msra.mxu0 %v4858
      %5047 = vmatpush.bf16.msra.mxu0 %v4857
      %5048 = vmatpush.bf16.msra.mxu0 %v4856
      %5049 = vmatpush.bf16.msra.mxu0 %v4855
      %5050 = vmatmul.bf16.gmra.mxu0 %v4642
      %v5051 = vpop.f32.mrf.mxu0
      %v5052 = vadd.f32 %v5003, %v5051
      %v5053 = vpop.f32.mrf.mxu0
      %v5054 = vadd.f32 %v5005, %v5053
      %5055 = vmatmul.bf16.gmra.mxu0 %v4646
      %v5056 = vpop.f32.mrf.mxu0
      %v5057 = vadd.f32 %v5008, %v5056
      %v5058 = vpop.f32.mrf.mxu0
      %v5059 = vadd.f32 %v5010, %v5058
      %5060 = vmatmul.bf16.gmra.mxu0 %v4650
      %v5061 = vpop.f32.mrf.mxu0
      %v5062 = vadd.f32 %v5013, %v5061
      %v5063 = vpop.f32.mrf.mxu0
      %v5064 = vadd.f32 %v5015, %v5063
      %5065 = vmatmul.bf16.gmra.mxu0 %v4654
      %v5066 = vpop.f32.mrf.mxu0
      %v5067 = vadd.f32 %v5018, %v5066
      %v5068 = vpop.f32.mrf.mxu0
      %v5069 = vadd.f32 %v5020, %v5068
      %5070 = vmatmul.bf16.gmra.mxu0 %v4658
      %v5071 = vpop.f32.mrf.mxu0
      %v5072 = vadd.f32 %v5023, %v5071
      %v5073 = vpop.f32.mrf.mxu0
      %v5074 = vadd.f32 %v5025, %v5073
      %5075 = vmatmul.bf16.gmra.mxu0 %v4662
      %v5076 = vpop.f32.mrf.mxu0
      %v5077 = vadd.f32 %v5028, %v5076
      %v5078 = vpop.f32.mrf.mxu0
      %v5079 = vadd.f32 %v5030, %v5078
      %5080 = vmatmul.bf16.gmra.mxu0 %v4666
      %v5081 = vpop.f32.mrf.mxu0
      %v5082 = vadd.f32 %v5033, %v5081
      %v5083 = vpop.f32.mrf.mxu0
      %v5084 = vadd.f32 %v5035, %v5083
      %5085 = vmatmul.bf16.gmra.mxu0 %v4670
      %v5086 = vpop.f32.mrf.mxu0
      %v5087 = vadd.f32 %v5038, %v5086
      %v5088 = vpop.f32.mrf.mxu0
      %v5089 = vadd.f32 %v5040, %v5088
      %5090 = vdwg.mxu0
      %v5091 = vadd.f32 %v4318, %v5052
      %v5092 = vadd.f32 %v4319, %v5054
      %v5093 = vadd.f32 %v4320, %v5057
      %v5094 = vadd.f32 %v4321, %v5059
      %v5095 = vadd.f32 %v4322, %v5062
      %v5096 = vadd.f32 %v4323, %v5064
      %v5097 = vadd.f32 %v4324, %v5067
      %v5098 = vadd.f32 %v4325, %v5069
      %v5099 = vadd.f32 %v4326, %v5072
      %v5100 = vadd.f32 %v4327, %v5074
      %v5101 = vadd.f32 %v4328, %v5077
      %v5102 = vadd.f32 %v4329, %v5079
      %v5103 = vadd.f32 %v4330, %v5082
      %v5104 = vadd.f32 %v4331, %v5084
      %v5105 = vadd.f32 %v4332, %v5087
      %v5106 = vadd.f32 %v4333, %v5089
      %s5107 = sadd.s32 %s248, 2
      %s5108 = smul.u32 %s5107, 12
      %s5109 = smul.addr %s5108, 4
      %s5110 = scalar_lea.vmem %s237, %s5109
      %v5111 = vld [vmem:[%s5110] sm:$0xff]
      %v5112 = vld [vmem:[%s5110 + $0x8] sm:$0xff]
      %v5113 = vld [vmem:[%s5110 + $0x10] sm:$0xff]
      %v5114 = vld [vmem:[%s5110 + $0x18] sm:$0xff]
      %v5115 = vld [vmem:[%s5110 + $0x30] sm:$0xff]
      %v5116 = vld [vmem:[%s5110 + $0x38] sm:$0xff]
      %v5117 = vld [vmem:[%s5110 + $0x40] sm:$0xff]
      %v5118 = vld [vmem:[%s5110 + $0x48] sm:$0xff]
      %v5119 = vld [vmem:[%s5110 + $0x60] sm:$0xff]
      %v5120 = vld [vmem:[%s5110 + $0x68] sm:$0xff]
      %v5121 = vld [vmem:[%s5110 + $0x70] sm:$0xff]
      %v5122 = vld [vmem:[%s5110 + $0x78] sm:$0xff]
      %v5123 = vld [vmem:[%s5110 + $0x90] sm:$0xff]
      %v5124 = vld [vmem:[%s5110 + $0x98] sm:$0xff]
      %v5125 = vld [vmem:[%s5110 + $0xa0] sm:$0xff]
      %v5126 = vld [vmem:[%s5110 + $0xa8] sm:$0xff]
      %v5127 = vld [vmem:[%s5110 + $0xc0] sm:$0xff]
      %v5128 = vld [vmem:[%s5110 + $0xc8] sm:$0xff]
      %v5129 = vld [vmem:[%s5110 + $0xd0] sm:$0xff]
      %v5130 = vld [vmem:[%s5110 + $0xd8] sm:$0xff]
      %v5131 = vld [vmem:[%s5110 + $0xf0] sm:$0xff]
      %v5132 = vld [vmem:[%s5110 + $0xf8] sm:$0xff]
      %v5133 = vld [vmem:[%s5110 + $0x100] sm:$0xff]
      %v5134 = vld [vmem:[%s5110 + $0x108] sm:$0xff]
      %v5135 = vld [vmem:[%s5110 + $0x120] sm:$0xff]
      %v5136 = vld [vmem:[%s5110 + $0x128] sm:$0xff]
      %v5137 = vld [vmem:[%s5110 + $0x130] sm:$0xff]
      %v5138 = vld [vmem:[%s5110 + $0x138] sm:$0xff]
      %v5139 = vld [vmem:[%s5110 + $0x150] sm:$0xff]
      %v5140 = vld [vmem:[%s5110 + $0x158] sm:$0xff]
      %v5141 = vld [vmem:[%s5110 + $0x160] sm:$0xff]
      %v5142 = vld [vmem:[%s5110 + $0x168] sm:$0xff]
      %s5143 = scalar_lea.vmem %s1, 1536
      %v5144 = vld [vmem:[%s5143] sm:$0xf]
      %v5145 = vld [vmem:[%s5143 + $0x4] sm:$0xf]
      %v5146 = vld [vmem:[%s5143 + $0x8] sm:$0xf]
      %v5147 = vld [vmem:[%s5143 + $0xc] sm:$0xf]
      %v5148 = vld [vmem:[%s5143 + $0x10] sm:$0xf]
      %v5149 = vld [vmem:[%s5143 + $0x14] sm:$0xf]
      %v5150 = vld [vmem:[%s5143 + $0x18] sm:$0xf]
      %v5151 = vld [vmem:[%s5143 + $0x1c] sm:$0xf]
      %v5152 = vld [vmem:[%s5143 + $0x20] sm:$0xf]
      %v5153 = vld [vmem:[%s5143 + $0x24] sm:$0xf]
      %v5154 = vld [vmem:[%s5143 + $0x28] sm:$0xf]
      %v5155 = vld [vmem:[%s5143 + $0x2c] sm:$0xf]
      %v5156 = vld [vmem:[%s5143 + $0x30] sm:$0xf]
      %v5157 = vld [vmem:[%s5143 + $0x34] sm:$0xf]
      %v5158 = vld [vmem:[%s5143 + $0x38] sm:$0xf]
      %v5159 = vld [vmem:[%s5143 + $0x3c] sm:$0xf]
      %v5160 = vld [vmem:[%s5143 + $0x40] sm:$0xf]
      %v5161 = vld [vmem:[%s5143 + $0x44] sm:$0xf]
      %v5162 = vld [vmem:[%s5143 + $0x48] sm:$0xf]
      %v5163 = vld [vmem:[%s5143 + $0x4c] sm:$0xf]
      %v5164 = vld [vmem:[%s5143 + $0x50] sm:$0xf]
      %v5165 = vld [vmem:[%s5143 + $0x54] sm:$0xf]
      %v5166 = vld [vmem:[%s5143 + $0x58] sm:$0xf]
      %v5167 = vld [vmem:[%s5143 + $0x5c] sm:$0xf]
      %v5168 = vld [vmem:[%s5143 + $0x60] sm:$0xf]
      %v5169 = vld [vmem:[%s5143 + $0x64] sm:$0xf]
      %v5170 = vld [vmem:[%s5143 + $0x68] sm:$0xf]
      %v5171 = vld [vmem:[%s5143 + $0x6c] sm:$0xf]
      %v5172 = vld [vmem:[%s5143 + $0x70] sm:$0xf]
      %v5173 = vld [vmem:[%s5143 + $0x74] sm:$0xf]
      %v5174 = vld [vmem:[%s5143 + $0x78] sm:$0xf]
      %v5175 = vld [vmem:[%s5143 + $0x7c] sm:$0xf]
      %v5176 = vld [vmem:[%s5143 + $0x80] sm:$0xf]
      %v5177 = vld [vmem:[%s5143 + $0x84] sm:$0xf]
      %v5178 = vld [vmem:[%s5143 + $0x88] sm:$0xf]
      %v5179 = vld [vmem:[%s5143 + $0x8c] sm:$0xf]
      %v5180 = vld [vmem:[%s5143 + $0x90] sm:$0xf]
      %v5181 = vld [vmem:[%s5143 + $0x94] sm:$0xf]
      %v5182 = vld [vmem:[%s5143 + $0x98] sm:$0xf]
      %v5183 = vld [vmem:[%s5143 + $0x9c] sm:$0xf]
      %v5184 = vld [vmem:[%s5143 + $0xa0] sm:$0xf]
      %v5185 = vld [vmem:[%s5143 + $0xa4] sm:$0xf]
      %v5186 = vld [vmem:[%s5143 + $0xa8] sm:$0xf]
      %v5187 = vld [vmem:[%s5143 + $0xac] sm:$0xf]
      %v5188 = vld [vmem:[%s5143 + $0xb0] sm:$0xf]
      %v5189 = vld [vmem:[%s5143 + $0xb4] sm:$0xf]
      %v5190 = vld [vmem:[%s5143 + $0xb8] sm:$0xf]
      %v5191 = vld [vmem:[%s5143 + $0xbc] sm:$0xf]
      %v5192 = vld [vmem:[%s5143 + $0xc0] sm:$0xf]
      %v5193 = vld [vmem:[%s5143 + $0xc4] sm:$0xf]
      %v5194 = vld [vmem:[%s5143 + $0xc8] sm:$0xf]
      %v5195 = vld [vmem:[%s5143 + $0xcc] sm:$0xf]
      %v5196 = vld [vmem:[%s5143 + $0xd0] sm:$0xf]
      %v5197 = vld [vmem:[%s5143 + $0xd4] sm:$0xf]
      %v5198 = vld [vmem:[%s5143 + $0xd8] sm:$0xf]
      %v5199 = vld [vmem:[%s5143 + $0xdc] sm:$0xf]
      %v5200 = vld [vmem:[%s5143 + $0xe0] sm:$0xf]
      %v5201 = vld [vmem:[%s5143 + $0xe4] sm:$0xf]
      %v5202 = vld [vmem:[%s5143 + $0xe8] sm:$0xf]
      %v5203 = vld [vmem:[%s5143 + $0xec] sm:$0xf]
      %v5204 = vld [vmem:[%s5143 + $0xf0] sm:$0xf]
      %v5205 = vld [vmem:[%s5143 + $0xf4] sm:$0xf]
      %v5206 = vld [vmem:[%s5143 + $0xf8] sm:$0xf]
      %v5207 = vld [vmem:[%s5143 + $0xfc] sm:$0xf]
      %v5240 = vunpack.c.l.b16 %v5111
      %v5241 = vunpack.c.h.b16 %v5111
      %v5242 = vunpack.c.l.b16 %v5112
      %v5243 = vunpack.c.h.b16 %v5112
      %v5244 = vunpack.c.l.b16 %v5113
      %v5245 = vunpack.c.h.b16 %v5113
      %v5246 = vunpack.c.l.b16 %v5114
      %v5247 = vunpack.c.h.b16 %v5114
      %v5248 = vunpack.c.l.b16 %v5115
      %v5249 = vunpack.c.h.b16 %v5115
      %v5250 = vunpack.c.l.b16 %v5116
      %v5251 = vunpack.c.h.b16 %v5116
      %v5252 = vunpack.c.l.b16 %v5117
      %v5253 = vunpack.c.h.b16 %v5117
      %v5254 = vunpack.c.l.b16 %v5118
      %v5255 = vunpack.c.h.b16 %v5118
      %v5256 = vunpack.c.l.b16 %v5119
      %v5257 = vunpack.c.h.b16 %v5119
      %v5258 = vunpack.c.l.b16 %v5120
      %v5259 = vunpack.c.h.b16 %v5120
      %v5260 = vunpack.c.l.b16 %v5121
      %v5261 = vunpack.c.h.b16 %v5121
      %v5262 = vunpack.c.l.b16 %v5122
      %v5263 = vunpack.c.h.b16 %v5122
      %v5264 = vunpack.c.l.b16 %v5123
      %v5265 = vunpack.c.h.b16 %v5123
      %v5266 = vunpack.c.l.b16 %v5124
      %v5267 = vunpack.c.h.b16 %v5124
      %v5268 = vunpack.c.l.b16 %v5125
      %v5269 = vunpack.c.h.b16 %v5125
      %v5270 = vunpack.c.l.b16 %v5126
      %v5271 = vunpack.c.h.b16 %v5126
      %v5272 = vunpack.c.l.b16 %v5127
      %v5273 = vunpack.c.h.b16 %v5127
      %v5274 = vunpack.c.l.b16 %v5128
      %v5275 = vunpack.c.h.b16 %v5128
      %v5276 = vunpack.c.l.b16 %v5129
      %v5277 = vunpack.c.h.b16 %v5129
      %v5278 = vunpack.c.l.b16 %v5130
      %v5279 = vunpack.c.h.b16 %v5130
      %v5280 = vunpack.c.l.b16 %v5131
      %v5281 = vunpack.c.h.b16 %v5131
      %v5282 = vunpack.c.l.b16 %v5132
      %v5283 = vunpack.c.h.b16 %v5132
      %v5284 = vunpack.c.l.b16 %v5133
      %v5285 = vunpack.c.h.b16 %v5133
      %v5286 = vunpack.c.l.b16 %v5134
      %v5287 = vunpack.c.h.b16 %v5134
      %v5288 = vunpack.c.l.b16 %v5135
      %v5289 = vunpack.c.h.b16 %v5135
      %v5290 = vunpack.c.l.b16 %v5136
      %v5291 = vunpack.c.h.b16 %v5136
      %v5292 = vunpack.c.l.b16 %v5137
      %v5293 = vunpack.c.h.b16 %v5137
      %v5294 = vunpack.c.l.b16 %v5138
      %v5295 = vunpack.c.h.b16 %v5138
      %v5296 = vunpack.c.l.b16 %v5139
      %v5297 = vunpack.c.h.b16 %v5139
      %v5298 = vunpack.c.l.b16 %v5140
      %v5299 = vunpack.c.h.b16 %v5140
      %v5300 = vunpack.c.l.b16 %v5141
      %v5301 = vunpack.c.h.b16 %v5141
      %v5302 = vunpack.c.l.b16 %v5142
      %v5303 = vunpack.c.h.b16 %v5142
      %v5304 = vpack.c.b16 %v5244, %v5240
      %v5305 = vpack.c.b16 %v5245, %v5241
      %v5306 = vpack.c.b16 %v5246, %v5242
      %v5307 = vpack.c.b16 %v5247, %v5243
      %v5308 = vpack.c.b16 %v5252, %v5248
      %v5309 = vpack.c.b16 %v5253, %v5249
      %v5310 = vpack.c.b16 %v5254, %v5250
      %v5311 = vpack.c.b16 %v5255, %v5251
      %v5312 = vpack.c.b16 %v5260, %v5256
      %v5313 = vpack.c.b16 %v5261, %v5257
      %v5314 = vpack.c.b16 %v5262, %v5258
      %v5315 = vpack.c.b16 %v5263, %v5259
      %v5316 = vpack.c.b16 %v5268, %v5264
      %v5317 = vpack.c.b16 %v5269, %v5265
      %v5318 = vpack.c.b16 %v5270, %v5266
      %v5319 = vpack.c.b16 %v5271, %v5267
      %v5320 = vpack.c.b16 %v5276, %v5272
      %v5321 = vpack.c.b16 %v5277, %v5273
      %v5322 = vpack.c.b16 %v5278, %v5274
      %v5323 = vpack.c.b16 %v5279, %v5275
      %v5324 = vpack.c.b16 %v5284, %v5280
      %v5325 = vpack.c.b16 %v5285, %v5281
      %v5326 = vpack.c.b16 %v5286, %v5282
      %v5327 = vpack.c.b16 %v5287, %v5283
      %v5328 = vpack.c.b16 %v5292, %v5288
      %v5329 = vpack.c.b16 %v5293, %v5289
      %v5330 = vpack.c.b16 %v5294, %v5290
      %v5331 = vpack.c.b16 %v5295, %v5291
      %v5332 = vpack.c.b16 %v5300, %v5296
      %v5333 = vpack.c.b16 %v5301, %v5297
      %v5334 = vpack.c.b16 %v5302, %v5298
      %v5335 = vpack.c.b16 %v5303, %v5299
      %v5432 = vunpack.c.l.b16 %v5144
      %v5433 = vunpack.c.l.b16 %v5145
      %v5434 = vunpack.c.l.b16 %v5146
      %v5435 = vunpack.c.l.b16 %v5147
      %v5436 = vunpack.c.l.b16 %v5148
      %v5437 = vunpack.c.l.b16 %v5149
      %v5438 = vunpack.c.l.b16 %v5150
      %v5439 = vunpack.c.l.b16 %v5151
      %v5440 = vunpack.c.l.b16 %v5152
      %v5441 = vunpack.c.l.b16 %v5153
      %v5442 = vunpack.c.l.b16 %v5154
      %v5443 = vunpack.c.l.b16 %v5155
      %v5444 = vunpack.c.l.b16 %v5156
      %v5445 = vunpack.c.l.b16 %v5157
      %v5446 = vunpack.c.l.b16 %v5158
      %v5447 = vunpack.c.l.b16 %v5159
      %v5448 = vunpack.c.l.b16 %v5160
      %v5449 = vunpack.c.l.b16 %v5161
      %v5450 = vunpack.c.l.b16 %v5162
      %v5451 = vunpack.c.l.b16 %v5163
      %v5452 = vunpack.c.l.b16 %v5164
      %v5453 = vunpack.c.l.b16 %v5165
      %v5454 = vunpack.c.l.b16 %v5166
      %v5455 = vunpack.c.l.b16 %v5167
      %v5456 = vunpack.c.l.b16 %v5168
      %v5457 = vunpack.c.l.b16 %v5169
      %v5458 = vunpack.c.l.b16 %v5170
      %v5459 = vunpack.c.l.b16 %v5171
      %v5460 = vunpack.c.l.b16 %v5172
      %v5461 = vunpack.c.l.b16 %v5173
      %v5462 = vunpack.c.l.b16 %v5174
      %v5463 = vunpack.c.l.b16 %v5175
      %v5464 = vunpack.c.l.b16 %v5176
      %v5465 = vunpack.c.l.b16 %v5177
      %v5466 = vunpack.c.l.b16 %v5178
      %v5467 = vunpack.c.l.b16 %v5179
      %v5468 = vunpack.c.l.b16 %v5180
      %v5469 = vunpack.c.l.b16 %v5181
      %v5470 = vunpack.c.l.b16 %v5182
      %v5471 = vunpack.c.l.b16 %v5183
      %v5472 = vunpack.c.l.b16 %v5184
      %v5473 = vunpack.c.l.b16 %v5185
      %v5474 = vunpack.c.l.b16 %v5186
      %v5475 = vunpack.c.l.b16 %v5187
      %v5476 = vunpack.c.l.b16 %v5188
      %v5477 = vunpack.c.l.b16 %v5189
      %v5478 = vunpack.c.l.b16 %v5190
      %v5479 = vunpack.c.l.b16 %v5191
      %v5480 = vunpack.c.l.b16 %v5192
      %v5481 = vunpack.c.l.b16 %v5193
      %v5482 = vunpack.c.l.b16 %v5194
      %v5483 = vunpack.c.l.b16 %v5195
      %v5484 = vunpack.c.l.b16 %v5196
      %v5485 = vunpack.c.l.b16 %v5197
      %v5486 = vunpack.c.l.b16 %v5198
      %v5487 = vunpack.c.l.b16 %v5199
      %v5488 = vunpack.c.l.b16 %v5200
      %v5489 = vunpack.c.l.b16 %v5201
      %v5490 = vunpack.c.l.b16 %v5202
      %v5491 = vunpack.c.l.b16 %v5203
      %v5492 = vunpack.c.l.b16 %v5204
      %v5493 = vunpack.c.l.b16 %v5205
      %v5494 = vunpack.c.l.b16 %v5206
      %v5495 = vunpack.c.l.b16 %v5207
      %v5496 = vpack.c.b16 %v5433, %v5432
      %v5497 = vpack.c.b16 %v5435, %v5434
      %v5498 = vpack.c.b16 %v5437, %v5436
      %v5499 = vpack.c.b16 %v5439, %v5438
      %v5500 = vpack.c.b16 %v5441, %v5440
      %v5501 = vpack.c.b16 %v5443, %v5442
      %v5502 = vpack.c.b16 %v5445, %v5444
      %v5503 = vpack.c.b16 %v5447, %v5446
      %v5504 = vpack.c.b16 %v5449, %v5448
      %v5505 = vpack.c.b16 %v5451, %v5450
      %v5506 = vpack.c.b16 %v5453, %v5452
      %v5507 = vpack.c.b16 %v5455, %v5454
      %v5508 = vpack.c.b16 %v5457, %v5456
      %v5509 = vpack.c.b16 %v5459, %v5458
      %v5510 = vpack.c.b16 %v5461, %v5460
      %v5511 = vpack.c.b16 %v5463, %v5462
      %v5512 = vpack.c.b16 %v5465, %v5464
      %v5513 = vpack.c.b16 %v5467, %v5466
      %v5514 = vpack.c.b16 %v5469, %v5468
      %v5515 = vpack.c.b16 %v5471, %v5470
      %v5516 = vpack.c.b16 %v5473, %v5472
      %v5517 = vpack.c.b16 %v5475, %v5474
      %v5518 = vpack.c.b16 %v5477, %v5476
      %v5519 = vpack.c.b16 %v5479, %v5478
      %v5520 = vpack.c.b16 %v5481, %v5480
      %v5521 = vpack.c.b16 %v5483, %v5482
      %v5522 = vpack.c.b16 %v5485, %v5484
      %v5523 = vpack.c.b16 %v5487, %v5486
      %v5524 = vpack.c.b16 %v5489, %v5488
      %v5525 = vpack.c.b16 %v5491, %v5490
      %v5526 = vpack.c.b16 %v5493, %v5492
      %v5527 = vpack.c.b16 %v5495, %v5494
      %5560 = vmatpush.bf16.msra.mxu0 %v5503
      %5561 = vmatpush.bf16.msra.mxu0 %v5502
      %5562 = vmatpush.bf16.msra.mxu0 %v5501
      %5563 = vmatpush.bf16.msra.mxu0 %v5500
      %5564 = vmatpush.bf16.msra.mxu0 %v5499
      %5565 = vmatpush.bf16.msra.mxu0 %v5498
      %5566 = vmatpush.bf16.msra.mxu0 %v5497
      %5567 = vmatpush.bf16.msra.mxu0 %v5496
      %5568 = vmatmul.bf16.gmra.mxu0 %v5304
      %v5569 = vpop.f32.mrf.mxu0
      %v5570 = vadd.f32 0.0, %v5569
      %v5571 = vpop.f32.mrf.mxu0
      %v5572 = vadd.f32 0.0, %v5571
      %5573 = vmatmul.bf16.gmra.mxu0 %v5308
      %v5574 = vpop.f32.mrf.mxu0
      %v5575 = vadd.f32 0.0, %v5574
      %v5576 = vpop.f32.mrf.mxu0
      %v5577 = vadd.f32 0.0, %v5576
      %5578 = vmatmul.bf16.gmra.mxu0 %v5312
      %v5579 = vpop.f32.mrf.mxu0
      %v5580 = vadd.f32 0.0, %v5579
      %v5581 = vpop.f32.mrf.mxu0
      %v5582 = vadd.f32 0.0, %v5581
      %5583 = vmatmul.bf16.gmra.mxu0 %v5316
      %v5584 = vpop.f32.mrf.mxu0
      %v5585 = vadd.f32 0.0, %v5584
      %v5586 = vpop.f32.mrf.mxu0
      %v5587 = vadd.f32 0.0, %v5586
      %5588 = vmatmul.bf16.gmra.mxu0 %v5320
      %v5589 = vpop.f32.mrf.mxu0
      %v5590 = vadd.f32 0.0, %v5589
      %v5591 = vpop.f32.mrf.mxu0
      %v5592 = vadd.f32 0.0, %v5591
      %5593 = vmatmul.bf16.gmra.mxu0 %v5324
      %v5594 = vpop.f32.mrf.mxu0
      %v5595 = vadd.f32 0.0, %v5594
      %v5596 = vpop.f32.mrf.mxu0
      %v5597 = vadd.f32 0.0, %v5596
      %5598 = vmatmul.bf16.gmra.mxu0 %v5328
      %v5599 = vpop.f32.mrf.mxu0
      %v5600 = vadd.f32 0.0, %v5599
      %v5601 = vpop.f32.mrf.mxu0
      %v5602 = vadd.f32 0.0, %v5601
      %5603 = vmatmul.bf16.gmra.mxu0 %v5332
      %v5604 = vpop.f32.mrf.mxu0
      %v5605 = vadd.f32 0.0, %v5604
      %v5606 = vpop.f32.mrf.mxu0
      %v5607 = vadd.f32 0.0, %v5606
      %5608 = vdwg.mxu0
      %5609 = vmatpush.bf16.msra.mxu0 %v5511
      %5610 = vmatpush.bf16.msra.mxu0 %v5510
      %5611 = vmatpush.bf16.msra.mxu0 %v5509
      %5612 = vmatpush.bf16.msra.mxu0 %v5508
      %5613 = vmatpush.bf16.msra.mxu0 %v5507
      %5614 = vmatpush.bf16.msra.mxu0 %v5506
      %5615 = vmatpush.bf16.msra.mxu0 %v5505
      %5616 = vmatpush.bf16.msra.mxu0 %v5504
      %5617 = vmatmul.bf16.gmra.mxu0 %v5305
      %v5618 = vpop.f32.mrf.mxu0
      %v5619 = vadd.f32 %v5570, %v5618
      %v5620 = vpop.f32.mrf.mxu0
      %v5621 = vadd.f32 %v5572, %v5620
      %5622 = vmatmul.bf16.gmra.mxu0 %v5309
      %v5623 = vpop.f32.mrf.mxu0
      %v5624 = vadd.f32 %v5575, %v5623
      %v5625 = vpop.f32.mrf.mxu0
      %v5626 = vadd.f32 %v5577, %v5625
      %5627 = vmatmul.bf16.gmra.mxu0 %v5313
      %v5628 = vpop.f32.mrf.mxu0
      %v5629 = vadd.f32 %v5580, %v5628
      %v5630 = vpop.f32.mrf.mxu0
      %v5631 = vadd.f32 %v5582, %v5630
      %5632 = vmatmul.bf16.gmra.mxu0 %v5317
      %v5633 = vpop.f32.mrf.mxu0
      %v5634 = vadd.f32 %v5585, %v5633
      %v5635 = vpop.f32.mrf.mxu0
      %v5636 = vadd.f32 %v5587, %v5635
      %5637 = vmatmul.bf16.gmra.mxu0 %v5321
      %v5638 = vpop.f32.mrf.mxu0
      %v5639 = vadd.f32 %v5590, %v5638
      %v5640 = vpop.f32.mrf.mxu0
      %v5641 = vadd.f32 %v5592, %v5640
      %5642 = vmatmul.bf16.gmra.mxu0 %v5325
      %v5643 = vpop.f32.mrf.mxu0
      %v5644 = vadd.f32 %v5595, %v5643
      %v5645 = vpop.f32.mrf.mxu0
      %v5646 = vadd.f32 %v5597, %v5645
      %5647 = vmatmul.bf16.gmra.mxu0 %v5329
      %v5648 = vpop.f32.mrf.mxu0
      %v5649 = vadd.f32 %v5600, %v5648
      %v5650 = vpop.f32.mrf.mxu0
      %v5651 = vadd.f32 %v5602, %v5650
      %5652 = vmatmul.bf16.gmra.mxu0 %v5333
      %v5653 = vpop.f32.mrf.mxu0
      %v5654 = vadd.f32 %v5605, %v5653
      %v5655 = vpop.f32.mrf.mxu0
      %v5656 = vadd.f32 %v5607, %v5655
      %5657 = vdwg.mxu0
      %5658 = vmatpush.bf16.msra.mxu0 %v5519
      %5659 = vmatpush.bf16.msra.mxu0 %v5518
      %5660 = vmatpush.bf16.msra.mxu0 %v5517
      %5661 = vmatpush.bf16.msra.mxu0 %v5516
      %5662 = vmatpush.bf16.msra.mxu0 %v5515
      %5663 = vmatpush.bf16.msra.mxu0 %v5514
      %5664 = vmatpush.bf16.msra.mxu0 %v5513
      %5665 = vmatpush.bf16.msra.mxu0 %v5512
      %5666 = vmatmul.bf16.gmra.mxu0 %v5306
      %v5667 = vpop.f32.mrf.mxu0
      %v5668 = vadd.f32 %v5619, %v5667
      %v5669 = vpop.f32.mrf.mxu0
      %v5670 = vadd.f32 %v5621, %v5669
      %5671 = vmatmul.bf16.gmra.mxu0 %v5310
      %v5672 = vpop.f32.mrf.mxu0
      %v5673 = vadd.f32 %v5624, %v5672
      %v5674 = vpop.f32.mrf.mxu0
      %v5675 = vadd.f32 %v5626, %v5674
      %5676 = vmatmul.bf16.gmra.mxu0 %v5314
      %v5677 = vpop.f32.mrf.mxu0
      %v5678 = vadd.f32 %v5629, %v5677
      %v5679 = vpop.f32.mrf.mxu0
      %v5680 = vadd.f32 %v5631, %v5679
      %5681 = vmatmul.bf16.gmra.mxu0 %v5318
      %v5682 = vpop.f32.mrf.mxu0
      %v5683 = vadd.f32 %v5634, %v5682
      %v5684 = vpop.f32.mrf.mxu0
      %v5685 = vadd.f32 %v5636, %v5684
      %5686 = vmatmul.bf16.gmra.mxu0 %v5322
      %v5687 = vpop.f32.mrf.mxu0
      %v5688 = vadd.f32 %v5639, %v5687
      %v5689 = vpop.f32.mrf.mxu0
      %v5690 = vadd.f32 %v5641, %v5689
      %5691 = vmatmul.bf16.gmra.mxu0 %v5326
      %v5692 = vpop.f32.mrf.mxu0
      %v5693 = vadd.f32 %v5644, %v5692
      %v5694 = vpop.f32.mrf.mxu0
      %v5695 = vadd.f32 %v5646, %v5694
      %5696 = vmatmul.bf16.gmra.mxu0 %v5330
      %v5697 = vpop.f32.mrf.mxu0
      %v5698 = vadd.f32 %v5649, %v5697
      %v5699 = vpop.f32.mrf.mxu0
      %v5700 = vadd.f32 %v5651, %v5699
      %5701 = vmatmul.bf16.gmra.mxu0 %v5334
      %v5702 = vpop.f32.mrf.mxu0
      %v5703 = vadd.f32 %v5654, %v5702
      %v5704 = vpop.f32.mrf.mxu0
      %v5705 = vadd.f32 %v5656, %v5704
      %5706 = vdwg.mxu0
      %5707 = vmatpush.bf16.msra.mxu0 %v5527
      %5708 = vmatpush.bf16.msra.mxu0 %v5526
      %5709 = vmatpush.bf16.msra.mxu0 %v5525
      %5710 = vmatpush.bf16.msra.mxu0 %v5524
      %5711 = vmatpush.bf16.msra.mxu0 %v5523
      %5712 = vmatpush.bf16.msra.mxu0 %v5522
      %5713 = vmatpush.bf16.msra.mxu0 %v5521
      %5714 = vmatpush.bf16.msra.mxu0 %v5520
      %5715 = vmatmul.bf16.gmra.mxu0 %v5307
      %v5716 = vpop.f32.mrf.mxu0
      %v5717 = vadd.f32 %v5668, %v5716
      %v5718 = vpop.f32.mrf.mxu0
      %v5719 = vadd.f32 %v5670, %v5718
      %5720 = vmatmul.bf16.gmra.mxu0 %v5311
      %v5721 = vpop.f32.mrf.mxu0
      %v5722 = vadd.f32 %v5673, %v5721
      %v5723 = vpop.f32.mrf.mxu0
      %v5724 = vadd.f32 %v5675, %v5723
      %5725 = vmatmul.bf16.gmra.mxu0 %v5315
      %v5726 = vpop.f32.mrf.mxu0
      %v5727 = vadd.f32 %v5678, %v5726
      %v5728 = vpop.f32.mrf.mxu0
      %v5729 = vadd.f32 %v5680, %v5728
      %5730 = vmatmul.bf16.gmra.mxu0 %v5319
      %v5731 = vpop.f32.mrf.mxu0
      %v5732 = vadd.f32 %v5683, %v5731
      %v5733 = vpop.f32.mrf.mxu0
      %v5734 = vadd.f32 %v5685, %v5733
      %5735 = vmatmul.bf16.gmra.mxu0 %v5323
      %v5736 = vpop.f32.mrf.mxu0
      %v5737 = vadd.f32 %v5688, %v5736
      %v5738 = vpop.f32.mrf.mxu0
      %v5739 = vadd.f32 %v5690, %v5738
      %5740 = vmatmul.bf16.gmra.mxu0 %v5327
      %v5741 = vpop.f32.mrf.mxu0
      %v5742 = vadd.f32 %v5693, %v5741
      %v5743 = vpop.f32.mrf.mxu0
      %v5744 = vadd.f32 %v5695, %v5743
      %5745 = vmatmul.bf16.gmra.mxu0 %v5331
      %v5746 = vpop.f32.mrf.mxu0
      %v5747 = vadd.f32 %v5698, %v5746
      %v5748 = vpop.f32.mrf.mxu0
      %v5749 = vadd.f32 %v5700, %v5748
      %5750 = vmatmul.bf16.gmra.mxu0 %v5335
      %v5751 = vpop.f32.mrf.mxu0
      %v5752 = vadd.f32 %v5703, %v5751
      %v5753 = vpop.f32.mrf.mxu0
      %v5754 = vadd.f32 %v5705, %v5753
      %5755 = vdwg.mxu0
      %v5756 = vadd.f32 %v5091, %v5717
      %v5757 = vadd.f32 %v5092, %v5719
      %v5758 = vadd.f32 %v5093, %v5722
      %v5759 = vadd.f32 %v5094, %v5724
      %v5760 = vadd.f32 %v5095, %v5727
      %v5761 = vadd.f32 %v5096, %v5729
      %v5762 = vadd.f32 %v5097, %v5732
      %v5763 = vadd.f32 %v5098, %v5734
      %v5764 = vadd.f32 %v5099, %v5737
      %v5765 = vadd.f32 %v5100, %v5739
      %v5766 = vadd.f32 %v5101, %v5742
      %v5767 = vadd.f32 %v5102, %v5744
      %v5768 = vadd.f32 %v5103, %v5747
      %v5769 = vadd.f32 %v5104, %v5749
      %v5770 = vadd.f32 %v5105, %v5752
      %v5771 = vadd.f32 %v5106, %v5754
      %v5772 = vld [vmem:[%s5110] sm:$0xff]
      %v5773 = vld [vmem:[%s5110 + $0x8] sm:$0xff]
      %v5774 = vld [vmem:[%s5110 + $0x10] sm:$0xff]
      %v5775 = vld [vmem:[%s5110 + $0x18] sm:$0xff]
      %v5776 = vld [vmem:[%s5110 + $0x20] sm:$0x11]
      %v5777 = vld [vmem:[%s5110 + $0x28] sm:$0x11]
      %v5778 = vld [vmem:[%s5110 + $0x30] sm:$0xff]
      %v5779 = vld [vmem:[%s5110 + $0x38] sm:$0xff]
      %v5780 = vld [vmem:[%s5110 + $0x40] sm:$0xff]
      %v5781 = vld [vmem:[%s5110 + $0x48] sm:$0xff]
      %v5782 = vld [vmem:[%s5110 + $0x50] sm:$0x11]
      %v5783 = vld [vmem:[%s5110 + $0x58] sm:$0x11]
      %v5784 = vld [vmem:[%s5110 + $0x60] sm:$0xff]
      %v5785 = vld [vmem:[%s5110 + $0x68] sm:$0xff]
      %v5786 = vld [vmem:[%s5110 + $0x70] sm:$0xff]
      %v5787 = vld [vmem:[%s5110 + $0x78] sm:$0xff]
      %v5788 = vld [vmem:[%s5110 + $0x80] sm:$0x11]
      %v5789 = vld [vmem:[%s5110 + $0x88] sm:$0x11]
      %v5790 = vld [vmem:[%s5110 + $0x90] sm:$0xff]
      %v5791 = vld [vmem:[%s5110 + $0x98] sm:$0xff]
      %v5792 = vld [vmem:[%s5110 + $0xa0] sm:$0xff]
      %v5793 = vld [vmem:[%s5110 + $0xa8] sm:$0xff]
      %v5794 = vld [vmem:[%s5110 + $0xb0] sm:$0x11]
      %v5795 = vld [vmem:[%s5110 + $0xb8] sm:$0x11]
      %v5796 = vld [vmem:[%s5110 + $0xc0] sm:$0xff]
      %v5797 = vld [vmem:[%s5110 + $0xc8] sm:$0xff]
      %v5798 = vld [vmem:[%s5110 + $0xd0] sm:$0xff]
      %v5799 = vld [vmem:[%s5110 + $0xd8] sm:$0xff]
      %v5800 = vld [vmem:[%s5110 + $0xe0] sm:$0x11]
      %v5801 = vld [vmem:[%s5110 + $0xe8] sm:$0x11]
      %v5802 = vld [vmem:[%s5110 + $0xf0] sm:$0xff]
      %v5803 = vld [vmem:[%s5110 + $0xf8] sm:$0xff]
      %v5804 = vld [vmem:[%s5110 + $0x100] sm:$0xff]
      %v5805 = vld [vmem:[%s5110 + $0x108] sm:$0xff]
      %v5806 = vld [vmem:[%s5110 + $0x110] sm:$0x11]
      %v5807 = vld [vmem:[%s5110 + $0x118] sm:$0x11]
      %v5808 = vld [vmem:[%s5110 + $0x120] sm:$0xff]
      %v5809 = vld [vmem:[%s5110 + $0x128] sm:$0xff]
      %v5810 = vld [vmem:[%s5110 + $0x130] sm:$0xff]
      %v5811 = vld [vmem:[%s5110 + $0x138] sm:$0xff]
      %v5812 = vld [vmem:[%s5110 + $0x140] sm:$0x11]
      %v5813 = vld [vmem:[%s5110 + $0x148] sm:$0x11]
      %v5814 = vld [vmem:[%s5110 + $0x150] sm:$0xff]
      %v5815 = vld [vmem:[%s5110 + $0x158] sm:$0xff]
      %v5816 = vld [vmem:[%s5110 + $0x160] sm:$0xff]
      %v5817 = vld [vmem:[%s5110 + $0x168] sm:$0xff]
      %v5818 = vld [vmem:[%s5110 + $0x170] sm:$0x11]
      %v5819 = vld [vmem:[%s5110 + $0x178] sm:$0x11]
      %v5821 = vshrl.u32 %v5772, 16
      %v5823 = vrot.slane %v5821, 4
      %v5824 = vshll.u32 %v5772, 16
      %v5826 = vrot.slane %v5824, 5
      %v5827 = vor.u32 %v5823, %v5826
      %v5828 = vrot.slane %v5827, 4
      %v5830 = vshll.u32 %v5774, 16
      %v5832 = vrot.slane %v5830, 5
      %v5833 = vsel %vm366, %v5828, %v5832
      %v5835 = vshrl.u32 %v5773, 16
      %v5837 = vrot.slane %v5835, 4
      %v5838 = vshll.u32 %v5773, 16
      %v5840 = vrot.slane %v5838, 5
      %v5841 = vor.u32 %v5837, %v5840
      %v5842 = vrot.slane %v5841, 4
      %v5844 = vshll.u32 %v5775, 16
      %v5846 = vrot.slane %v5844, 5
      %v5847 = vsel %vm366, %v5842, %v5846
      %v5848 = vshrl.u32 %v5774, 16
      %v5850 = vrot.slane %v5848, 4
      %v5851 = vor.u32 %v5850, %v5832
      %v5852 = vrot.slane %v5851, 4
      %v5854 = vshll.u32 %v5776, 16
      %v5856 = vrot.slane %v5854, 5
      %v5857 = vsel %vm366, %v5852, %v5856
      %v5858 = vshrl.u32 %v5775, 16
      %v5860 = vrot.slane %v5858, 4
      %v5861 = vor.u32 %v5860, %v5846
      %v5862 = vrot.slane %v5861, 4
      %v5864 = vshll.u32 %v5777, 16
      %v5866 = vrot.slane %v5864, 5
      %v5867 = vsel %vm366, %v5862, %v5866
      %v5869 = vshrl.u32 %v5778, 16
      %v5871 = vrot.slane %v5869, 4
      %v5872 = vshll.u32 %v5778, 16
      %v5874 = vrot.slane %v5872, 5
      %v5875 = vor.u32 %v5871, %v5874
      %v5876 = vrot.slane %v5875, 4
      %v5878 = vshll.u32 %v5780, 16
      %v5880 = vrot.slane %v5878, 5
      %v5881 = vsel %vm366, %v5876, %v5880
      %v5883 = vshrl.u32 %v5779, 16
      %v5885 = vrot.slane %v5883, 4
      %v5886 = vshll.u32 %v5779, 16
      %v5888 = vrot.slane %v5886, 5
      %v5889 = vor.u32 %v5885, %v5888
      %v5890 = vrot.slane %v5889, 4
      %v5892 = vshll.u32 %v5781, 16
      %v5894 = vrot.slane %v5892, 5
      %v5895 = vsel %vm366, %v5890, %v5894
      %v5896 = vshrl.u32 %v5780, 16
      %v5898 = vrot.slane %v5896, 4
      %v5899 = vor.u32 %v5898, %v5880
      %v5900 = vrot.slane %v5899, 4
      %v5902 = vshll.u32 %v5782, 16
      %v5904 = vrot.slane %v5902, 5
      %v5905 = vsel %vm366, %v5900, %v5904
      %v5906 = vshrl.u32 %v5781, 16
      %v5908 = vrot.slane %v5906, 4
      %v5909 = vor.u32 %v5908, %v5894
      %v5910 = vrot.slane %v5909, 4
      %v5912 = vshll.u32 %v5783, 16
      %v5914 = vrot.slane %v5912, 5
      %v5915 = vsel %vm366, %v5910, %v5914
      %v5917 = vshrl.u32 %v5784, 16
      %v5919 = vrot.slane %v5917, 4
      %v5920 = vshll.u32 %v5784, 16
      %v5922 = vrot.slane %v5920, 5
      %v5923 = vor.u32 %v5919, %v5922
      %v5924 = vrot.slane %v5923, 4
      %v5926 = vshll.u32 %v5786, 16
      %v5928 = vrot.slane %v5926, 5
      %v5929 = vsel %vm366, %v5924, %v5928
      %v5931 = vshrl.u32 %v5785, 16
      %v5933 = vrot.slane %v5931, 4
      %v5934 = vshll.u32 %v5785, 16
      %v5936 = vrot.slane %v5934, 5
      %v5937 = vor.u32 %v5933, %v5936
      %v5938 = vrot.slane %v5937, 4
      %v5940 = vshll.u32 %v5787, 16
      %v5942 = vrot.slane %v5940, 5
      %v5943 = vsel %vm366, %v5938, %v5942
      %v5944 = vshrl.u32 %v5786, 16
      %v5946 = vrot.slane %v5944, 4
      %v5947 = vor.u32 %v5946, %v5928
      %v5948 = vrot.slane %v5947, 4
      %v5950 = vshll.u32 %v5788, 16
      %v5952 = vrot.slane %v5950, 5
      %v5953 = vsel %vm366, %v5948, %v5952
      %v5954 = vshrl.u32 %v5787, 16
      %v5956 = vrot.slane %v5954, 4
      %v5957 = vor.u32 %v5956, %v5942
      %v5958 = vrot.slane %v5957, 4
      %v5960 = vshll.u32 %v5789, 16
      %v5962 = vrot.slane %v5960, 5
      %v5963 = vsel %vm366, %v5958, %v5962
      %v5965 = vshrl.u32 %v5790, 16
      %v5967 = vrot.slane %v5965, 4
      %v5968 = vshll.u32 %v5790, 16
      %v5970 = vrot.slane %v5968, 5
      %v5971 = vor.u32 %v5967, %v5970
      %v5972 = vrot.slane %v5971, 4
      %v5974 = vshll.u32 %v5792, 16
      %v5976 = vrot.slane %v5974, 5
      %v5977 = vsel %vm366, %v5972, %v5976
      %v5979 = vshrl.u32 %v5791, 16
      %v5981 = vrot.slane %v5979, 4
      %v5982 = vshll.u32 %v5791, 16
      %v5984 = vrot.slane %v5982, 5
      %v5985 = vor.u32 %v5981, %v5984
      %v5986 = vrot.slane %v5985, 4
      %v5988 = vshll.u32 %v5793, 16
      %v5990 = vrot.slane %v5988, 5
      %v5991 = vsel %vm366, %v5986, %v5990
      %v5992 = vshrl.u32 %v5792, 16
      %v5994 = vrot.slane %v5992, 4
      %v5995 = vor.u32 %v5994, %v5976
      %v5996 = vrot.slane %v5995, 4
      %v5998 = vshll.u32 %v5794, 16
      %v6000 = vrot.slane %v5998, 5
      %v6001 = vsel %vm366, %v5996, %v6000
      %v6002 = vshrl.u32 %v5793, 16
      %v6004 = vrot.slane %v6002, 4
      %v6005 = vor.u32 %v6004, %v5990
      %v6006 = vrot.slane %v6005, 4
      %v6008 = vshll.u32 %v5795, 16
      %v6010 = vrot.slane %v6008, 5
      %v6011 = vsel %vm366, %v6006, %v6010
      %v6013 = vshrl.u32 %v5796, 16
      %v6015 = vrot.slane %v6013, 4
      %v6016 = vshll.u32 %v5796, 16
      %v6018 = vrot.slane %v6016, 5
      %v6019 = vor.u32 %v6015, %v6018
      %v6020 = vrot.slane %v6019, 4
      %v6022 = vshll.u32 %v5798, 16
      %v6024 = vrot.slane %v6022, 5
      %v6025 = vsel %vm366, %v6020, %v6024
      %v6027 = vshrl.u32 %v5797, 16
      %v6029 = vrot.slane %v6027, 4
      %v6030 = vshll.u32 %v5797, 16
      %v6032 = vrot.slane %v6030, 5
      %v6033 = vor.u32 %v6029, %v6032
      %v6034 = vrot.slane %v6033, 4
      %v6036 = vshll.u32 %v5799, 16
      %v6038 = vrot.slane %v6036, 5
      %v6039 = vsel %vm366, %v6034, %v6038
      %v6040 = vshrl.u32 %v5798, 16
      %v6042 = vrot.slane %v6040, 4
      %v6043 = vor.u32 %v6042, %v6024
      %v6044 = vrot.slane %v6043, 4
      %v6046 = vshll.u32 %v5800, 16
      %v6048 = vrot.slane %v6046, 5
      %v6049 = vsel %vm366, %v6044, %v6048
      %v6050 = vshrl.u32 %v5799, 16
      %v6052 = vrot.slane %v6050, 4
      %v6053 = vor.u32 %v6052, %v6038
      %v6054 = vrot.slane %v6053, 4
      %v6056 = vshll.u32 %v5801, 16
      %v6058 = vrot.slane %v6056, 5
      %v6059 = vsel %vm366, %v6054, %v6058
      %v6061 = vshrl.u32 %v5802, 16
      %v6063 = vrot.slane %v6061, 4
      %v6064 = vshll.u32 %v5802, 16
      %v6066 = vrot.slane %v6064, 5
      %v6067 = vor.u32 %v6063, %v6066
      %v6068 = vrot.slane %v6067, 4
      %v6070 = vshll.u32 %v5804, 16
      %v6072 = vrot.slane %v6070, 5
      %v6073 = vsel %vm366, %v6068, %v6072
      %v6075 = vshrl.u32 %v5803, 16
      %v6077 = vrot.slane %v6075, 4
      %v6078 = vshll.u32 %v5803, 16
      %v6080 = vrot.slane %v6078, 5
      %v6081 = vor.u32 %v6077, %v6080
      %v6082 = vrot.slane %v6081, 4
      %v6084 = vshll.u32 %v5805, 16
      %v6086 = vrot.slane %v6084, 5
      %v6087 = vsel %vm366, %v6082, %v6086
      %v6088 = vshrl.u32 %v5804, 16
      %v6090 = vrot.slane %v6088, 4
      %v6091 = vor.u32 %v6090, %v6072
      %v6092 = vrot.slane %v6091, 4
      %v6094 = vshll.u32 %v5806, 16
      %v6096 = vrot.slane %v6094, 5
      %v6097 = vsel %vm366, %v6092, %v6096
      %v6098 = vshrl.u32 %v5805, 16
      %v6100 = vrot.slane %v6098, 4
      %v6101 = vor.u32 %v6100, %v6086
      %v6102 = vrot.slane %v6101, 4
      %v6104 = vshll.u32 %v5807, 16
      %v6106 = vrot.slane %v6104, 5
      %v6107 = vsel %vm366, %v6102, %v6106
      %v6109 = vshrl.u32 %v5808, 16
      %v6111 = vrot.slane %v6109, 4
      %v6112 = vshll.u32 %v5808, 16
      %v6114 = vrot.slane %v6112, 5
      %v6115 = vor.u32 %v6111, %v6114
      %v6116 = vrot.slane %v6115, 4
      %v6118 = vshll.u32 %v5810, 16
      %v6120 = vrot.slane %v6118, 5
      %v6121 = vsel %vm366, %v6116, %v6120
      %v6123 = vshrl.u32 %v5809, 16
      %v6125 = vrot.slane %v6123, 4
      %v6126 = vshll.u32 %v5809, 16
      %v6128 = vrot.slane %v6126, 5
      %v6129 = vor.u32 %v6125, %v6128
      %v6130 = vrot.slane %v6129, 4
      %v6132 = vshll.u32 %v5811, 16
      %v6134 = vrot.slane %v6132, 5
      %v6135 = vsel %vm366, %v6130, %v6134
      %v6136 = vshrl.u32 %v5810, 16
      %v6138 = vrot.slane %v6136, 4
      %v6139 = vor.u32 %v6138, %v6120
      %v6140 = vrot.slane %v6139, 4
      %v6142 = vshll.u32 %v5812, 16
      %v6144 = vrot.slane %v6142, 5
      %v6145 = vsel %vm366, %v6140, %v6144
      %v6146 = vshrl.u32 %v5811, 16
      %v6148 = vrot.slane %v6146, 4
      %v6149 = vor.u32 %v6148, %v6134
      %v6150 = vrot.slane %v6149, 4
      %v6152 = vshll.u32 %v5813, 16
      %v6154 = vrot.slane %v6152, 5
      %v6155 = vsel %vm366, %v6150, %v6154
      %v6157 = vshrl.u32 %v5814, 16
      %v6159 = vrot.slane %v6157, 4
      %v6160 = vshll.u32 %v5814, 16
      %v6162 = vrot.slane %v6160, 5
      %v6163 = vor.u32 %v6159, %v6162
      %v6164 = vrot.slane %v6163, 4
      %v6166 = vshll.u32 %v5816, 16
      %v6168 = vrot.slane %v6166, 5
      %v6169 = vsel %vm366, %v6164, %v6168
      %v6171 = vshrl.u32 %v5815, 16
      %v6173 = vrot.slane %v6171, 4
      %v6174 = vshll.u32 %v5815, 16
      %v6176 = vrot.slane %v6174, 5
      %v6177 = vor.u32 %v6173, %v6176
      %v6178 = vrot.slane %v6177, 4
      %v6180 = vshll.u32 %v5817, 16
      %v6182 = vrot.slane %v6180, 5
      %v6183 = vsel %vm366, %v6178, %v6182
      %v6184 = vshrl.u32 %v5816, 16
      %v6186 = vrot.slane %v6184, 4
      %v6187 = vor.u32 %v6186, %v6168
      %v6188 = vrot.slane %v6187, 4
      %v6190 = vshll.u32 %v5818, 16
      %v6192 = vrot.slane %v6190, 5
      %v6193 = vsel %vm366, %v6188, %v6192
      %v6194 = vshrl.u32 %v5817, 16
      %v6196 = vrot.slane %v6194, 4
      %v6197 = vor.u32 %v6196, %v6182
      %v6198 = vrot.slane %v6197, 4
      %v6200 = vshll.u32 %v5819, 16
      %v6202 = vrot.slane %v6200, 5
      %v6203 = vsel %vm366, %v6198, %v6202
      %s6204 = scalar_lea.vmem %s1, 1792
      %v6205 = vld [vmem:[%s6204] sm:$0xf]
      %v6206 = vld [vmem:[%s6204 + $0x4] sm:$0xf]
      %v6207 = vld [vmem:[%s6204 + $0x8] sm:$0xf]
      %v6208 = vld [vmem:[%s6204 + $0xc] sm:$0xf]
      %v6209 = vld [vmem:[%s6204 + $0x10] sm:$0xf]
      %v6210 = vld [vmem:[%s6204 + $0x14] sm:$0xf]
      %v6211 = vld [vmem:[%s6204 + $0x18] sm:$0xf]
      %v6212 = vld [vmem:[%s6204 + $0x1c] sm:$0xf]
      %v6213 = vld [vmem:[%s6204 + $0x20] sm:$0xf]
      %v6214 = vld [vmem:[%s6204 + $0x24] sm:$0xf]
      %v6215 = vld [vmem:[%s6204 + $0x28] sm:$0xf]
      %v6216 = vld [vmem:[%s6204 + $0x2c] sm:$0xf]
      %v6217 = vld [vmem:[%s6204 + $0x30] sm:$0xf]
      %v6218 = vld [vmem:[%s6204 + $0x34] sm:$0xf]
      %v6219 = vld [vmem:[%s6204 + $0x38] sm:$0xf]
      %v6220 = vld [vmem:[%s6204 + $0x3c] sm:$0xf]
      %v6221 = vld [vmem:[%s6204 + $0x40] sm:$0xf]
      %v6222 = vld [vmem:[%s6204 + $0x44] sm:$0xf]
      %v6223 = vld [vmem:[%s6204 + $0x48] sm:$0xf]
      %v6224 = vld [vmem:[%s6204 + $0x4c] sm:$0xf]
      %v6225 = vld [vmem:[%s6204 + $0x50] sm:$0xf]
      %v6226 = vld [vmem:[%s6204 + $0x54] sm:$0xf]
      %v6227 = vld [vmem:[%s6204 + $0x58] sm:$0xf]
      %v6228 = vld [vmem:[%s6204 + $0x5c] sm:$0xf]
      %v6229 = vld [vmem:[%s6204 + $0x60] sm:$0xf]
      %v6230 = vld [vmem:[%s6204 + $0x64] sm:$0xf]
      %v6231 = vld [vmem:[%s6204 + $0x68] sm:$0xf]
      %v6232 = vld [vmem:[%s6204 + $0x6c] sm:$0xf]
      %v6233 = vld [vmem:[%s6204 + $0x70] sm:$0xf]
      %v6234 = vld [vmem:[%s6204 + $0x74] sm:$0xf]
      %v6235 = vld [vmem:[%s6204 + $0x78] sm:$0xf]
      %v6236 = vld [vmem:[%s6204 + $0x7c] sm:$0xf]
      %v6237 = vld [vmem:[%s6204 + $0x80] sm:$0xf]
      %v6238 = vld [vmem:[%s6204 + $0x84] sm:$0xf]
      %v6239 = vld [vmem:[%s6204 + $0x88] sm:$0xf]
      %v6240 = vld [vmem:[%s6204 + $0x8c] sm:$0xf]
      %v6241 = vld [vmem:[%s6204 + $0x90] sm:$0xf]
      %v6242 = vld [vmem:[%s6204 + $0x94] sm:$0xf]
      %v6243 = vld [vmem:[%s6204 + $0x98] sm:$0xf]
      %v6244 = vld [vmem:[%s6204 + $0x9c] sm:$0xf]
      %v6245 = vld [vmem:[%s6204 + $0xa0] sm:$0xf]
      %v6246 = vld [vmem:[%s6204 + $0xa4] sm:$0xf]
      %v6247 = vld [vmem:[%s6204 + $0xa8] sm:$0xf]
      %v6248 = vld [vmem:[%s6204 + $0xac] sm:$0xf]
      %v6249 = vld [vmem:[%s6204 + $0xb0] sm:$0xf]
      %v6250 = vld [vmem:[%s6204 + $0xb4] sm:$0xf]
      %v6251 = vld [vmem:[%s6204 + $0xb8] sm:$0xf]
      %v6252 = vld [vmem:[%s6204 + $0xbc] sm:$0xf]
      %v6253 = vld [vmem:[%s6204 + $0xc0] sm:$0xf]
      %v6254 = vld [vmem:[%s6204 + $0xc4] sm:$0xf]
      %v6255 = vld [vmem:[%s6204 + $0xc8] sm:$0xf]
      %v6256 = vld [vmem:[%s6204 + $0xcc] sm:$0xf]
      %v6257 = vld [vmem:[%s6204 + $0xd0] sm:$0xf]
      %v6258 = vld [vmem:[%s6204 + $0xd4] sm:$0xf]
      %v6259 = vld [vmem:[%s6204 + $0xd8] sm:$0xf]
      %v6260 = vld [vmem:[%s6204 + $0xdc] sm:$0xf]
      %v6261 = vld [vmem:[%s6204 + $0xe0] sm:$0xf]
      %v6262 = vld [vmem:[%s6204 + $0xe4] sm:$0xf]
      %v6263 = vld [vmem:[%s6204 + $0xe8] sm:$0xf]
      %v6264 = vld [vmem:[%s6204 + $0xec] sm:$0xf]
      %v6265 = vld [vmem:[%s6204 + $0xf0] sm:$0xf]
      %v6266 = vld [vmem:[%s6204 + $0xf4] sm:$0xf]
      %v6267 = vld [vmem:[%s6204 + $0xf8] sm:$0xf]
      %v6268 = vld [vmem:[%s6204 + $0xfc] sm:$0xf]
      %v6269 = vunpack.c.l.b16 %v5833
      %v6270 = vunpack.c.h.b16 %v5833
      %v6271 = vunpack.c.l.b16 %v5847
      %v6272 = vunpack.c.h.b16 %v5847
      %v6273 = vunpack.c.l.b16 %v5857
      %v6274 = vunpack.c.h.b16 %v5857
      %v6275 = vunpack.c.l.b16 %v5867
      %v6276 = vunpack.c.h.b16 %v5867
      %v6277 = vunpack.c.l.b16 %v5881
      %v6278 = vunpack.c.h.b16 %v5881
      %v6279 = vunpack.c.l.b16 %v5895
      %v6280 = vunpack.c.h.b16 %v5895
      %v6281 = vunpack.c.l.b16 %v5905
      %v6282 = vunpack.c.h.b16 %v5905
      %v6283 = vunpack.c.l.b16 %v5915
      %v6284 = vunpack.c.h.b16 %v5915
      %v6285 = vunpack.c.l.b16 %v5929
      %v6286 = vunpack.c.h.b16 %v5929
      %v6287 = vunpack.c.l.b16 %v5943
      %v6288 = vunpack.c.h.b16 %v5943
      %v6289 = vunpack.c.l.b16 %v5953
      %v6290 = vunpack.c.h.b16 %v5953
      %v6291 = vunpack.c.l.b16 %v5963
      %v6292 = vunpack.c.h.b16 %v5963
      %v6293 = vunpack.c.l.b16 %v5977
      %v6294 = vunpack.c.h.b16 %v5977
      %v6295 = vunpack.c.l.b16 %v5991
      %v6296 = vunpack.c.h.b16 %v5991
      %v6297 = vunpack.c.l.b16 %v6001
      %v6298 = vunpack.c.h.b16 %v6001
      %v6299 = vunpack.c.l.b16 %v6011
      %v6300 = vunpack.c.h.b16 %v6011
      %v6301 = vunpack.c.l.b16 %v6025
      %v6302 = vunpack.c.h.b16 %v6025
      %v6303 = vunpack.c.l.b16 %v6039
      %v6304 = vunpack.c.h.b16 %v6039
      %v6305 = vunpack.c.l.b16 %v6049
      %v6306 = vunpack.c.h.b16 %v6049
      %v6307 = vunpack.c.l.b16 %v6059
      %v6308 = vunpack.c.h.b16 %v6059
      %v6309 = vunpack.c.l.b16 %v6073
      %v6310 = vunpack.c.h.b16 %v6073
      %v6311 = vunpack.c.l.b16 %v6087
      %v6312 = vunpack.c.h.b16 %v6087
      %v6313 = vunpack.c.l.b16 %v6097
      %v6314 = vunpack.c.h.b16 %v6097
      %v6315 = vunpack.c.l.b16 %v6107
      %v6316 = vunpack.c.h.b16 %v6107
      %v6317 = vunpack.c.l.b16 %v6121
      %v6318 = vunpack.c.h.b16 %v6121
      %v6319 = vunpack.c.l.b16 %v6135
      %v6320 = vunpack.c.h.b16 %v6135
      %v6321 = vunpack.c.l.b16 %v6145
      %v6322 = vunpack.c.h.b16 %v6145
      %v6323 = vunpack.c.l.b16 %v6155
      %v6324 = vunpack.c.h.b16 %v6155
      %v6325 = vunpack.c.l.b16 %v6169
      %v6326 = vunpack.c.h.b16 %v6169
      %v6327 = vunpack.c.l.b16 %v6183
      %v6328 = vunpack.c.h.b16 %v6183
      %v6329 = vunpack.c.l.b16 %v6193
      %v6330 = vunpack.c.h.b16 %v6193
      %v6331 = vunpack.c.l.b16 %v6203
      %v6332 = vunpack.c.h.b16 %v6203
      %v6333 = vpack.c.b16 %v6273, %v6269
      %v6334 = vpack.c.b16 %v6274, %v6270
      %v6335 = vpack.c.b16 %v6275, %v6271
      %v6336 = vpack.c.b16 %v6276, %v6272
      %v6337 = vpack.c.b16 %v6281, %v6277
      %v6338 = vpack.c.b16 %v6282, %v6278
      %v6339 = vpack.c.b16 %v6283, %v6279
      %v6340 = vpack.c.b16 %v6284, %v6280
      %v6341 = vpack.c.b16 %v6289, %v6285
      %v6342 = vpack.c.b16 %v6290, %v6286
      %v6343 = vpack.c.b16 %v6291, %v6287
      %v6344 = vpack.c.b16 %v6292, %v6288
      %v6345 = vpack.c.b16 %v6297, %v6293
      %v6346 = vpack.c.b16 %v6298, %v6294
      %v6347 = vpack.c.b16 %v6299, %v6295
      %v6348 = vpack.c.b16 %v6300, %v6296
      %v6349 = vpack.c.b16 %v6305, %v6301
      %v6350 = vpack.c.b16 %v6306, %v6302
      %v6351 = vpack.c.b16 %v6307, %v6303
      %v6352 = vpack.c.b16 %v6308, %v6304
      %v6353 = vpack.c.b16 %v6313, %v6309
      %v6354 = vpack.c.b16 %v6314, %v6310
      %v6355 = vpack.c.b16 %v6315, %v6311
      %v6356 = vpack.c.b16 %v6316, %v6312
      %v6357 = vpack.c.b16 %v6321, %v6317
      %v6358 = vpack.c.b16 %v6322, %v6318
      %v6359 = vpack.c.b16 %v6323, %v6319
      %v6360 = vpack.c.b16 %v6324, %v6320
      %v6361 = vpack.c.b16 %v6329, %v6325
      %v6362 = vpack.c.b16 %v6330, %v6326
      %v6363 = vpack.c.b16 %v6331, %v6327
      %v6364 = vpack.c.b16 %v6332, %v6328
      %v6461 = vunpack.c.l.b16 %v6205
      %v6462 = vunpack.c.l.b16 %v6206
      %v6463 = vunpack.c.l.b16 %v6207
      %v6464 = vunpack.c.l.b16 %v6208
      %v6465 = vunpack.c.l.b16 %v6209
      %v6466 = vunpack.c.l.b16 %v6210
      %v6467 = vunpack.c.l.b16 %v6211
      %v6468 = vunpack.c.l.b16 %v6212
      %v6469 = vunpack.c.l.b16 %v6213
      %v6470 = vunpack.c.l.b16 %v6214
      %v6471 = vunpack.c.l.b16 %v6215
      %v6472 = vunpack.c.l.b16 %v6216
      %v6473 = vunpack.c.l.b16 %v6217
      %v6474 = vunpack.c.l.b16 %v6218
      %v6475 = vunpack.c.l.b16 %v6219
      %v6476 = vunpack.c.l.b16 %v6220
      %v6477 = vunpack.c.l.b16 %v6221
      %v6478 = vunpack.c.l.b16 %v6222
      %v6479 = vunpack.c.l.b16 %v6223
      %v6480 = vunpack.c.l.b16 %v6224
      %v6481 = vunpack.c.l.b16 %v6225
      %v6482 = vunpack.c.l.b16 %v6226
      %v6483 = vunpack.c.l.b16 %v6227
      %v6484 = vunpack.c.l.b16 %v6228
      %v6485 = vunpack.c.l.b16 %v6229
      %v6486 = vunpack.c.l.b16 %v6230
      %v6487 = vunpack.c.l.b16 %v6231
      %v6488 = vunpack.c.l.b16 %v6232
      %v6489 = vunpack.c.l.b16 %v6233
      %v6490 = vunpack.c.l.b16 %v6234
      %v6491 = vunpack.c.l.b16 %v6235
      %v6492 = vunpack.c.l.b16 %v6236
      %v6493 = vunpack.c.l.b16 %v6237
      %v6494 = vunpack.c.l.b16 %v6238
      %v6495 = vunpack.c.l.b16 %v6239
      %v6496 = vunpack.c.l.b16 %v6240
      %v6497 = vunpack.c.l.b16 %v6241
      %v6498 = vunpack.c.l.b16 %v6242
      %v6499 = vunpack.c.l.b16 %v6243
      %v6500 = vunpack.c.l.b16 %v6244
      %v6501 = vunpack.c.l.b16 %v6245
      %v6502 = vunpack.c.l.b16 %v6246
      %v6503 = vunpack.c.l.b16 %v6247
      %v6504 = vunpack.c.l.b16 %v6248
      %v6505 = vunpack.c.l.b16 %v6249
      %v6506 = vunpack.c.l.b16 %v6250
      %v6507 = vunpack.c.l.b16 %v6251
      %v6508 = vunpack.c.l.b16 %v6252
      %v6509 = vunpack.c.l.b16 %v6253
      %v6510 = vunpack.c.l.b16 %v6254
      %v6511 = vunpack.c.l.b16 %v6255
      %v6512 = vunpack.c.l.b16 %v6256
      %v6513 = vunpack.c.l.b16 %v6257
      %v6514 = vunpack.c.l.b16 %v6258
      %v6515 = vunpack.c.l.b16 %v6259
      %v6516 = vunpack.c.l.b16 %v6260
      %v6517 = vunpack.c.l.b16 %v6261
      %v6518 = vunpack.c.l.b16 %v6262
      %v6519 = vunpack.c.l.b16 %v6263
      %v6520 = vunpack.c.l.b16 %v6264
      %v6521 = vunpack.c.l.b16 %v6265
      %v6522 = vunpack.c.l.b16 %v6266
      %v6523 = vunpack.c.l.b16 %v6267
      %v6524 = vunpack.c.l.b16 %v6268
      %v6525 = vpack.c.b16 %v6462, %v6461
      %v6526 = vpack.c.b16 %v6464, %v6463
      %v6527 = vpack.c.b16 %v6466, %v6465
      %v6528 = vpack.c.b16 %v6468, %v6467
      %v6529 = vpack.c.b16 %v6470, %v6469
      %v6530 = vpack.c.b16 %v6472, %v6471
      %v6531 = vpack.c.b16 %v6474, %v6473
      %v6532 = vpack.c.b16 %v6476, %v6475
      %v6533 = vpack.c.b16 %v6478, %v6477
      %v6534 = vpack.c.b16 %v6480, %v6479
      %v6535 = vpack.c.b16 %v6482, %v6481
      %v6536 = vpack.c.b16 %v6484, %v6483
      %v6537 = vpack.c.b16 %v6486, %v6485
      %v6538 = vpack.c.b16 %v6488, %v6487
      %v6539 = vpack.c.b16 %v6490, %v6489
      %v6540 = vpack.c.b16 %v6492, %v6491
      %v6541 = vpack.c.b16 %v6494, %v6493
      %v6542 = vpack.c.b16 %v6496, %v6495
      %v6543 = vpack.c.b16 %v6498, %v6497
      %v6544 = vpack.c.b16 %v6500, %v6499
      %v6545 = vpack.c.b16 %v6502, %v6501
      %v6546 = vpack.c.b16 %v6504, %v6503
      %v6547 = vpack.c.b16 %v6506, %v6505
      %v6548 = vpack.c.b16 %v6508, %v6507
      %v6549 = vpack.c.b16 %v6510, %v6509
      %v6550 = vpack.c.b16 %v6512, %v6511
      %v6551 = vpack.c.b16 %v6514, %v6513
      %v6552 = vpack.c.b16 %v6516, %v6515
      %v6553 = vpack.c.b16 %v6518, %v6517
      %v6554 = vpack.c.b16 %v6520, %v6519
      %v6555 = vpack.c.b16 %v6522, %v6521
      %v6556 = vpack.c.b16 %v6524, %v6523
      %6589 = vmatpush.bf16.msra.mxu0 %v6532
      %6590 = vmatpush.bf16.msra.mxu0 %v6531
      %6591 = vmatpush.bf16.msra.mxu0 %v6530
      %6592 = vmatpush.bf16.msra.mxu0 %v6529
      %6593 = vmatpush.bf16.msra.mxu0 %v6528
      %6594 = vmatpush.bf16.msra.mxu0 %v6527
      %6595 = vmatpush.bf16.msra.mxu0 %v6526
      %6596 = vmatpush.bf16.msra.mxu0 %v6525
      %6597 = vmatmul.bf16.gmra.mxu0 %v6333
      %v6598 = vpop.f32.mrf.mxu0
      %v6599 = vadd.f32 0.0, %v6598
      %v6600 = vpop.f32.mrf.mxu0
      %v6601 = vadd.f32 0.0, %v6600
      %6602 = vmatmul.bf16.gmra.mxu0 %v6337
      %v6603 = vpop.f32.mrf.mxu0
      %v6604 = vadd.f32 0.0, %v6603
      %v6605 = vpop.f32.mrf.mxu0
      %v6606 = vadd.f32 0.0, %v6605
      %6607 = vmatmul.bf16.gmra.mxu0 %v6341
      %v6608 = vpop.f32.mrf.mxu0
      %v6609 = vadd.f32 0.0, %v6608
      %v6610 = vpop.f32.mrf.mxu0
      %v6611 = vadd.f32 0.0, %v6610
      %6612 = vmatmul.bf16.gmra.mxu0 %v6345
      %v6613 = vpop.f32.mrf.mxu0
      %v6614 = vadd.f32 0.0, %v6613
      %v6615 = vpop.f32.mrf.mxu0
      %v6616 = vadd.f32 0.0, %v6615
      %6617 = vmatmul.bf16.gmra.mxu0 %v6349
      %v6618 = vpop.f32.mrf.mxu0
      %v6619 = vadd.f32 0.0, %v6618
      %v6620 = vpop.f32.mrf.mxu0
      %v6621 = vadd.f32 0.0, %v6620
      %6622 = vmatmul.bf16.gmra.mxu0 %v6353
      %v6623 = vpop.f32.mrf.mxu0
      %v6624 = vadd.f32 0.0, %v6623
      %v6625 = vpop.f32.mrf.mxu0
      %v6626 = vadd.f32 0.0, %v6625
      %6627 = vmatmul.bf16.gmra.mxu0 %v6357
      %v6628 = vpop.f32.mrf.mxu0
      %v6629 = vadd.f32 0.0, %v6628
      %v6630 = vpop.f32.mrf.mxu0
      %v6631 = vadd.f32 0.0, %v6630
      %6632 = vmatmul.bf16.gmra.mxu0 %v6361
      %v6633 = vpop.f32.mrf.mxu0
      %v6634 = vadd.f32 0.0, %v6633
      %v6635 = vpop.f32.mrf.mxu0
      %v6636 = vadd.f32 0.0, %v6635
      %6637 = vdwg.mxu0
      %6638 = vmatpush.bf16.msra.mxu0 %v6540
      %6639 = vmatpush.bf16.msra.mxu0 %v6539
      %6640 = vmatpush.bf16.msra.mxu0 %v6538
      %6641 = vmatpush.bf16.msra.mxu0 %v6537
      %6642 = vmatpush.bf16.msra.mxu0 %v6536
      %6643 = vmatpush.bf16.msra.mxu0 %v6535
      %6644 = vmatpush.bf16.msra.mxu0 %v6534
      %6645 = vmatpush.bf16.msra.mxu0 %v6533
      %6646 = vmatmul.bf16.gmra.mxu0 %v6334
      %v6647 = vpop.f32.mrf.mxu0
      %v6648 = vadd.f32 %v6599, %v6647
      %v6649 = vpop.f32.mrf.mxu0
      %v6650 = vadd.f32 %v6601, %v6649
      %6651 = vmatmul.bf16.gmra.mxu0 %v6338
      %v6652 = vpop.f32.mrf.mxu0
      %v6653 = vadd.f32 %v6604, %v6652
      %v6654 = vpop.f32.mrf.mxu0
      %v6655 = vadd.f32 %v6606, %v6654
      %6656 = vmatmul.bf16.gmra.mxu0 %v6342
      %v6657 = vpop.f32.mrf.mxu0
      %v6658 = vadd.f32 %v6609, %v6657
      %v6659 = vpop.f32.mrf.mxu0
      %v6660 = vadd.f32 %v6611, %v6659
      %6661 = vmatmul.bf16.gmra.mxu0 %v6346
      %v6662 = vpop.f32.mrf.mxu0
      %v6663 = vadd.f32 %v6614, %v6662
      %v6664 = vpop.f32.mrf.mxu0
      %v6665 = vadd.f32 %v6616, %v6664
      %6666 = vmatmul.bf16.gmra.mxu0 %v6350
      %v6667 = vpop.f32.mrf.mxu0
      %v6668 = vadd.f32 %v6619, %v6667
      %v6669 = vpop.f32.mrf.mxu0
      %v6670 = vadd.f32 %v6621, %v6669
      %6671 = vmatmul.bf16.gmra.mxu0 %v6354
      %v6672 = vpop.f32.mrf.mxu0
      %v6673 = vadd.f32 %v6624, %v6672
      %v6674 = vpop.f32.mrf.mxu0
      %v6675 = vadd.f32 %v6626, %v6674
      %6676 = vmatmul.bf16.gmra.mxu0 %v6358
      %v6677 = vpop.f32.mrf.mxu0
      %v6678 = vadd.f32 %v6629, %v6677
      %v6679 = vpop.f32.mrf.mxu0
      %v6680 = vadd.f32 %v6631, %v6679
      %6681 = vmatmul.bf16.gmra.mxu0 %v6362
      %v6682 = vpop.f32.mrf.mxu0
      %v6683 = vadd.f32 %v6634, %v6682
      %v6684 = vpop.f32.mrf.mxu0
      %v6685 = vadd.f32 %v6636, %v6684
      %6686 = vdwg.mxu0
      %6687 = vmatpush.bf16.msra.mxu0 %v6548
      %6688 = vmatpush.bf16.msra.mxu0 %v6547
      %6689 = vmatpush.bf16.msra.mxu0 %v6546
      %6690 = vmatpush.bf16.msra.mxu0 %v6545
      %6691 = vmatpush.bf16.msra.mxu0 %v6544
      %6692 = vmatpush.bf16.msra.mxu0 %v6543
      %6693 = vmatpush.bf16.msra.mxu0 %v6542
      %6694 = vmatpush.bf16.msra.mxu0 %v6541
      %6695 = vmatmul.bf16.gmra.mxu0 %v6335
      %v6696 = vpop.f32.mrf.mxu0
      %v6697 = vadd.f32 %v6648, %v6696
      %v6698 = vpop.f32.mrf.mxu0
      %v6699 = vadd.f32 %v6650, %v6698
      %6700 = vmatmul.bf16.gmra.mxu0 %v6339
      %v6701 = vpop.f32.mrf.mxu0
      %v6702 = vadd.f32 %v6653, %v6701
      %v6703 = vpop.f32.mrf.mxu0
      %v6704 = vadd.f32 %v6655, %v6703
      %6705 = vmatmul.bf16.gmra.mxu0 %v6343
      %v6706 = vpop.f32.mrf.mxu0
      %v6707 = vadd.f32 %v6658, %v6706
      %v6708 = vpop.f32.mrf.mxu0
      %v6709 = vadd.f32 %v6660, %v6708
      %6710 = vmatmul.bf16.gmra.mxu0 %v6347
      %v6711 = vpop.f32.mrf.mxu0
      %v6712 = vadd.f32 %v6663, %v6711
      %v6713 = vpop.f32.mrf.mxu0
      %v6714 = vadd.f32 %v6665, %v6713
      %6715 = vmatmul.bf16.gmra.mxu0 %v6351
      %v6716 = vpop.f32.mrf.mxu0
      %v6717 = vadd.f32 %v6668, %v6716
      %v6718 = vpop.f32.mrf.mxu0
      %v6719 = vadd.f32 %v6670, %v6718
      %6720 = vmatmul.bf16.gmra.mxu0 %v6355
      %v6721 = vpop.f32.mrf.mxu0
      %v6722 = vadd.f32 %v6673, %v6721
      %v6723 = vpop.f32.mrf.mxu0
      %v6724 = vadd.f32 %v6675, %v6723
      %6725 = vmatmul.bf16.gmra.mxu0 %v6359
      %v6726 = vpop.f32.mrf.mxu0
      %v6727 = vadd.f32 %v6678, %v6726
      %v6728 = vpop.f32.mrf.mxu0
      %v6729 = vadd.f32 %v6680, %v6728
      %6730 = vmatmul.bf16.gmra.mxu0 %v6363
      %v6731 = vpop.f32.mrf.mxu0
      %v6732 = vadd.f32 %v6683, %v6731
      %v6733 = vpop.f32.mrf.mxu0
      %v6734 = vadd.f32 %v6685, %v6733
      %6735 = vdwg.mxu0
      %6736 = vmatpush.bf16.msra.mxu0 %v6556
      %6737 = vmatpush.bf16.msra.mxu0 %v6555
      %6738 = vmatpush.bf16.msra.mxu0 %v6554
      %6739 = vmatpush.bf16.msra.mxu0 %v6553
      %6740 = vmatpush.bf16.msra.mxu0 %v6552
      %6741 = vmatpush.bf16.msra.mxu0 %v6551
      %6742 = vmatpush.bf16.msra.mxu0 %v6550
      %6743 = vmatpush.bf16.msra.mxu0 %v6549
      %6744 = vmatmul.bf16.gmra.mxu0 %v6336
      %v6745 = vpop.f32.mrf.mxu0
      %v6746 = vadd.f32 %v6697, %v6745
      %v6747 = vpop.f32.mrf.mxu0
      %v6748 = vadd.f32 %v6699, %v6747
      %6749 = vmatmul.bf16.gmra.mxu0 %v6340
      %v6750 = vpop.f32.mrf.mxu0
      %v6751 = vadd.f32 %v6702, %v6750
      %v6752 = vpop.f32.mrf.mxu0
      %v6753 = vadd.f32 %v6704, %v6752
      %6754 = vmatmul.bf16.gmra.mxu0 %v6344
      %v6755 = vpop.f32.mrf.mxu0
      %v6756 = vadd.f32 %v6707, %v6755
      %v6757 = vpop.f32.mrf.mxu0
      %v6758 = vadd.f32 %v6709, %v6757
      %6759 = vmatmul.bf16.gmra.mxu0 %v6348
      %v6760 = vpop.f32.mrf.mxu0
      %v6761 = vadd.f32 %v6712, %v6760
      %v6762 = vpop.f32.mrf.mxu0
      %v6763 = vadd.f32 %v6714, %v6762
      %6764 = vmatmul.bf16.gmra.mxu0 %v6352
      %v6765 = vpop.f32.mrf.mxu0
      %v6766 = vadd.f32 %v6717, %v6765
      %v6767 = vpop.f32.mrf.mxu0
      %v6768 = vadd.f32 %v6719, %v6767
      %6769 = vmatmul.bf16.gmra.mxu0 %v6356
      %v6770 = vpop.f32.mrf.mxu0
      %v6771 = vadd.f32 %v6722, %v6770
      %v6772 = vpop.f32.mrf.mxu0
      %v6773 = vadd.f32 %v6724, %v6772
      %6774 = vmatmul.bf16.gmra.mxu0 %v6360
      %v6775 = vpop.f32.mrf.mxu0
      %v6776 = vadd.f32 %v6727, %v6775
      %v6777 = vpop.f32.mrf.mxu0
      %v6778 = vadd.f32 %v6729, %v6777
      %6779 = vmatmul.bf16.gmra.mxu0 %v6364
      %v6780 = vpop.f32.mrf.mxu0
      %v6781 = vadd.f32 %v6732, %v6780
      %v6782 = vpop.f32.mrf.mxu0
      %v6783 = vadd.f32 %v6734, %v6782
      %6784 = vdwg.mxu0
      %v6785 = vadd.f32 %v5756, %v6746
      %v6786 = vadd.f32 %v5757, %v6748
      %v6787 = vadd.f32 %v5758, %v6751
      %v6788 = vadd.f32 %v5759, %v6753
      %v6789 = vadd.f32 %v5760, %v6756
      %v6790 = vadd.f32 %v5761, %v6758
      %v6791 = vadd.f32 %v5762, %v6761
      %v6792 = vadd.f32 %v5763, %v6763
      %v6793 = vadd.f32 %v5764, %v6766
      %v6794 = vadd.f32 %v5765, %v6768
      %v6795 = vadd.f32 %v5766, %v6771
      %v6796 = vadd.f32 %v5767, %v6773
      %v6797 = vadd.f32 %v5768, %v6776
      %v6798 = vadd.f32 %v5769, %v6778
      %v6799 = vadd.f32 %v5770, %v6781
      %v6800 = vadd.f32 %v5771, %v6783
      %v6801 = vld [vmem:[%s5110] sm:$0xee]
      %v6802 = vld [vmem:[%s5110 + $0x8] sm:$0xee]
      %v6803 = vld [vmem:[%s5110 + $0x30] sm:$0xee]
      %v6804 = vld [vmem:[%s5110 + $0x38] sm:$0xee]
      %v6805 = vld [vmem:[%s5110 + $0x60] sm:$0xee]
      %v6806 = vld [vmem:[%s5110 + $0x68] sm:$0xee]
      %v6807 = vld [vmem:[%s5110 + $0x90] sm:$0xee]
      %v6808 = vld [vmem:[%s5110 + $0x98] sm:$0xee]
      %v6809 = vld [vmem:[%s5110 + $0xc0] sm:$0xee]
      %v6810 = vld [vmem:[%s5110 + $0xc8] sm:$0xee]
      %v6811 = vld [vmem:[%s5110 + $0xf0] sm:$0xee]
      %v6812 = vld [vmem:[%s5110 + $0xf8] sm:$0xee]
      %v6813 = vld [vmem:[%s5110 + $0x120] sm:$0xee]
      %v6814 = vld [vmem:[%s5110 + $0x128] sm:$0xee]
      %v6815 = vld [vmem:[%s5110 + $0x150] sm:$0xee]
      %v6816 = vld [vmem:[%s5110 + $0x158] sm:$0xee]
      %v6865 = vrot.slane %v6801, 5
      %v6866 = vrot.slane %v6865, 4
      %v6867 = vrot.slane %v5774, 5
      %v6868 = vsel %vm1930, %v6866, %v6867
      %v6869 = vrot.slane %v6802, 5
      %v6870 = vrot.slane %v6869, 4
      %v6871 = vrot.slane %v5775, 5
      %v6872 = vsel %vm1930, %v6870, %v6871
      %v6873 = vrot.slane %v6867, 4
      %v6874 = vrot.slane %v5776, 5
      %v6875 = vsel %vm1930, %v6873, %v6874
      %v6876 = vrot.slane %v6871, 4
      %v6877 = vrot.slane %v5777, 5
      %v6878 = vsel %vm1930, %v6876, %v6877
      %v6879 = vrot.slane %v6803, 5
      %v6880 = vrot.slane %v6879, 4
      %v6881 = vrot.slane %v5780, 5
      %v6882 = vsel %vm1930, %v6880, %v6881
      %v6883 = vrot.slane %v6804, 5
      %v6884 = vrot.slane %v6883, 4
      %v6885 = vrot.slane %v5781, 5
      %v6886 = vsel %vm1930, %v6884, %v6885
      %v6887 = vrot.slane %v6881, 4
      %v6888 = vrot.slane %v5782, 5
      %v6889 = vsel %vm1930, %v6887, %v6888
      %v6890 = vrot.slane %v6885, 4
      %v6891 = vrot.slane %v5783, 5
      %v6892 = vsel %vm1930, %v6890, %v6891
      %v6893 = vrot.slane %v6805, 5
      %v6894 = vrot.slane %v6893, 4
      %v6895 = vrot.slane %v5786, 5
      %v6896 = vsel %vm1930, %v6894, %v6895
      %v6897 = vrot.slane %v6806, 5
      %v6898 = vrot.slane %v6897, 4
      %v6899 = vrot.slane %v5787, 5
      %v6900 = vsel %vm1930, %v6898, %v6899
      %v6901 = vrot.slane %v6895, 4
      %v6902 = vrot.slane %v5788, 5
      %v6903 = vsel %vm1930, %v6901, %v6902
      %v6904 = vrot.slane %v6899, 4
      %v6905 = vrot.slane %v5789, 5
      %v6906 = vsel %vm1930, %v6904, %v6905
      %v6907 = vrot.slane %v6807, 5
      %v6908 = vrot.slane %v6907, 4
      %v6909 = vrot.slane %v5792, 5
      %v6910 = vsel %vm1930, %v6908, %v6909
      %v6911 = vrot.slane %v6808, 5
      %v6912 = vrot.slane %v6911, 4
      %v6913 = vrot.slane %v5793, 5
      %v6914 = vsel %vm1930, %v6912, %v6913
      %v6915 = vrot.slane %v6909, 4
      %v6916 = vrot.slane %v5794, 5
      %v6917 = vsel %vm1930, %v6915, %v6916
      %v6918 = vrot.slane %v6913, 4
      %v6919 = vrot.slane %v5795, 5
      %v6920 = vsel %vm1930, %v6918, %v6919
      %v6921 = vrot.slane %v6809, 5
      %v6922 = vrot.slane %v6921, 4
      %v6923 = vrot.slane %v5798, 5
      %v6924 = vsel %vm1930, %v6922, %v6923
      %v6925 = vrot.slane %v6810, 5
      %v6926 = vrot.slane %v6925, 4
      %v6927 = vrot.slane %v5799, 5
      %v6928 = vsel %vm1930, %v6926, %v6927
      %v6929 = vrot.slane %v6923, 4
      %v6930 = vrot.slane %v5800, 5
      %v6931 = vsel %vm1930, %v6929, %v6930
      %v6932 = vrot.slane %v6927, 4
      %v6933 = vrot.slane %v5801, 5
      %v6934 = vsel %vm1930, %v6932, %v6933
      %v6935 = vrot.slane %v6811, 5
      %v6936 = vrot.slane %v6935, 4
      %v6937 = vrot.slane %v5804, 5
      %v6938 = vsel %vm1930, %v6936, %v6937
      %v6939 = vrot.slane %v6812, 5
      %v6940 = vrot.slane %v6939, 4
      %v6941 = vrot.slane %v5805, 5
      %v6942 = vsel %vm1930, %v6940, %v6941
      %v6943 = vrot.slane %v6937, 4
      %v6944 = vrot.slane %v5806, 5
      %v6945 = vsel %vm1930, %v6943, %v6944
      %v6946 = vrot.slane %v6941, 4
      %v6947 = vrot.slane %v5807, 5
      %v6948 = vsel %vm1930, %v6946, %v6947
      %v6949 = vrot.slane %v6813, 5
      %v6950 = vrot.slane %v6949, 4
      %v6951 = vrot.slane %v5810, 5
      %v6952 = vsel %vm1930, %v6950, %v6951
      %v6953 = vrot.slane %v6814, 5
      %v6954 = vrot.slane %v6953, 4
      %v6955 = vrot.slane %v5811, 5
      %v6956 = vsel %vm1930, %v6954, %v6955
      %v6957 = vrot.slane %v6951, 4
      %v6958 = vrot.slane %v5812, 5
      %v6959 = vsel %vm1930, %v6957, %v6958
      %v6960 = vrot.slane %v6955, 4
      %v6961 = vrot.slane %v5813, 5
      %v6962 = vsel %vm1930, %v6960, %v6961
      %v6963 = vrot.slane %v6815, 5
      %v6964 = vrot.slane %v6963, 4
      %v6965 = vrot.slane %v5816, 5
      %v6966 = vsel %vm1930, %v6964, %v6965
      %v6967 = vrot.slane %v6816, 5
      %v6968 = vrot.slane %v6967, 4
      %v6969 = vrot.slane %v5817, 5
      %v6970 = vsel %vm1930, %v6968, %v6969
      %v6971 = vrot.slane %v6965, 4
      %v6972 = vrot.slane %v5818, 5
      %v6973 = vsel %vm1930, %v6971, %v6972
      %v6974 = vrot.slane %v6969, 4
      %v6975 = vrot.slane %v5819, 5
      %v6976 = vsel %vm1930, %v6974, %v6975
      %s6977 = scalar_lea.vmem %s1, 2048
      %v6978 = vld [vmem:[%s6977] sm:$0xf]
      %v6979 = vld [vmem:[%s6977 + $0x4] sm:$0xf]
      %v6980 = vld [vmem:[%s6977 + $0x8] sm:$0xf]
      %v6981 = vld [vmem:[%s6977 + $0xc] sm:$0xf]
      %v6982 = vld [vmem:[%s6977 + $0x10] sm:$0xf]
      %v6983 = vld [vmem:[%s6977 + $0x14] sm:$0xf]
      %v6984 = vld [vmem:[%s6977 + $0x18] sm:$0xf]
      %v6985 = vld [vmem:[%s6977 + $0x1c] sm:$0xf]
      %v6986 = vld [vmem:[%s6977 + $0x20] sm:$0xf]
      %v6987 = vld [vmem:[%s6977 + $0x24] sm:$0xf]
      %v6988 = vld [vmem:[%s6977 + $0x28] sm:$0xf]
      %v6989 = vld [vmem:[%s6977 + $0x2c] sm:$0xf]
      %v6990 = vld [vmem:[%s6977 + $0x30] sm:$0xf]
      %v6991 = vld [vmem:[%s6977 + $0x34] sm:$0xf]
      %v6992 = vld [vmem:[%s6977 + $0x38] sm:$0xf]
      %v6993 = vld [vmem:[%s6977 + $0x3c] sm:$0xf]
      %v6994 = vld [vmem:[%s6977 + $0x40] sm:$0xf]
      %v6995 = vld [vmem:[%s6977 + $0x44] sm:$0xf]
      %v6996 = vld [vmem:[%s6977 + $0x48] sm:$0xf]
      %v6997 = vld [vmem:[%s6977 + $0x4c] sm:$0xf]
      %v6998 = vld [vmem:[%s6977 + $0x50] sm:$0xf]
      %v6999 = vld [vmem:[%s6977 + $0x54] sm:$0xf]
      %v7000 = vld [vmem:[%s6977 + $0x58] sm:$0xf]
      %v7001 = vld [vmem:[%s6977 + $0x5c] sm:$0xf]
      %v7002 = vld [vmem:[%s6977 + $0x60] sm:$0xf]
      %v7003 = vld [vmem:[%s6977 + $0x64] sm:$0xf]
      %v7004 = vld [vmem:[%s6977 + $0x68] sm:$0xf]
      %v7005 = vld [vmem:[%s6977 + $0x6c] sm:$0xf]
      %v7006 = vld [vmem:[%s6977 + $0x70] sm:$0xf]
      %v7007 = vld [vmem:[%s6977 + $0x74] sm:$0xf]
      %v7008 = vld [vmem:[%s6977 + $0x78] sm:$0xf]
      %v7009 = vld [vmem:[%s6977 + $0x7c] sm:$0xf]
      %v7010 = vld [vmem:[%s6977 + $0x80] sm:$0xf]
      %v7011 = vld [vmem:[%s6977 + $0x84] sm:$0xf]
      %v7012 = vld [vmem:[%s6977 + $0x88] sm:$0xf]
      %v7013 = vld [vmem:[%s6977 + $0x8c] sm:$0xf]
      %v7014 = vld [vmem:[%s6977 + $0x90] sm:$0xf]
      %v7015 = vld [vmem:[%s6977 + $0x94] sm:$0xf]
      %v7016 = vld [vmem:[%s6977 + $0x98] sm:$0xf]
      %v7017 = vld [vmem:[%s6977 + $0x9c] sm:$0xf]
      %v7018 = vld [vmem:[%s6977 + $0xa0] sm:$0xf]
      %v7019 = vld [vmem:[%s6977 + $0xa4] sm:$0xf]
      %v7020 = vld [vmem:[%s6977 + $0xa8] sm:$0xf]
      %v7021 = vld [vmem:[%s6977 + $0xac] sm:$0xf]
      %v7022 = vld [vmem:[%s6977 + $0xb0] sm:$0xf]
      %v7023 = vld [vmem:[%s6977 + $0xb4] sm:$0xf]
      %v7024 = vld [vmem:[%s6977 + $0xb8] sm:$0xf]
      %v7025 = vld [vmem:[%s6977 + $0xbc] sm:$0xf]
      %v7026 = vld [vmem:[%s6977 + $0xc0] sm:$0xf]
      %v7027 = vld [vmem:[%s6977 + $0xc4] sm:$0xf]
      %v7028 = vld [vmem:[%s6977 + $0xc8] sm:$0xf]
      %v7029 = vld [vmem:[%s6977 + $0xcc] sm:$0xf]
      %v7030 = vld [vmem:[%s6977 + $0xd0] sm:$0xf]
      %v7031 = vld [vmem:[%s6977 + $0xd4] sm:$0xf]
      %v7032 = vld [vmem:[%s6977 + $0xd8] sm:$0xf]
      %v7033 = vld [vmem:[%s6977 + $0xdc] sm:$0xf]
      %v7034 = vld [vmem:[%s6977 + $0xe0] sm:$0xf]
      %v7035 = vld [vmem:[%s6977 + $0xe4] sm:$0xf]
      %v7036 = vld [vmem:[%s6977 + $0xe8] sm:$0xf]
      %v7037 = vld [vmem:[%s6977 + $0xec] sm:$0xf]
      %v7038 = vld [vmem:[%s6977 + $0xf0] sm:$0xf]
      %v7039 = vld [vmem:[%s6977 + $0xf4] sm:$0xf]
      %v7040 = vld [vmem:[%s6977 + $0xf8] sm:$0xf]
      %v7041 = vld [vmem:[%s6977 + $0xfc] sm:$0xf]
      %v7042 = vunpack.c.l.b16 %v6868
      %v7043 = vunpack.c.h.b16 %v6868
      %v7044 = vunpack.c.l.b16 %v6872
      %v7045 = vunpack.c.h.b16 %v6872
      %v7046 = vunpack.c.l.b16 %v6875
      %v7047 = vunpack.c.h.b16 %v6875
      %v7048 = vunpack.c.l.b16 %v6878
      %v7049 = vunpack.c.h.b16 %v6878
      %v7050 = vunpack.c.l.b16 %v6882
      %v7051 = vunpack.c.h.b16 %v6882
      %v7052 = vunpack.c.l.b16 %v6886
      %v7053 = vunpack.c.h.b16 %v6886
      %v7054 = vunpack.c.l.b16 %v6889
      %v7055 = vunpack.c.h.b16 %v6889
      %v7056 = vunpack.c.l.b16 %v6892
      %v7057 = vunpack.c.h.b16 %v6892
      %v7058 = vunpack.c.l.b16 %v6896
      %v7059 = vunpack.c.h.b16 %v6896
      %v7060 = vunpack.c.l.b16 %v6900
      %v7061 = vunpack.c.h.b16 %v6900
      %v7062 = vunpack.c.l.b16 %v6903
      %v7063 = vunpack.c.h.b16 %v6903
      %v7064 = vunpack.c.l.b16 %v6906
      %v7065 = vunpack.c.h.b16 %v6906
      %v7066 = vunpack.c.l.b16 %v6910
      %v7067 = vunpack.c.h.b16 %v6910
      %v7068 = vunpack.c.l.b16 %v6914
      %v7069 = vunpack.c.h.b16 %v6914
      %v7070 = vunpack.c.l.b16 %v6917
      %v7071 = vunpack.c.h.b16 %v6917
      %v7072 = vunpack.c.l.b16 %v6920
      %v7073 = vunpack.c.h.b16 %v6920
      %v7074 = vunpack.c.l.b16 %v6924
      %v7075 = vunpack.c.h.b16 %v6924
      %v7076 = vunpack.c.l.b16 %v6928
      %v7077 = vunpack.c.h.b16 %v6928
      %v7078 = vunpack.c.l.b16 %v6931
      %v7079 = vunpack.c.h.b16 %v6931
      %v7080 = vunpack.c.l.b16 %v6934
      %v7081 = vunpack.c.h.b16 %v6934
      %v7082 = vunpack.c.l.b16 %v6938
      %v7083 = vunpack.c.h.b16 %v6938
      %v7084 = vunpack.c.l.b16 %v6942
      %v7085 = vunpack.c.h.b16 %v6942
      %v7086 = vunpack.c.l.b16 %v6945
      %v7087 = vunpack.c.h.b16 %v6945
      %v7088 = vunpack.c.l.b16 %v6948
      %v7089 = vunpack.c.h.b16 %v6948
      %v7090 = vunpack.c.l.b16 %v6952
      %v7091 = vunpack.c.h.b16 %v6952
      %v7092 = vunpack.c.l.b16 %v6956
      %v7093 = vunpack.c.h.b16 %v6956
      %v7094 = vunpack.c.l.b16 %v6959
      %v7095 = vunpack.c.h.b16 %v6959
      %v7096 = vunpack.c.l.b16 %v6962
      %v7097 = vunpack.c.h.b16 %v6962
      %v7098 = vunpack.c.l.b16 %v6966
      %v7099 = vunpack.c.h.b16 %v6966
      %v7100 = vunpack.c.l.b16 %v6970
      %v7101 = vunpack.c.h.b16 %v6970
      %v7102 = vunpack.c.l.b16 %v6973
      %v7103 = vunpack.c.h.b16 %v6973
      %v7104 = vunpack.c.l.b16 %v6976
      %v7105 = vunpack.c.h.b16 %v6976
      %v7106 = vpack.c.b16 %v7046, %v7042
      %v7107 = vpack.c.b16 %v7047, %v7043
      %v7108 = vpack.c.b16 %v7048, %v7044
      %v7109 = vpack.c.b16 %v7049, %v7045
      %v7110 = vpack.c.b16 %v7054, %v7050
      %v7111 = vpack.c.b16 %v7055, %v7051
      %v7112 = vpack.c.b16 %v7056, %v7052
      %v7113 = vpack.c.b16 %v7057, %v7053
      %v7114 = vpack.c.b16 %v7062, %v7058
      %v7115 = vpack.c.b16 %v7063, %v7059
      %v7116 = vpack.c.b16 %v7064, %v7060
      %v7117 = vpack.c.b16 %v7065, %v7061
      %v7118 = vpack.c.b16 %v7070, %v7066
      %v7119 = vpack.c.b16 %v7071, %v7067
      %v7120 = vpack.c.b16 %v7072, %v7068
      %v7121 = vpack.c.b16 %v7073, %v7069
      %v7122 = vpack.c.b16 %v7078, %v7074
      %v7123 = vpack.c.b16 %v7079, %v7075
      %v7124 = vpack.c.b16 %v7080, %v7076
      %v7125 = vpack.c.b16 %v7081, %v7077
      %v7126 = vpack.c.b16 %v7086, %v7082
      %v7127 = vpack.c.b16 %v7087, %v7083
      %v7128 = vpack.c.b16 %v7088, %v7084
      %v7129 = vpack.c.b16 %v7089, %v7085
      %v7130 = vpack.c.b16 %v7094, %v7090
      %v7131 = vpack.c.b16 %v7095, %v7091
      %v7132 = vpack.c.b16 %v7096, %v7092
      %v7133 = vpack.c.b16 %v7097, %v7093
      %v7134 = vpack.c.b16 %v7102, %v7098
      %v7135 = vpack.c.b16 %v7103, %v7099
      %v7136 = vpack.c.b16 %v7104, %v7100
      %v7137 = vpack.c.b16 %v7105, %v7101
      %v7234 = vunpack.c.l.b16 %v6978
      %v7235 = vunpack.c.l.b16 %v6979
      %v7236 = vunpack.c.l.b16 %v6980
      %v7237 = vunpack.c.l.b16 %v6981
      %v7238 = vunpack.c.l.b16 %v6982
      %v7239 = vunpack.c.l.b16 %v6983
      %v7240 = vunpack.c.l.b16 %v6984
      %v7241 = vunpack.c.l.b16 %v6985
      %v7242 = vunpack.c.l.b16 %v6986
      %v7243 = vunpack.c.l.b16 %v6987
      %v7244 = vunpack.c.l.b16 %v6988
      %v7245 = vunpack.c.l.b16 %v6989
      %v7246 = vunpack.c.l.b16 %v6990
      %v7247 = vunpack.c.l.b16 %v6991
      %v7248 = vunpack.c.l.b16 %v6992
      %v7249 = vunpack.c.l.b16 %v6993
      %v7250 = vunpack.c.l.b16 %v6994
      %v7251 = vunpack.c.l.b16 %v6995
      %v7252 = vunpack.c.l.b16 %v6996
      %v7253 = vunpack.c.l.b16 %v6997
      %v7254 = vunpack.c.l.b16 %v6998
      %v7255 = vunpack.c.l.b16 %v6999
      %v7256 = vunpack.c.l.b16 %v7000
      %v7257 = vunpack.c.l.b16 %v7001
      %v7258 = vunpack.c.l.b16 %v7002
      %v7259 = vunpack.c.l.b16 %v7003
      %v7260 = vunpack.c.l.b16 %v7004
      %v7261 = vunpack.c.l.b16 %v7005
      %v7262 = vunpack.c.l.b16 %v7006
      %v7263 = vunpack.c.l.b16 %v7007
      %v7264 = vunpack.c.l.b16 %v7008
      %v7265 = vunpack.c.l.b16 %v7009
      %v7266 = vunpack.c.l.b16 %v7010
      %v7267 = vunpack.c.l.b16 %v7011
      %v7268 = vunpack.c.l.b16 %v7012
      %v7269 = vunpack.c.l.b16 %v7013
      %v7270 = vunpack.c.l.b16 %v7014
      %v7271 = vunpack.c.l.b16 %v7015
      %v7272 = vunpack.c.l.b16 %v7016
      %v7273 = vunpack.c.l.b16 %v7017
      %v7274 = vunpack.c.l.b16 %v7018
      %v7275 = vunpack.c.l.b16 %v7019
      %v7276 = vunpack.c.l.b16 %v7020
      %v7277 = vunpack.c.l.b16 %v7021
      %v7278 = vunpack.c.l.b16 %v7022
      %v7279 = vunpack.c.l.b16 %v7023
      %v7280 = vunpack.c.l.b16 %v7024
      %v7281 = vunpack.c.l.b16 %v7025
      %v7282 = vunpack.c.l.b16 %v7026
      %v7283 = vunpack.c.l.b16 %v7027
      %v7284 = vunpack.c.l.b16 %v7028
      %v7285 = vunpack.c.l.b16 %v7029
      %v7286 = vunpack.c.l.b16 %v7030
      %v7287 = vunpack.c.l.b16 %v7031
      %v7288 = vunpack.c.l.b16 %v7032
      %v7289 = vunpack.c.l.b16 %v7033
      %v7290 = vunpack.c.l.b16 %v7034
      %v7291 = vunpack.c.l.b16 %v7035
      %v7292 = vunpack.c.l.b16 %v7036
      %v7293 = vunpack.c.l.b16 %v7037
      %v7294 = vunpack.c.l.b16 %v7038
      %v7295 = vunpack.c.l.b16 %v7039
      %v7296 = vunpack.c.l.b16 %v7040
      %v7297 = vunpack.c.l.b16 %v7041
      %v7298 = vpack.c.b16 %v7235, %v7234
      %v7299 = vpack.c.b16 %v7237, %v7236
      %v7300 = vpack.c.b16 %v7239, %v7238
      %v7301 = vpack.c.b16 %v7241, %v7240
      %v7302 = vpack.c.b16 %v7243, %v7242
      %v7303 = vpack.c.b16 %v7245, %v7244
      %v7304 = vpack.c.b16 %v7247, %v7246
      %v7305 = vpack.c.b16 %v7249, %v7248
      %v7306 = vpack.c.b16 %v7251, %v7250
      %v7307 = vpack.c.b16 %v7253, %v7252
      %v7308 = vpack.c.b16 %v7255, %v7254
      %v7309 = vpack.c.b16 %v7257, %v7256
      %v7310 = vpack.c.b16 %v7259, %v7258
      %v7311 = vpack.c.b16 %v7261, %v7260
      %v7312 = vpack.c.b16 %v7263, %v7262
      %v7313 = vpack.c.b16 %v7265, %v7264
      %v7314 = vpack.c.b16 %v7267, %v7266
      %v7315 = vpack.c.b16 %v7269, %v7268
      %v7316 = vpack.c.b16 %v7271, %v7270
      %v7317 = vpack.c.b16 %v7273, %v7272
      %v7318 = vpack.c.b16 %v7275, %v7274
      %v7319 = vpack.c.b16 %v7277, %v7276
      %v7320 = vpack.c.b16 %v7279, %v7278
      %v7321 = vpack.c.b16 %v7281, %v7280
      %v7322 = vpack.c.b16 %v7283, %v7282
      %v7323 = vpack.c.b16 %v7285, %v7284
      %v7324 = vpack.c.b16 %v7287, %v7286
      %v7325 = vpack.c.b16 %v7289, %v7288
      %v7326 = vpack.c.b16 %v7291, %v7290
      %v7327 = vpack.c.b16 %v7293, %v7292
      %v7328 = vpack.c.b16 %v7295, %v7294
      %v7329 = vpack.c.b16 %v7297, %v7296
      %7362 = vmatpush.bf16.msra.mxu0 %v7305
      %7363 = vmatpush.bf16.msra.mxu0 %v7304
      %7364 = vmatpush.bf16.msra.mxu0 %v7303
      %7365 = vmatpush.bf16.msra.mxu0 %v7302
      %7366 = vmatpush.bf16.msra.mxu0 %v7301
      %7367 = vmatpush.bf16.msra.mxu0 %v7300
      %7368 = vmatpush.bf16.msra.mxu0 %v7299
      %7369 = vmatpush.bf16.msra.mxu0 %v7298
      %7370 = vmatmul.bf16.gmra.mxu0 %v7106
      %v7371 = vpop.f32.mrf.mxu0
      %v7372 = vadd.f32 0.0, %v7371
      %v7373 = vpop.f32.mrf.mxu0
      %v7374 = vadd.f32 0.0, %v7373
      %7375 = vmatmul.bf16.gmra.mxu0 %v7110
      %v7376 = vpop.f32.mrf.mxu0
      %v7377 = vadd.f32 0.0, %v7376
      %v7378 = vpop.f32.mrf.mxu0
      %v7379 = vadd.f32 0.0, %v7378
      %7380 = vmatmul.bf16.gmra.mxu0 %v7114
      %v7381 = vpop.f32.mrf.mxu0
      %v7382 = vadd.f32 0.0, %v7381
      %v7383 = vpop.f32.mrf.mxu0
      %v7384 = vadd.f32 0.0, %v7383
      %7385 = vmatmul.bf16.gmra.mxu0 %v7118
      %v7386 = vpop.f32.mrf.mxu0
      %v7387 = vadd.f32 0.0, %v7386
      %v7388 = vpop.f32.mrf.mxu0
      %v7389 = vadd.f32 0.0, %v7388
      %7390 = vmatmul.bf16.gmra.mxu0 %v7122
      %v7391 = vpop.f32.mrf.mxu0
      %v7392 = vadd.f32 0.0, %v7391
      %v7393 = vpop.f32.mrf.mxu0
      %v7394 = vadd.f32 0.0, %v7393
      %7395 = vmatmul.bf16.gmra.mxu0 %v7126
      %v7396 = vpop.f32.mrf.mxu0
      %v7397 = vadd.f32 0.0, %v7396
      %v7398 = vpop.f32.mrf.mxu0
      %v7399 = vadd.f32 0.0, %v7398
      %7400 = vmatmul.bf16.gmra.mxu0 %v7130
      %v7401 = vpop.f32.mrf.mxu0
      %v7402 = vadd.f32 0.0, %v7401
      %v7403 = vpop.f32.mrf.mxu0
      %v7404 = vadd.f32 0.0, %v7403
      %7405 = vmatmul.bf16.gmra.mxu0 %v7134
      %v7406 = vpop.f32.mrf.mxu0
      %v7407 = vadd.f32 0.0, %v7406
      %v7408 = vpop.f32.mrf.mxu0
      %v7409 = vadd.f32 0.0, %v7408
      %7410 = vdwg.mxu0
      %7411 = vmatpush.bf16.msra.mxu0 %v7313
      %7412 = vmatpush.bf16.msra.mxu0 %v7312
      %7413 = vmatpush.bf16.msra.mxu0 %v7311
      %7414 = vmatpush.bf16.msra.mxu0 %v7310
      %7415 = vmatpush.bf16.msra.mxu0 %v7309
      %7416 = vmatpush.bf16.msra.mxu0 %v7308
      %7417 = vmatpush.bf16.msra.mxu0 %v7307
      %7418 = vmatpush.bf16.msra.mxu0 %v7306
      %7419 = vmatmul.bf16.gmra.mxu0 %v7107
      %v7420 = vpop.f32.mrf.mxu0
      %v7421 = vadd.f32 %v7372, %v7420
      %v7422 = vpop.f32.mrf.mxu0
      %v7423 = vadd.f32 %v7374, %v7422
      %7424 = vmatmul.bf16.gmra.mxu0 %v7111
      %v7425 = vpop.f32.mrf.mxu0
      %v7426 = vadd.f32 %v7377, %v7425
      %v7427 = vpop.f32.mrf.mxu0
      %v7428 = vadd.f32 %v7379, %v7427
      %7429 = vmatmul.bf16.gmra.mxu0 %v7115
      %v7430 = vpop.f32.mrf.mxu0
      %v7431 = vadd.f32 %v7382, %v7430
      %v7432 = vpop.f32.mrf.mxu0
      %v7433 = vadd.f32 %v7384, %v7432
      %7434 = vmatmul.bf16.gmra.mxu0 %v7119
      %v7435 = vpop.f32.mrf.mxu0
      %v7436 = vadd.f32 %v7387, %v7435
      %v7437 = vpop.f32.mrf.mxu0
      %v7438 = vadd.f32 %v7389, %v7437
      %7439 = vmatmul.bf16.gmra.mxu0 %v7123
      %v7440 = vpop.f32.mrf.mxu0
      %v7441 = vadd.f32 %v7392, %v7440
      %v7442 = vpop.f32.mrf.mxu0
      %v7443 = vadd.f32 %v7394, %v7442
      %7444 = vmatmul.bf16.gmra.mxu0 %v7127
      %v7445 = vpop.f32.mrf.mxu0
      %v7446 = vadd.f32 %v7397, %v7445
      %v7447 = vpop.f32.mrf.mxu0
      %v7448 = vadd.f32 %v7399, %v7447
      %7449 = vmatmul.bf16.gmra.mxu0 %v7131
      %v7450 = vpop.f32.mrf.mxu0
      %v7451 = vadd.f32 %v7402, %v7450
      %v7452 = vpop.f32.mrf.mxu0
      %v7453 = vadd.f32 %v7404, %v7452
      %7454 = vmatmul.bf16.gmra.mxu0 %v7135
      %v7455 = vpop.f32.mrf.mxu0
      %v7456 = vadd.f32 %v7407, %v7455
      %v7457 = vpop.f32.mrf.mxu0
      %v7458 = vadd.f32 %v7409, %v7457
      %7459 = vdwg.mxu0
      %7460 = vmatpush.bf16.msra.mxu0 %v7321
      %7461 = vmatpush.bf16.msra.mxu0 %v7320
      %7462 = vmatpush.bf16.msra.mxu0 %v7319
      %7463 = vmatpush.bf16.msra.mxu0 %v7318
      %7464 = vmatpush.bf16.msra.mxu0 %v7317
      %7465 = vmatpush.bf16.msra.mxu0 %v7316
      %7466 = vmatpush.bf16.msra.mxu0 %v7315
      %7467 = vmatpush.bf16.msra.mxu0 %v7314
      %7468 = vmatmul.bf16.gmra.mxu0 %v7108
      %v7469 = vpop.f32.mrf.mxu0
      %v7470 = vadd.f32 %v7421, %v7469
      %v7471 = vpop.f32.mrf.mxu0
      %v7472 = vadd.f32 %v7423, %v7471
      %7473 = vmatmul.bf16.gmra.mxu0 %v7112
      %v7474 = vpop.f32.mrf.mxu0
      %v7475 = vadd.f32 %v7426, %v7474
      %v7476 = vpop.f32.mrf.mxu0
      %v7477 = vadd.f32 %v7428, %v7476
      %7478 = vmatmul.bf16.gmra.mxu0 %v7116
      %v7479 = vpop.f32.mrf.mxu0
      %v7480 = vadd.f32 %v7431, %v7479
      %v7481 = vpop.f32.mrf.mxu0
      %v7482 = vadd.f32 %v7433, %v7481
      %7483 = vmatmul.bf16.gmra.mxu0 %v7120
      %v7484 = vpop.f32.mrf.mxu0
      %v7485 = vadd.f32 %v7436, %v7484
      %v7486 = vpop.f32.mrf.mxu0
      %v7487 = vadd.f32 %v7438, %v7486
      %7488 = vmatmul.bf16.gmra.mxu0 %v7124
      %v7489 = vpop.f32.mrf.mxu0
      %v7490 = vadd.f32 %v7441, %v7489
      %v7491 = vpop.f32.mrf.mxu0
      %v7492 = vadd.f32 %v7443, %v7491
      %7493 = vmatmul.bf16.gmra.mxu0 %v7128
      %v7494 = vpop.f32.mrf.mxu0
      %v7495 = vadd.f32 %v7446, %v7494
      %v7496 = vpop.f32.mrf.mxu0
      %v7497 = vadd.f32 %v7448, %v7496
      %7498 = vmatmul.bf16.gmra.mxu0 %v7132
      %v7499 = vpop.f32.mrf.mxu0
      %v7500 = vadd.f32 %v7451, %v7499
      %v7501 = vpop.f32.mrf.mxu0
      %v7502 = vadd.f32 %v7453, %v7501
      %7503 = vmatmul.bf16.gmra.mxu0 %v7136
      %v7504 = vpop.f32.mrf.mxu0
      %v7505 = vadd.f32 %v7456, %v7504
      %v7506 = vpop.f32.mrf.mxu0
      %v7507 = vadd.f32 %v7458, %v7506
      %7508 = vdwg.mxu0
      %7509 = vmatpush.bf16.msra.mxu0 %v7329
      %7510 = vmatpush.bf16.msra.mxu0 %v7328
      %7511 = vmatpush.bf16.msra.mxu0 %v7327
      %7512 = vmatpush.bf16.msra.mxu0 %v7326
      %7513 = vmatpush.bf16.msra.mxu0 %v7325
      %7514 = vmatpush.bf16.msra.mxu0 %v7324
      %7515 = vmatpush.bf16.msra.mxu0 %v7323
      %7516 = vmatpush.bf16.msra.mxu0 %v7322
      %7517 = vmatmul.bf16.gmra.mxu0 %v7109
      %v7518 = vpop.f32.mrf.mxu0
      %v7519 = vadd.f32 %v7470, %v7518
      %v7520 = vpop.f32.mrf.mxu0
      %v7521 = vadd.f32 %v7472, %v7520
      %7522 = vmatmul.bf16.gmra.mxu0 %v7113
      %v7523 = vpop.f32.mrf.mxu0
      %v7524 = vadd.f32 %v7475, %v7523
      %v7525 = vpop.f32.mrf.mxu0
      %v7526 = vadd.f32 %v7477, %v7525
      %7527 = vmatmul.bf16.gmra.mxu0 %v7117
      %v7528 = vpop.f32.mrf.mxu0
      %v7529 = vadd.f32 %v7480, %v7528
      %v7530 = vpop.f32.mrf.mxu0
      %v7531 = vadd.f32 %v7482, %v7530
      %7532 = vmatmul.bf16.gmra.mxu0 %v7121
      %v7533 = vpop.f32.mrf.mxu0
      %v7534 = vadd.f32 %v7485, %v7533
      %v7535 = vpop.f32.mrf.mxu0
      %v7536 = vadd.f32 %v7487, %v7535
      %7537 = vmatmul.bf16.gmra.mxu0 %v7125
      %v7538 = vpop.f32.mrf.mxu0
      %v7539 = vadd.f32 %v7490, %v7538
      %v7540 = vpop.f32.mrf.mxu0
      %v7541 = vadd.f32 %v7492, %v7540
      %7542 = vmatmul.bf16.gmra.mxu0 %v7129
      %v7543 = vpop.f32.mrf.mxu0
      %v7544 = vadd.f32 %v7495, %v7543
      %v7545 = vpop.f32.mrf.mxu0
      %v7546 = vadd.f32 %v7497, %v7545
      %7547 = vmatmul.bf16.gmra.mxu0 %v7133
      %v7548 = vpop.f32.mrf.mxu0
      %v7549 = vadd.f32 %v7500, %v7548
      %v7550 = vpop.f32.mrf.mxu0
      %v7551 = vadd.f32 %v7502, %v7550
      %7552 = vmatmul.bf16.gmra.mxu0 %v7137
      %v7553 = vpop.f32.mrf.mxu0
      %v7554 = vadd.f32 %v7505, %v7553
      %v7555 = vpop.f32.mrf.mxu0
      %v7556 = vadd.f32 %v7507, %v7555
      %7557 = vdwg.mxu0
      %v7558 = vadd.f32 %v6785, %v7519
      %v7559 = vadd.f32 %v6786, %v7521
      %v7560 = vadd.f32 %v6787, %v7524
      %v7561 = vadd.f32 %v6788, %v7526
      %v7562 = vadd.f32 %v6789, %v7529
      %v7563 = vadd.f32 %v6790, %v7531
      %v7564 = vadd.f32 %v6791, %v7534
      %v7565 = vadd.f32 %v6792, %v7536
      %v7566 = vadd.f32 %v6793, %v7539
      %v7567 = vadd.f32 %v6794, %v7541
      %v7568 = vadd.f32 %v6795, %v7544
      %v7569 = vadd.f32 %v6796, %v7546
      %v7570 = vadd.f32 %v6797, %v7549
      %v7571 = vadd.f32 %v6798, %v7551
      %v7572 = vadd.f32 %v6799, %v7554
      %v7573 = vadd.f32 %v6800, %v7556
      %v7574 = vld [vmem:[%s2] sm:$0x1]
      %v7576 = vperm.slane %v7574, 0
      %v7578 = vadd.f32 %v7558, %v7576
      %v7579 = vadd.f32 %v7559, %v7576
      %v7580 = vadd.f32 %v7560, %v7576
      %v7581 = vadd.f32 %v7561, %v7576
      %v7582 = vadd.f32 %v7562, %v7576
      %v7583 = vadd.f32 %v7563, %v7576
      %v7584 = vadd.f32 %v7564, %v7576
      %v7585 = vadd.f32 %v7565, %v7576
      %v7586 = vadd.f32 %v7566, %v7576
      %v7587 = vadd.f32 %v7567, %v7576
      %v7588 = vadd.f32 %v7568, %v7576
      %v7589 = vadd.f32 %v7569, %v7576
      %v7590 = vadd.f32 %v7570, %v7576
      %v7591 = vadd.f32 %v7571, %v7576
      %v7592 = vadd.f32 %v7572, %v7576
      %v7593 = vadd.f32 %v7573, %v7576
      %v7594 = vmax.f32 %v7578, 0.0
      %v7595 = vmax.f32 %v7579, 0.0
      %v7596 = vmax.f32 %v7580, 0.0
      %v7597 = vmax.f32 %v7581, 0.0
      %v7598 = vmax.f32 %v7582, 0.0
      %v7599 = vmax.f32 %v7583, 0.0
      %v7600 = vmax.f32 %v7584, 0.0
      %v7601 = vmax.f32 %v7585, 0.0
      %v7602 = vmax.f32 %v7586, 0.0
      %v7603 = vmax.f32 %v7587, 0.0
      %v7604 = vmax.f32 %v7588, 0.0
      %v7605 = vmax.f32 %v7589, 0.0
      %v7606 = vmax.f32 %v7590, 0.0
      %v7607 = vmax.f32 %v7591, 0.0
      %v7608 = vmax.f32 %v7592, 0.0
      %v7609 = vmax.f32 %v7593, 0.0
      %v7610 = vpack.c.bf16 %v7595, %v7594
      %v7611 = vpack.c.bf16 %v7597, %v7596
      %v7612 = vpack.c.bf16 %v7599, %v7598
      %v7613 = vpack.c.bf16 %v7601, %v7600
      %v7614 = vpack.c.bf16 %v7603, %v7602
      %v7615 = vpack.c.bf16 %v7605, %v7604
      %v7616 = vpack.c.bf16 %v7607, %v7606
      %v7617 = vpack.c.bf16 %v7609, %v7608
      %v7618 = vld [vmem:[%s3] sm:$0xf]
      %v7619 = vld [vmem:[%s3 + $0x4] sm:$0xf]
      %v7620 = vld [vmem:[%s3 + $0x8] sm:$0xf]
      %v7621 = vld [vmem:[%s3 + $0xc] sm:$0xf]
      %v7622 = vld [vmem:[%s3 + $0x10] sm:$0xf]
      %v7623 = vld [vmem:[%s3 + $0x14] sm:$0xf]
      %v7624 = vld [vmem:[%s3 + $0x18] sm:$0xf]
      %v7625 = vld [vmem:[%s3 + $0x1c] sm:$0xf]
      %v7626 = vld [vmem:[%s3 + $0x20] sm:$0xf]
      %v7627 = vld [vmem:[%s3 + $0x24] sm:$0xf]
      %v7628 = vld [vmem:[%s3 + $0x28] sm:$0xf]
      %v7629 = vld [vmem:[%s3 + $0x2c] sm:$0xf]
      %v7630 = vld [vmem:[%s3 + $0x30] sm:$0xf]
      %v7631 = vld [vmem:[%s3 + $0x34] sm:$0xf]
      %v7632 = vld [vmem:[%s3 + $0x38] sm:$0xf]
      %v7633 = vld [vmem:[%s3 + $0x3c] sm:$0xf]
      %v7634 = vld [vmem:[%s4] sm:$0x1]
      %v7636 = vperm.slane %v7634, 0
      %v7654 = vunpack.c.l.b16 %v7618
      %v7655 = vunpack.c.l.b16 %v7619
      %v7656 = vunpack.c.l.b16 %v7620
      %v7657 = vunpack.c.l.b16 %v7621
      %v7658 = vunpack.c.l.b16 %v7622
      %v7659 = vunpack.c.l.b16 %v7623
      %v7660 = vunpack.c.l.b16 %v7624
      %v7661 = vunpack.c.l.b16 %v7625
      %v7662 = vunpack.c.l.b16 %v7626
      %v7663 = vunpack.c.l.b16 %v7627
      %v7664 = vunpack.c.l.b16 %v7628
      %v7665 = vunpack.c.l.b16 %v7629
      %v7666 = vunpack.c.l.b16 %v7630
      %v7667 = vunpack.c.l.b16 %v7631
      %v7668 = vunpack.c.l.b16 %v7632
      %v7669 = vunpack.c.l.b16 %v7633
      %v7670 = vpack.c.b16 %v7655, %v7654
      %v7671 = vpack.c.b16 %v7657, %v7656
      %v7672 = vpack.c.b16 %v7659, %v7658
      %v7673 = vpack.c.b16 %v7661, %v7660
      %v7674 = vpack.c.b16 %v7663, %v7662
      %v7675 = vpack.c.b16 %v7665, %v7664
      %v7676 = vpack.c.b16 %v7667, %v7666
      %v7677 = vpack.c.b16 %v7669, %v7668
      %7686 = vmatpush.bf16.msra.mxu0 %v7677
      %7687 = vmatpush.bf16.msra.mxu0 %v7676
      %7688 = vmatpush.bf16.msra.mxu0 %v7675
      %7689 = vmatpush.bf16.msra.mxu0 %v7674
      %7690 = vmatpush.bf16.msra.mxu0 %v7673
      %7691 = vmatpush.bf16.msra.mxu0 %v7672
      %7692 = vmatpush.bf16.msra.mxu0 %v7671
      %7693 = vmatpush.bf16.msra.mxu0 %v7670
      %7694 = vmatmul.bf16.gmra.mxu0 %v7610
      %v7695 = vpop.f32.mrf.mxu0
      %v7696 = vadd.f32 %v7636, %v7695
      %v7697 = vpop.f32.mrf.mxu0
      %v7698 = vadd.f32 %v7636, %v7697
      %7699 = vmatmul.bf16.gmra.mxu0 %v7611
      %v7700 = vpop.f32.mrf.mxu0
      %v7701 = vadd.f32 %v7636, %v7700
      %v7702 = vpop.f32.mrf.mxu0
      %v7703 = vadd.f32 %v7636, %v7702
      %7704 = vmatmul.bf16.gmra.mxu0 %v7612
      %v7705 = vpop.f32.mrf.mxu0
      %v7706 = vadd.f32 %v7636, %v7705
      %v7707 = vpop.f32.mrf.mxu0
      %v7708 = vadd.f32 %v7636, %v7707
      %7709 = vmatmul.bf16.gmra.mxu0 %v7613
      %v7710 = vpop.f32.mrf.mxu0
      %v7711 = vadd.f32 %v7636, %v7710
      %v7712 = vpop.f32.mrf.mxu0
      %v7713 = vadd.f32 %v7636, %v7712
      %7714 = vmatmul.bf16.gmra.mxu0 %v7614
      %v7715 = vpop.f32.mrf.mxu0
      %v7716 = vadd.f32 %v7636, %v7715
      %v7717 = vpop.f32.mrf.mxu0
      %v7718 = vadd.f32 %v7636, %v7717
      %7719 = vmatmul.bf16.gmra.mxu0 %v7615
      %v7720 = vpop.f32.mrf.mxu0
      %v7721 = vadd.f32 %v7636, %v7720
      %v7722 = vpop.f32.mrf.mxu0
      %v7723 = vadd.f32 %v7636, %v7722
      %7724 = vmatmul.bf16.gmra.mxu0 %v7616
      %v7725 = vpop.f32.mrf.mxu0
      %v7726 = vadd.f32 %v7636, %v7725
      %v7727 = vpop.f32.mrf.mxu0
      %v7728 = vadd.f32 %v7636, %v7727
      %7729 = vmatmul.bf16.gmra.mxu0 %v7617
      %v7730 = vpop.f32.mrf.mxu0
      %v7731 = vadd.f32 %v7636, %v7730
      %v7732 = vpop.f32.mrf.mxu0
      %v7733 = vadd.f32 %v7636, %v7732
      %7734 = vdwg.mxu0
      %v7735 = vpack.c.bf16 %v7696, %v7696
      %v7736 = vpack.c.bf16 %v7698, %v7698
      %v7737 = vpack.c.bf16 %v7701, %v7701
      %v7738 = vpack.c.bf16 %v7703, %v7703
      %v7739 = vpack.c.bf16 %v7706, %v7706
      %v7740 = vpack.c.bf16 %v7708, %v7708
      %v7741 = vpack.c.bf16 %v7711, %v7711
      %v7742 = vpack.c.bf16 %v7713, %v7713
      %v7743 = vpack.c.bf16 %v7716, %v7716
      %v7744 = vpack.c.bf16 %v7718, %v7718
      %v7745 = vpack.c.bf16 %v7721, %v7721
      %v7746 = vpack.c.bf16 %v7723, %v7723
      %v7747 = vpack.c.bf16 %v7726, %v7726
      %v7748 = vpack.c.bf16 %v7728, %v7728
      %v7749 = vpack.c.bf16 %v7731, %v7731
      %v7750 = vpack.c.bf16 %v7733, %v7733
      %7751 = vst [vmem:[%s246] sm:$0xf] %v7735
      %7752 = vst [vmem:[%s246 + $0x4] sm:$0xf] %v7736
      %7753 = vst [vmem:[%s246 + $0x8] sm:$0xf] %v7737
      %7754 = vst [vmem:[%s246 + $0xc] sm:$0xf] %v7738
      %7755 = vst [vmem:[%s246 + $0x10] sm:$0xf] %v7739
      %7756 = vst [vmem:[%s246 + $0x14] sm:$0xf] %v7740
      %7757 = vst [vmem:[%s246 + $0x18] sm:$0xf] %v7741
      %7758 = vst [vmem:[%s246 + $0x1c] sm:$0xf] %v7742
      %7759 = vst [vmem:[%s246 + $0x20] sm:$0xf] %v7743
      %7760 = vst [vmem:[%s246 + $0x24] sm:$0xf] %v7744
      %7761 = vst [vmem:[%s246 + $0x28] sm:$0xf] %v7745
      %7762 = vst [vmem:[%s246 + $0x2c] sm:$0xf] %v7746
      %7763 = vst [vmem:[%s246 + $0x30] sm:$0xf] %v7747
      %7764 = vst [vmem:[%s246 + $0x34] sm:$0xf] %v7748
      %7765 = vst [vmem:[%s246 + $0x38] sm:$0xf] %v7749
      %7766 = vst [vmem:[%s246 + $0x3c] sm:$0xf] %v7750
      %s7767 = smul.u32 16, %s21
      %p7768 = scmp.lt.s32.totalorder %s20, 1
      %s7769 = scalar_select %p7768, %s20, 1
      %p7770 = scmp.lt.s32.totalorder %s7767, 31
      %s7771 = scalar_select %p7770, %s7767, 31
      %s7772 = smul.addr %s7769, 32
      %s7773 = sadd.s32 %s7771, %s7772
      %s7774 = smul.addr %s7773, 4
      %s7775 = scalar_lea.vmem %s5, %s7774
      // Predicated region
      $region41: #{fcn_head_forward.1} parent=39 // pred_check
        %p7776 = pneg %p158
      $region42: #{fcn_head_forward.1} parent=39 // pred_check_branch
        %7778 = sbr.rel (%p7776) target = $region44
      $region43: #{fcn_head_forward.1} parent=39 // pred_region
        %s7779 = smul.u32 16, %s21
      $region44: #{fcn_head_forward.1} parent=39 // pred_fallthru
        _
    $region40: #{fcn_head_forward.1} parent=5 // pred_fallthru
      _
    %p7780 = scmp.le.s32.totalorder 2, %s11
    // Predicated region
    $region45: #{fcn_head_forward.1} parent=5 // pred_check
      %p7781 = pneg %p7780
    $region46: #{fcn_head_forward.1} parent=5 // pred_check_branch
      %7783 = sbr.rel (%p7781) target = $region48
    $region47: #{fcn_head_forward.1} parent=5 // pred_region
      %s7784 = ssub.s32 %s11, 2
      // Predicated region
      $region49: #{fcn_head_forward.1} parent=47 // pred_check
        %p7785 = pneg %p164
      $region50: #{fcn_head_forward.1} parent=47 // pred_check_branch
        %7787 = sbr.rel (%p7785) target = $region52
      $region51: #{fcn_head_forward.1} parent=47 // pred_region
        %s7788 = smul.u32 16, %s23
        %p7789 = scmp.lt.s32.totalorder %s22, 1
        %s7790 = scalar_select %p7789, %s22, 1
        %p7791 = scmp.lt.s32.totalorder %s7788, 31
        %s7792 = scalar_select %p7791, %s7788, 31
        %s7793 = smul.addr %s7790, 32
        %s7794 = sadd.s32 %s7792, %s7793
        %s7795 = smul.addr %s7794, 4
        %s7796 = scalar_lea.vmem %s5, %s7795
      $region52: #{fcn_head_forward.1} parent=47 // pred_fallthru
        _
    $region48: #{fcn_head_forward.1} parent=5 // pred_fallthru
      _
  $region6: #{fcn_head_forward.1} parent=0 // loop_footer
    %s15 = sadd.s32 1, %s11
  $region7: #{fcn_head_forward.1} parent=0 // loop_footer_branch
    %10 = sbr.rel target = $region3
  $region8: #{fcn_head_forward.1} parent=0 // loop_exit
    _

</llo_original>
